<compile_context>
chip_gen: v6e
topology: v6e:2x2x1
jax: 0.10.0
libtpu: 0.0.40
codegen_flags: <defaults>
</compile_context>

<pallas_src>
import functools
import math

import jax
import jax.numpy as jnp
from jax.experimental import pallas as pl
from jax.experimental.pallas import tpu as pltpu

# ----------------------------- configuration -------------------------------
NUM_LAYERS = 4
NUM_F_MAPS = 16
DIM = 4
NUM_CLASSES = [5, 7]
WINDOW_DIM = 0
OFFLINE_MODE = False          # online -> left pad 2*d, right pad min(window,d)
LANES = 128                   # lane-dense activation width (F zero-padded)
BATCH_BLOCK = 8               # max batch elements per grid step


def _conv_pads(d, window_dim, offline_mode):
    """(left, right) zero padding used by Dilated_conv for dilation d."""
    if offline_mode:
        return d, d
    w = min(window_dim, d)
    return 2 * d - w, w


# ------------------------------ fused kernel --------------------------------
def _pg_fused_kernel(x_ref, w_ref, out_ref, fpad_ref, *, bb, seq_len, pad_l,
                     pad_r, dim, lanes, off_wc, off_bc, off_bl, off_wout,
                     off_bout, layer_taps):
    """One batch block (BB elements), entirely in VMEM.

    x_ref    : (BB, T, dim)           time-major input block
    w_ref    : (ROWS, 128)            packed lane-dense weight slab
    out_ref  : (BB, T, 128)           lane-dense output slab block
    fpad_ref : (BB, pad_l+T+pad_r,128) zero-padded feature scratch
    """
    T, D, BB, LW = seq_len, dim, bb, lanes

    # Zero ONLY the padding rows.  Middle T rows are overwritten every layer.
    # Done every step (cheap) so it stays correct when the "parallel" grid
    # axis is sharded across TensorCores (each core has its own scratch).
    if pad_l > 0:
        fpad_ref[:, 0:pad_l, :] = jnp.zeros((BB, pad_l, LW), jnp.float32)
    if pad_r > 0:
        fpad_ref[:, pad_l + T:pad_l + T + pad_r, :] = jnp.zeros(
            (BB, pad_r, LW), jnp.float32)

    wc = w_ref[off_wc:off_wc + D, :]                       # (D, 128)
    bc = w_ref[off_bc:off_bc + 1, :]                       # (1, 128)

    # conv_1x1_in over the whole batch block at once: (BB*T, D) @ (D, 128).
    x = x_ref[...].reshape(BB * T, D)
    f = jnp.dot(x, wc, preferred_element_type=jnp.float32) + bc   # (BB*T,128)

    # Dual dilated conv + channel concat + fusion 1x1, folded per unique tap.
    for i, taps in enumerate(layer_taps):
        # Make the carried activation visible to this layer's shifted taps.
        fpad_ref[:, pad_l:pad_l + T, :] = f.reshape(BB, T, LW)
        y = None
        for start, wrow in taps:                           # static offsets
            w_tap = w_ref[wrow:wrow + LW, :]               # (128, 128)
            if start == pad_l:                             # unshifted tap
                lhs = f                                    # reuse carried val
            else:
                lhs = fpad_ref[:, start:start + T, :].reshape(BB * T, LW)
            contrib = jnp.dot(lhs, w_tap, preferred_element_type=jnp.float32)
            y = contrib if y is None else y + contrib
        b_i = w_ref[off_bl + i:off_bl + i + 1, :]          # (1, 128)
        # TODO(synk): nn.Dropout(p=0.5) is treated as eval-mode identity.
        f = jnp.maximum(y + b_i, 0.0) + f                  # ReLU + residual

    # All conv_outs + the f passthrough in one lane-dense matmul / store.
    wout = w_ref[off_wout:off_wout + LW, :]                # (128, 128)
    bout = w_ref[off_bout:off_bout + 1, :]                 # (1, 128)
    out = jnp.dot(f, wout, preferred_element_type=jnp.float32) + bout
    out_ref[...] = out.reshape(BB, T, LW)


# ----------------------------- parameter init -------------------------------
def init_params(key):
    """Raw PyTorch-style Conv1d parameters (weight (O, I, k), bias (O,))."""
    keys = iter(jax.random.split(key, 64))

    def u(shape, fan_in):
        bound = 1.0 / math.sqrt(fan_in)
        return jax.random.uniform(next(keys), shape, jnp.float32, -bound, bound)

    F, D, L = NUM_F_MAPS, DIM, NUM_LAYERS
    p = dict(conv_in_w=u((F, D, 1), D), conv_in_b=u((F,), D), layers=[], outs=[])
    for _ in range(L):
        p["layers"].append(dict(
            d1_w=u((F, F, 3), 3 * F), d1_b=u((F,), 3 * F),
            d2_w=u((F, F, 3), 3 * F), d2_b=u((F,), 3 * F),
            fus_w=u((F, 2 * F, 1), 2 * F), fus_b=u((F,), 2 * F)))
    for c in NUM_CLASSES:
        p["outs"].append(dict(w=u((c, F, 1), F), b=u((c,), F)))
    return p


def fuse_params(raw, *, window_dim=0, offline_mode=False, lanes=LANES):
    """Precompute (once) the algebraically fused, lane-dense weight slab."""
    F, L = NUM_F_MAPS, len(raw["layers"])

    pad_l = pad_r = 0
    for i in range(L):
        for d in (2 ** (L - 1 - i), 2 ** i):
            a, b = _conv_pads(d, window_dim, offline_mode)
            pad_l, pad_r = max(pad_l, a), max(pad_r, b)

    rows = []                                             # slab row chunks

    def add(mat):                                         # -> row offset
        mat = jnp.asarray(mat, jnp.float32)
        r, c = mat.shape
        buf = jnp.zeros((r, lanes), jnp.float32).at[:, :c].set(mat)
        off = sum(int(m.shape[0]) for m in rows)
        rows.append(buf)
        return off

    off_wc = add(raw["conv_in_w"][:, :, 0].T)             # (D, F) -> (D,128)
    off_bc = add(raw["conv_in_b"][None, :])               # (1, F)

    layer_taps, layer_bias = [], []
    for i, lp in enumerate(raw["layers"]):
        d1, d2 = 2 ** (L - 1 - i), 2 ** i
        wf_T = lp["fus_w"][:, :, 0].T                     # (2F, F)
        wf_top, wf_bot = wf_T[:F], wf_T[F:]
        acc = {}                                          # tap start -> (F,F)
        for d, w3, half in ((d1, lp["d1_w"], wf_top), (d2, lp["d2_w"], wf_bot)):
            pl_, _ = _conv_pads(d, window_dim, offline_mode)
            for k in range(3):
                start = pad_l - pl_ + k * d               # row in padded buf
                a = w3[:, :, k].T @ half                  # fold fusion conv
                acc[start] = acc[start] + a if start in acc else a
        taps = []
        for start in sorted(acc):
            w_pad = jnp.zeros((lanes, F), jnp.float32).at[:F, :].set(acc[start])
            taps.append((start, add(w_pad)))              # (128,128) in slab
        layer_taps.append(tuple(taps))
        layer_bias.append(lp["d1_b"] @ wf_top + lp["d2_b"] @ wf_bot + lp["fus_b"])

    off_bl = add(jnp.stack(layer_bias))                   # (L, F)

    # Output slab columns: [head_0 | head_1 | ... | I_F | zero pad] -> 128.
    cols_w = [op["w"][:, :, 0].T for op in raw["outs"]]
    cols_w.append(jnp.eye(F, dtype=jnp.float32))
    cols_b = [op["b"] for op in raw["outs"]]
    cols_b.append(jnp.zeros((F,), jnp.float32))
    wout_small = jnp.concatenate(cols_w, axis=1)          # (F, used)
    bout_small = jnp.concatenate(cols_b)[None, :]         # (1, used)
    used = int(wout_small.shape[1])
    assert used <= lanes
    off_wout = add(jnp.zeros((lanes, used), jnp.float32).at[:F, :].set(wout_small))
    off_bout = add(bout_small)

    slab = jnp.concatenate(rows, axis=0)
    rpad = (-slab.shape[0]) % 8                           # sublane-align rows
    if rpad:
        slab = jnp.concatenate([slab, jnp.zeros((rpad, lanes), jnp.float32)], 0)

    return dict(slab=slab, pad_l=pad_l, pad_r=pad_r, lanes=lanes,
                off_wc=off_wc, off_bc=off_bc, off_bl=off_bl,
                off_wout=off_wout, off_bout=off_bout,
                layer_taps=tuple(layer_taps),
                num_classes=tuple(op["w"].shape[0] for op in raw["outs"]))


# -------------------------------- forward -----------------------------------
def mt_prediction_generation_forward(x, fused, *, batch_block=BATCH_BLOCK):
    """x: (B, dim, T) float32  ->  ([ (B, C_s, T) per head ], f (B, F, T))."""
    B, D, T = x.shape
    F = NUM_F_MAPS
    LW = fused["lanes"]
    pad_l, pad_r = fused["pad_l"], fused["pad_r"]
    PT = pad_l + T + pad_r

    BB = min(B, batch_block)                      # whole batch when B is tiny
    grid_b = -(-B // BB)                          # ceil(B / BB)
    B_pad = grid_b * BB

    x_tm = jnp.transpose(x, (0, 2, 1)).astype(jnp.float32)      # (B, T, dim)
    if B_pad > B:
        x_tm = jnp.concatenate(
            [x_tm, jnp.zeros((B_pad - B, T, D), jnp.float32)], axis=0)

    kernel = functools.partial(
        _pg_fused_kernel, bb=BB, seq_len=T, pad_l=pad_l, pad_r=pad_r,
        dim=D, lanes=LW, off_wc=fused["off_wc"], off_bc=fused["off_bc"],
        off_bl=fused["off_bl"], off_wout=fused["off_wout"],
        off_bout=fused["off_bout"], layer_taps=fused["layer_taps"])

    slab = fused["slab"]
    out = pl.pallas_call(
        kernel,
        out_shape=jax.ShapeDtypeStruct((B_pad, T, LW), jnp.float32),
        grid=(grid_b,),
        in_specs=[
            pl.BlockSpec((BB, T, D), lambda b: (b, 0, 0)),       # input block
            pl.BlockSpec(slab.shape, lambda b: (0, 0)),          # weight slab
        ],
        out_specs=pl.BlockSpec((BB, T, LW), lambda b: (b, 0, 0)),
        scratch_shapes=[pltpu.VMEM((BB, PT, LW), jnp.float32)],
        compiler_params=pltpu.CompilerParams(
            dimension_semantics=("parallel",)),
    )(x_tm, slab)

    out = out[:B]
    outs, off = [], 0
    for c in fused["num_classes"]:
        outs.append(jnp.transpose(out[:, :, off:off + c], (0, 2, 1)))
        off += c
    f = jnp.transpose(out[:, :, off:off + F], (0, 2, 1))
    return outs, f


# ----------------------- pure-JAX reference (PyTorch math) -------------------
def ref_forward(x, raw, *, window_dim=0, offline_mode=False):
    hp = "highest"

    def conv1x1(z, w, b):
        return (jnp.einsum("bct,oc->bot", z, w[:, :, 0], precision=hp)
                + b[None, :, None])

    def dilated(z, w, b, d):
        pl_, pr_ = _conv_pads(d, window_dim, offline_mode)
        zp = jnp.pad(z, ((0, 0), (0, 0), (pl_, pr_)))
        T = z.shape[2]
        out = b[None, :, None]
        for k in range(3):
            out = out + jnp.einsum("bct,oc->bot",
                                   zp[:, :, k * d:k * d + T], w[:, :, k],
                                   precision=hp)
        return out

    L = len(raw["layers"])
    f = conv1x1(x, raw["conv_in_w"], raw["conv_in_b"])
    for i, lp in enumerate(raw["layers"]):
        d1, d2 = 2 ** (L - 1 - i), 2 ** i
        f_in = f
        cat = jnp.concatenate([dilated(f, lp["d1_w"], lp["d1_b"], d1),
                               dilated(f, lp["d2_w"], lp["d2_b"], d2)], axis=1)
        f = jax.nn.relu(conv1x1(cat, lp["fus_w"], lp["fus_b"])) + f_in
    outs = [conv1x1(f, op["w"], op["b"]) for op in raw["outs"]]
    return outs, f


# ---------------------------------- main -------------------------------------
if __name__ == "__main__":
    key = jax.random.PRNGKey(0)
    pkey, xkey = jax.random.split(key)

    raw = init_params(pkey)
    fused = fuse_params(raw, window_dim=WINDOW_DIM, offline_mode=OFFLINE_MODE)

    B, T = 2, 48
    x = jax.random.normal(xkey, (B, DIM, T), jnp.float32)

    outs, f = mt_prediction_generation_forward(x, fused)
    outs, f = jax.block_until_ready((outs, f))

    # correctness vs. the pure-JAX reference of the PyTorch module
    ref_outs, ref_f = ref_forward(x, raw, window_dim=WINDOW_DIM,
                                  offline_mode=OFFLINE_MODE)
    for o, r, c in zip(outs, ref_outs, NUM_CLASSES):
        assert o.shape == (B, c, T), o.shape
        assert bool(jnp.all(jnp.isfinite(o)))
        assert float(jnp.max(jnp.abs(o - r))) < 2e-3
    assert f.shape == (B, NUM_F_MAPS, T), f.shape
    assert float(jnp.max(jnp.abs(f - ref_f))) < 2e-3

    print("KERNEL_OK")
</pallas_src>

<mosaic_0001>
module attributes {stable_mosaic.version = 11 : i64} {
  func.func @_pg_fused_kernel(%arg0: i32, %arg1: memref<2x48x4xf32, #tpu.memory_space<vmem>>, %arg2: memref<2448x128xf32, #tpu.memory_space<vmem>>, %arg3: memref<2x48x128xf32, #tpu.memory_space<vmem>>, %arg4: memref<2x64x128xf32, #tpu.memory_space<vmem>>) attributes {dimension_semantics = [#tpu.dimension_semantics<parallel>], iteration_bounds = array<i64: 1>, scalar_prefetch = 0 : i64, scratch_operands = 1 : i64, tpu.core_type = #tpu.core_type<tc>, window_params = [{transform_indices = @transform_0, window_bounds = array<i64: 2, 48, 4>}, {pipeline_mode = #tpu.pipeline_mode<synchronous>, transform_indices = @transform_1, window_bounds = array<i64: 2448, 128>}, {transform_indices = @transform_2, window_bounds = array<i64: 2, 48, 128>}]} {
    %cst = arith.constant 0.000000e+00 : f32
    %0 = vector.broadcast %cst : f32 to vector<2x16x128xf32>
    %c0 = arith.constant 0 : index
    %c0_0 = arith.constant 0 : index
    %c0_1 = arith.constant 0 : index
    %1 = vector.load %arg4[%c0, %c0_0, %c0_1] : memref<2x64x128xf32, #tpu.memory_space<vmem>>, vector<2x16x128xf32>
    tpu.vector_store %arg4[%c0, %c0_0, %c0_1], %0 {strides = array<i32>} : memref<2x64x128xf32, #tpu.memory_space<vmem>>, vector<2x16x128xf32>,
    %c0_2 = arith.constant 0 : index
    %c0_3 = arith.constant 0 : index
    %2 = vector.load %arg2[%c0_2, %c0_3] : memref<2448x128xf32, #tpu.memory_space<vmem>>, vector<4x128xf32>
    %c4 = arith.constant 4 : index
    %c0_4 = arith.constant 0 : index
    %3 = vector.load %arg2[%c4, %c0_4] : memref<2448x128xf32, #tpu.memory_space<vmem>>, vector<1x128xf32>
    %c0_5 = arith.constant 0 : index
    %c0_6 = arith.constant 0 : index
    %c0_7 = arith.constant 0 : index
    %4 = vector.load %arg1[%c0_5, %c0_6, %c0_7] : memref<2x48x4xf32, #tpu.memory_space<vmem>>, vector<2x48x4xf32>
    %5 = vector.shape_cast %4 : vector<2x48x4xf32> to vector<96x4xf32>
    %cst_8 = arith.constant dense<0.000000e+00> : vector<96x128xf32>
    %6 = tpu.matmul %5, %2, %cst_8 {dimension_numbers = #tpu.dot_dimension_numbers<[1], [0], [0], [1], [0, 0, 1, 1], [], []>} : vector<96x4xf32>, vector<4x128xf32>, vector<96x128xf32> -> vector<96x128xf32>
    %7 = vector.broadcast %3 : vector<1x128xf32> to vector<96x128xf32>
    %8 = arith.addf %6, %7 : vector<96x128xf32>
    %9 = vector.shape_cast %8 : vector<96x128xf32> to vector<2x48x128xf32>
    %c0_9 = arith.constant 0 : index
    %c16 = arith.constant 16 : index
    %c0_10 = arith.constant 0 : index
    %10 = vector.load %arg4[%c0_9, %c16, %c0_10] : memref<2x64x128xf32, #tpu.memory_space<vmem>>, vector<2x48x128xf32>
    tpu.vector_store %arg4[%c0_9, %c16, %c0_10], %9 {strides = array<i32>} : memref<2x64x128xf32, #tpu.memory_space<vmem>>, vector<2x48x128xf32>,
    %c5 = arith.constant 5 : index
    %c0_11 = arith.constant 0 : index
    %11 = vector.load %arg2[%c5, %c0_11] : memref<2448x128xf32, #tpu.memory_space<vmem>>, vector<128x128xf32>
    %c0_12 = arith.constant 0 : index
    %c0_13 = arith.constant 0 : index
    %c0_14 = arith.constant 0 : index
    %12 = vector.load %arg4[%c0_12, %c0_13, %c0_14] : memref<2x64x128xf32, #tpu.memory_space<vmem>>, vector<2x48x128xf32>
    %13 = vector.shape_cast %12 : vector<2x48x128xf32> to vector<96x128xf32>
    %cst_15 = arith.constant dense<0.000000e+00> : vector<96x128xf32>
    %14 = tpu.matmul %13, %11, %cst_15 {dimension_numbers = #tpu.dot_dimension_numbers<[1], [0], [0], [1], [0, 0, 1, 1], [], []>} : vector<96x128xf32>, vector<128x128xf32>, vector<96x128xf32> -> vector<96x128xf32>
    %c133 = arith.constant 133 : index
    %c0_16 = arith.constant 0 : index
    %15 = vector.load %arg2[%c133, %c0_16] : memref<2448x128xf32, #tpu.memory_space<vmem>>, vector<128x128xf32>
    %c0_17 = arith.constant 0 : index
    %c8 = arith.constant 8 : index
    %c0_18 = arith.constant 0 : index
    %16 = vector.load %arg4[%c0_17, %c8, %c0_18] : memref<2x64x128xf32, #tpu.memory_space<vmem>>, vector<2x48x128xf32>
    %17 = vector.shape_cast %16 : vector<2x48x128xf32> to vector<96x128xf32>
    %cst_19 = arith.constant dense<0.000000e+00> : vector<96x128xf32>
    %18 = tpu.matmul %17, %15, %cst_19 {dimension_numbers = #tpu.dot_dimension_numbers<[1], [0], [0], [1], [0, 0, 1, 1], [], []>} : vector<96x128xf32>, vector<128x128xf32>, vector<96x128xf32> -> vector<96x128xf32>
    %19 = arith.addf %14, %18 : vector<96x128xf32>
    %c261 = arith.constant 261 : index
    %c0_20 = arith.constant 0 : index
    %20 = vector.load %arg2[%c261, %c0_20] : memref<2448x128xf32, #tpu.memory_space<vmem>>, vector<128x128xf32>
    %c0_21 = arith.constant 0 : index
    %c14 = arith.constant 14 : index
    %c0_22 = arith.constant 0 : index
    %21 = vector.load %arg4[%c0_21, %c14, %c0_22] : memref<2x64x128xf32, #tpu.memory_space<vmem>>, vector<2x48x128xf32>
    %22 = vector.shape_cast %21 : vector<2x48x128xf32> to vector<96x128xf32>
    %cst_23 = arith.constant dense<0.000000e+00> : vector<96x128xf32>
    %23 = tpu.matmul %22, %20, %cst_23 {dimension_numbers = #tpu.dot_dimension_numbers<[1], [0], [0], [1], [0, 0, 1, 1], [], []>} : vector<96x128xf32>, vector<128x128xf32>, vector<96x128xf32> -> vector<96x128xf32>
    %24 = arith.addf %19, %23 : vector<96x128xf32>
    %c389 = arith.constant 389 : index
    %c0_24 = arith.constant 0 : index
    %25 = vector.load %arg2[%c389, %c0_24] : memref<2448x128xf32, #tpu.memory_space<vmem>>, vector<128x128xf32>
    %c0_25 = arith.constant 0 : index
    %c15 = arith.constant 15 : index
    %c0_26 = arith.constant 0 : index
    %26 = vector.load %arg4[%c0_25, %c15, %c0_26] : memref<2x64x128xf32, #tpu.memory_space<vmem>>, vector<2x48x128xf32>
    %27 = vector.shape_cast %26 : vector<2x48x128xf32> to vector<96x128xf32>
    %cst_27 = arith.constant dense<0.000000e+00> : vector<96x128xf32>
    %28 = tpu.matmul %27, %25, %cst_27 {dimension_numbers = #tpu.dot_dimension_numbers<[1], [0], [0], [1], [0, 0, 1, 1], [], []>} : vector<96x128xf32>, vector<128x128xf32>, vector<96x128xf32> -> vector<96x128xf32>
    %29 = arith.addf %24, %28 : vector<96x128xf32>
    %c517 = arith.constant 517 : index
    %c0_28 = arith.constant 0 : index
    %30 = vector.load %arg2[%c517, %c0_28] : memref<2448x128xf32, #tpu.memory_space<vmem>>, vector<128x128xf32>
    %cst_29 = arith.constant dense<0.000000e+00> : vector<96x128xf32>
    %31 = tpu.matmul %8, %30, %cst_29 {dimension_numbers = #tpu.dot_dimension_numbers<[1], [0], [0], [1], [0, 0, 1, 1], [], []>} : vector<96x128xf32>, vector<128x128xf32>, vector<96x128xf32> -> vector<96x128xf32>
    %32 = arith.addf %29, %31 : vector<96x128xf32>
    %c2309 = arith.constant 2309 : index
    %c0_30 = arith.constant 0 : index
    %33 = vector.load %arg2[%c2309, %c0_30] : memref<2448x128xf32, #tpu.memory_space<vmem>>, vector<1x128xf32>
    %34 = vector.broadcast %33 : vector<1x128xf32> to vector<96x128xf32>
    %35 = arith.addf %32, %34 : vector<96x128xf32>
    %cst_31 = arith.constant 0.000000e+00 : f32
    %36 = vector.broadcast %cst_31 : f32 to vector<96x128xf32>
    %37 = arith.maximumf %35, %36 : vector<96x128xf32>
    %38 = arith.addf %37, %8 : vector<96x128xf32>
    %39 = vector.shape_cast %38 : vector<96x128xf32> to vector<2x48x128xf32>
    %c0_32 = arith.constant 0 : index
    %c16_33 = arith.constant 16 : index
    %c0_34 = arith.constant 0 : index
    %40 = vector.load %arg4[%c0_32, %c16_33, %c0_34] : memref<2x64x128xf32, #tpu.memory_space<vmem>>, vector<2x48x128xf32>
    tpu.vector_store %arg4[%c0_32, %c16_33, %c0_34], %39 {strides = array<i32>} : memref<2x64x128xf32, #tpu.memory_space<vmem>>, vector<2x48x128xf32>,
    %c645 = arith.constant 645 : index
    %c0_35 = arith.constant 0 : index
    %41 = vector.load %arg2[%c645, %c0_35] : memref<2448x128xf32, #tpu.memory_space<vmem>>, vector<128x128xf32>
    %c0_36 = arith.constant 0 : index
    %c8_37 = arith.constant 8 : index
    %c0_38 = arith.constant 0 : index
    %42 = vector.load %arg4[%c0_36, %c8_37, %c0_38] : memref<2x64x128xf32, #tpu.memory_space<vmem>>, vector<2x48x128xf32>
    %43 = vector.shape_cast %42 : vector<2x48x128xf32> to vector<96x128xf32>
    %cst_39 = arith.constant dense<0.000000e+00> : vector<96x128xf32>
    %44 = tpu.matmul %43, %41, %cst_39 {dimension_numbers = #tpu.dot_dimension_numbers<[1], [0], [0], [1], [0, 0, 1, 1], [], []>} : vector<96x128xf32>, vector<128x128xf32>, vector<96x128xf32> -> vector<96x128xf32>
    %c773 = arith.constant 773 : index
    %c0_40 = arith.constant 0 : index
    %45 = vector.load %arg2[%c773, %c0_40] : memref<2448x128xf32, #tpu.memory_space<vmem>>, vector<128x128xf32>
    %c0_41 = arith.constant 0 : index
    %c12 = arith.constant 12 : index
    %c0_42 = arith.constant 0 : index
    %46 = vector.load %arg4[%c0_41, %c12, %c0_42] : memref<2x64x128xf32, #tpu.memory_space<vmem>>, vector<2x48x128xf32>
    %47 = vector.shape_cast %46 : vector<2x48x128xf32> to vector<96x128xf32>
    %cst_43 = arith.constant dense<0.000000e+00> : vector<96x128xf32>
    %48 = tpu.matmul %47, %45, %cst_43 {dimension_numbers = #tpu.dot_dimension_numbers<[1], [0], [0], [1], [0, 0, 1, 1], [], []>} : vector<96x128xf32>, vector<128x128xf32>, vector<96x128xf32> -> vector<96x128xf32>
    %49 = arith.addf %44, %48 : vector<96x128xf32>
    %c901 = arith.constant 901 : index
    %c0_44 = arith.constant 0 : index
    %50 = vector.load %arg2[%c901, %c0_44] : memref<2448x128xf32, #tpu.memory_space<vmem>>, vector<128x128xf32>
    %c0_45 = arith.constant 0 : index
    %c14_46 = arith.constant 14 : index
    %c0_47 = arith.constant 0 : index
    %51 = vector.load %arg4[%c0_45, %c14_46, %c0_47] : memref<2x64x128xf32, #tpu.memory_space<vmem>>, vector<2x48x128xf32>
    %52 = vector.shape_cast %51 : vector<2x48x128xf32> to vector<96x128xf32>
    %cst_48 = arith.constant dense<0.000000e+00> : vector<96x128xf32>
    %53 = tpu.matmul %52, %50, %cst_48 {dimension_numbers = #tpu.dot_dimension_numbers<[1], [0], [0], [1], [0, 0, 1, 1], [], []>} : vector<96x128xf32>, vector<128x128xf32>, vector<96x128xf32> -> vector<96x128xf32>
    %54 = arith.addf %49, %53 : vector<96x128xf32>
    %c1029 = arith.constant 1029 : index
    %c0_49 = arith.constant 0 : index
    %55 = vector.load %arg2[%c1029, %c0_49] : memref<2448x128xf32, #tpu.memory_space<vmem>>, vector<128x128xf32>
    %cst_50 = arith.constant dense<0.000000e+00> : vector<96x128xf32>
    %56 = tpu.matmul %38, %55, %cst_50 {dimension_numbers = #tpu.dot_dimension_numbers<[1], [0], [0], [1], [0, 0, 1, 1], [], []>} : vector<96x128xf32>, vector<128x128xf32>, vector<96x128xf32> -> vector<96x128xf32>
    %57 = arith.addf %54, %56 : vector<96x128xf32>
    %c2310 = arith.constant 2310 : index
    %c0_51 = arith.constant 0 : index
    %58 = vector.load %arg2[%c2310, %c0_51] : memref<2448x128xf32, #tpu.memory_space<vmem>>, vector<1x128xf32>
    %59 = vector.broadcast %58 : vector<1x128xf32> to vector<96x128xf32>
    %60 = arith.addf %57, %59 : vector<96x128xf32>
    %cst_52 = arith.constant 0.000000e+00 : f32
    %61 = vector.broadcast %cst_52 : f32 to vector<96x128xf32>
    %62 = arith.maximumf %60, %61 : vector<96x128xf32>
    %63 = arith.addf %62, %38 : vector<96x128xf32>
    %64 = vector.shape_cast %63 : vector<96x128xf32> to vector<2x48x128xf32>
    %c0_53 = arith.constant 0 : index
    %c16_54 = arith.constant 16 : index
    %c0_55 = arith.constant 0 : index
    %65 = vector.load %arg4[%c0_53, %c16_54, %c0_55] : memref<2x64x128xf32, #tpu.memory_space<vmem>>, vector<2x48x128xf32>
    tpu.vector_store %arg4[%c0_53, %c16_54, %c0_55], %64 {strides = array<i32>} : memref<2x64x128xf32, #tpu.memory_space<vmem>>, vector<2x48x128xf32>,
    %c1157 = arith.constant 1157 : index
    %c0_56 = arith.constant 0 : index
    %66 = vector.load %arg2[%c1157, %c0_56] : memref<2448x128xf32, #tpu.memory_space<vmem>>, vector<128x128xf32>
    %c0_57 = arith.constant 0 : index
    %c8_58 = arith.constant 8 : index
    %c0_59 = arith.constant 0 : index
    %67 = vector.load %arg4[%c0_57, %c8_58, %c0_59] : memref<2x64x128xf32, #tpu.memory_space<vmem>>, vector<2x48x128xf32>
    %68 = vector.shape_cast %67 : vector<2x48x128xf32> to vector<96x128xf32>
    %cst_60 = arith.constant dense<0.000000e+00> : vector<96x128xf32>
    %69 = tpu.matmul %68, %66, %cst_60 {dimension_numbers = #tpu.dot_dimension_numbers<[1], [0], [0], [1], [0, 0, 1, 1], [], []>} : vector<96x128xf32>, vector<128x128xf32>, vector<96x128xf32> -> vector<96x128xf32>
    %c1285 = arith.constant 1285 : index
    %c0_61 = arith.constant 0 : index
    %70 = vector.load %arg2[%c1285, %c0_61] : memref<2448x128xf32, #tpu.memory_space<vmem>>, vector<128x128xf32>
    %c0_62 = arith.constant 0 : index
    %c12_63 = arith.constant 12 : index
    %c0_64 = arith.constant 0 : index
    %71 = vector.load %arg4[%c0_62, %c12_63, %c0_64] : memref<2x64x128xf32, #tpu.memory_space<vmem>>, vector<2x48x128xf32>
    %72 = vector.shape_cast %71 : vector<2x48x128xf32> to vector<96x128xf32>
    %cst_65 = arith.constant dense<0.000000e+00> : vector<96x128xf32>
    %73 = tpu.matmul %72, %70, %cst_65 {dimension_numbers = #tpu.dot_dimension_numbers<[1], [0], [0], [1], [0, 0, 1, 1], [], []>} : vector<96x128xf32>, vector<128x128xf32>, vector<96x128xf32> -> vector<96x128xf32>
    %74 = arith.addf %69, %73 : vector<96x128xf32>
    %c1413 = arith.constant 1413 : index
    %c0_66 = arith.constant 0 : index
    %75 = vector.load %arg2[%c1413, %c0_66] : memref<2448x128xf32, #tpu.memory_space<vmem>>, vector<128x128xf32>
    %c0_67 = arith.constant 0 : index
    %c14_68 = arith.constant 14 : index
    %c0_69 = arith.constant 0 : index
    %76 = vector.load %arg4[%c0_67, %c14_68, %c0_69] : memref<2x64x128xf32, #tpu.memory_space<vmem>>, vector<2x48x128xf32>
    %77 = vector.shape_cast %76 : vector<2x48x128xf32> to vector<96x128xf32>
    %cst_70 = arith.constant dense<0.000000e+00> : vector<96x128xf32>
    %78 = tpu.matmul %77, %75, %cst_70 {dimension_numbers = #tpu.dot_dimension_numbers<[1], [0], [0], [1], [0, 0, 1, 1], [], []>} : vector<96x128xf32>, vector<128x128xf32>, vector<96x128xf32> -> vector<96x128xf32>
    %79 = arith.addf %74, %78 : vector<96x128xf32>
    %c1541 = arith.constant 1541 : index
    %c0_71 = arith.constant 0 : index
    %80 = vector.load %arg2[%c1541, %c0_71] : memref<2448x128xf32, #tpu.memory_space<vmem>>, vector<128x128xf32>
    %cst_72 = arith.constant dense<0.000000e+00> : vector<96x128xf32>
    %81 = tpu.matmul %63, %80, %cst_72 {dimension_numbers = #tpu.dot_dimension_numbers<[1], [0], [0], [1], [0, 0, 1, 1], [], []>} : vector<96x128xf32>, vector<128x128xf32>, vector<96x128xf32> -> vector<96x128xf32>
    %82 = arith.addf %79, %81 : vector<96x128xf32>
    %c2311 = arith.constant 2311 : index
    %c0_73 = arith.constant 0 : index
    %83 = vector.load %arg2[%c2311, %c0_73] : memref<2448x128xf32, #tpu.memory_space<vmem>>, vector<1x128xf32>
    %84 = vector.broadcast %83 : vector<1x128xf32> to vector<96x128xf32>
    %85 = arith.addf %82, %84 : vector<96x128xf32>
    %cst_74 = arith.constant 0.000000e+00 : f32
    %86 = vector.broadcast %cst_74 : f32 to vector<96x128xf32>
    %87 = arith.maximumf %85, %86 : vector<96x128xf32>
    %88 = arith.addf %87, %63 : vector<96x128xf32>
    %89 = vector.shape_cast %88 : vector<96x128xf32> to vector<2x48x128xf32>
    %c0_75 = arith.constant 0 : index
    %c16_76 = arith.constant 16 : index
    %c0_77 = arith.constant 0 : index
    %90 = vector.load %arg4[%c0_75, %c16_76, %c0_77] : memref<2x64x128xf32, #tpu.memory_space<vmem>>, vector<2x48x128xf32>
    tpu.vector_store %arg4[%c0_75, %c16_76, %c0_77], %89 {strides = array<i32>} : memref<2x64x128xf32, #tpu.memory_space<vmem>>, vector<2x48x128xf32>,
    %c1669 = arith.constant 1669 : index
    %c0_78 = arith.constant 0 : index
    %91 = vector.load %arg2[%c1669, %c0_78] : memref<2448x128xf32, #tpu.memory_space<vmem>>, vector<128x128xf32>
    %c0_79 = arith.constant 0 : index
    %c0_80 = arith.constant 0 : index
    %c0_81 = arith.constant 0 : index
    %92 = vector.load %arg4[%c0_79, %c0_80, %c0_81] : memref<2x64x128xf32, #tpu.memory_space<vmem>>, vector<2x48x128xf32>
    %93 = vector.shape_cast %92 : vector<2x48x128xf32> to vector<96x128xf32>
    %cst_82 = arith.constant dense<0.000000e+00> : vector<96x128xf32>
    %94 = tpu.matmul %93, %91, %cst_82 {dimension_numbers = #tpu.dot_dimension_numbers<[1], [0], [0], [1], [0, 0, 1, 1], [], []>} : vector<96x128xf32>, vector<128x128xf32>, vector<96x128xf32> -> vector<96x128xf32>
    %c1797 = arith.constant 1797 : index
    %c0_83 = arith.constant 0 : index
    %95 = vector.load %arg2[%c1797, %c0_83] : memref<2448x128xf32, #tpu.memory_space<vmem>>, vector<128x128xf32>
    %c0_84 = arith.constant 0 : index
    %c8_85 = arith.constant 8 : index
    %c0_86 = arith.constant 0 : index
    %96 = vector.load %arg4[%c0_84, %c8_85, %c0_86] : memref<2x64x128xf32, #tpu.memory_space<vmem>>, vector<2x48x128xf32>
    %97 = vector.shape_cast %96 : vector<2x48x128xf32> to vector<96x128xf32>
    %cst_87 = arith.constant dense<0.000000e+00> : vector<96x128xf32>
    %98 = tpu.matmul %97, %95, %cst_87 {dimension_numbers = #tpu.dot_dimension_numbers<[1], [0], [0], [1], [0, 0, 1, 1], [], []>} : vector<96x128xf32>, vector<128x128xf32>, vector<96x128xf32> -> vector<96x128xf32>
    %99 = arith.addf %94, %98 : vector<96x128xf32>
    %c1925 = arith.constant 1925 : index
    %c0_88 = arith.constant 0 : index
    %100 = vector.load %arg2[%c1925, %c0_88] : memref<2448x128xf32, #tpu.memory_space<vmem>>, vector<128x128xf32>
    %c0_89 = arith.constant 0 : index
    %c14_90 = arith.constant 14 : index
    %c0_91 = arith.constant 0 : index
    %101 = vector.load %arg4[%c0_89, %c14_90, %c0_91] : memref<2x64x128xf32, #tpu.memory_space<vmem>>, vector<2x48x128xf32>
    %102 = vector.shape_cast %101 : vector<2x48x128xf32> to vector<96x128xf32>
    %cst_92 = arith.constant dense<0.000000e+00> : vector<96x128xf32>
    %103 = tpu.matmul %102, %100, %cst_92 {dimension_numbers = #tpu.dot_dimension_numbers<[1], [0], [0], [1], [0, 0, 1, 1], [], []>} : vector<96x128xf32>, vector<128x128xf32>, vector<96x128xf32> -> vector<96x128xf32>
    %104 = arith.addf %99, %103 : vector<96x128xf32>
    %c2053 = arith.constant 2053 : index
    %c0_93 = arith.constant 0 : index
    %105 = vector.load %arg2[%c2053, %c0_93] : memref<2448x128xf32, #tpu.memory_space<vmem>>, vector<128x128xf32>
    %c0_94 = arith.constant 0 : index
    %c15_95 = arith.constant 15 : index
    %c0_96 = arith.constant 0 : index
    %106 = vector.load %arg4[%c0_94, %c15_95, %c0_96] : memref<2x64x128xf32, #tpu.memory_space<vmem>>, vector<2x48x128xf32>
    %107 = vector.shape_cast %106 : vector<2x48x128xf32> to vector<96x128xf32>
    %cst_97 = arith.constant dense<0.000000e+00> : vector<96x128xf32>
    %108 = tpu.matmul %107, %105, %cst_97 {dimension_numbers = #tpu.dot_dimension_numbers<[1], [0], [0], [1], [0, 0, 1, 1], [], []>} : vector<96x128xf32>, vector<128x128xf32>, vector<96x128xf32> -> vector<96x128xf32>
    %109 = arith.addf %104, %108 : vector<96x128xf32>
    %c2181 = arith.constant 2181 : index
    %c0_98 = arith.constant 0 : index
    %110 = vector.load %arg2[%c2181, %c0_98] : memref<2448x128xf32, #tpu.memory_space<vmem>>, vector<128x128xf32>
    %cst_99 = arith.constant dense<0.000000e+00> : vector<96x128xf32>
    %111 = tpu.matmul %88, %110, %cst_99 {dimension_numbers = #tpu.dot_dimension_numbers<[1], [0], [0], [1], [0, 0, 1, 1], [], []>} : vector<96x128xf32>, vector<128x128xf32>, vector<96x128xf32> -> vector<96x128xf32>
    %112 = arith.addf %109, %111 : vector<96x128xf32>
    %c2312 = arith.constant 2312 : index
    %c0_100 = arith.constant 0 : index
    %113 = vector.load %arg2[%c2312, %c0_100] : memref<2448x128xf32, #tpu.memory_space<vmem>>, vector<1x128xf32>
    %114 = vector.broadcast %113 : vector<1x128xf32> to vector<96x128xf32>
    %115 = arith.addf %112, %114 : vector<96x128xf32>
    %cst_101 = arith.constant 0.000000e+00 : f32
    %116 = vector.broadcast %cst_101 : f32 to vector<96x128xf32>
    %117 = arith.maximumf %115, %116 : vector<96x128xf32>
    %118 = arith.addf %117, %88 : vector<96x128xf32>
    %c2313 = arith.constant 2313 : index
    %c0_102 = arith.constant 0 : index
    %119 = vector.load %arg2[%c2313, %c0_102] : memref<2448x128xf32, #tpu.memory_space<vmem>>, vector<128x128xf32>
    %c2441 = arith.constant 2441 : index
    %c0_103 = arith.constant 0 : index
    %120 = vector.load %arg2[%c2441, %c0_103] : memref<2448x128xf32, #tpu.memory_space<vmem>>, vector<1x128xf32>
    %cst_104 = arith.constant dense<0.000000e+00> : vector<96x128xf32>
    %121 = tpu.matmul %118, %119, %cst_104 {dimension_numbers = #tpu.dot_dimension_numbers<[1], [0], [0], [1], [0, 0, 1, 1], [], []>} : vector<96x128xf32>, vector<128x128xf32>, vector<96x128xf32> -> vector<96x128xf32>
    %122 = vector.broadcast %120 : vector<1x128xf32> to vector<96x128xf32>
    %123 = arith.addf %121, %122 : vector<96x128xf32>
    %124 = vector.shape_cast %123 : vector<96x128xf32> to vector<2x48x128xf32>
    %c0_105 = arith.constant 0 : index
    %c0_106 = arith.constant 0 : index
    %c0_107 = arith.constant 0 : index
    %125 = vector.load %arg3[%c0_105, %c0_106, %c0_107] : memref<2x48x128xf32, #tpu.memory_space<vmem>>, vector<2x48x128xf32>
    tpu.vector_store %arg3[%c0_105, %c0_106, %c0_107], %124 {strides = array<i32>} : memref<2x48x128xf32, #tpu.memory_space<vmem>>, vector<2x48x128xf32>,
    return
  }
  func.func @transform_0(%arg0: i32) -> (i32, i32, i32) {
    %c0_i32 = arith.constant 0 : i32
    %c0_i32_0 = arith.constant 0 : i32
    %c0_i32_1 = arith.constant 0 : i32
    return %arg0, %c0_i32, %c0_i32_0 : i32, i32, i32
  }
  func.func @transform_1(%arg0: i32) -> (i32, i32) {
    %c0_i32 = arith.constant 0 : i32
    %c0_i32_0 = arith.constant 0 : i32
    %c0_i32_1 = arith.constant 0 : i32
    return %c0_i32, %c0_i32_0 : i32, i32
  }
  func.func @transform_2(%arg0: i32) -> (i32, i32, i32) {
    %c0_i32 = arith.constant 0 : i32
    %c0_i32_0 = arith.constant 0 : i32
    %c0_i32_1 = arith.constant 0 : i32
    return %arg0, %c0_i32, %c0_i32_0 : i32, i32, i32
  }
}

</mosaic_0001>

<llo_original>
// kernel: tpu_custom_call.1
$region0: #{tpu_custom_call.1}
  #allocation0 [shape = 'u32[]', space=smem, size = 0x4, offset = 0x4, fixed_abs, tag = 'smem constant byte address 0x4 - core index']
  #allocation1 [shape = 'u32[144,128]{1,0:T(1,128)}', space=vmem, size = 0x12000, scoped, tag = 'internal scratch']
  #allocation2 [shape = 'f32[2,64,128]{2,1,0:T(8,128)}', space=vmem, size = 0x10000, scoped, tag = 'scratch operand']
  %s0 = inlined_call_operand.vmem [shape: f32[2,48,4], index: 0, kind: input, shape index: {}]
  %s1 = inlined_call_operand.hbm [shape: f32[2448,128], index: 1, kind: input, shape index: {}]
  %s2 = inlined_call_operand.hbm [shape: f32[2,48,128], index: 2, kind: output, shape index: {}]
  %s3 = sld [smem:[#allocation0]]
  $region22: #{tpu_custom_call.1} parent=0
    _
  %s5 = ssub.s32 1, %s3
  %s6 = scalar_select 0, %s5, %s3
  $region1: #{tpu_custom_call.1} parent=0
    #allocation3 [shape = 'u8[1253376]{0}', space=vmem, size = 0x132000, scoped, tag = 'input window, operand 1, single buffered']
    #allocation4 [shape = 's32[1]{0}', space=sflag, size = 0x4, scoped, tag = 'scoped memory for tpu_custom_call.1']
    #allocation5 [shape = 's32[1]{0}', space=sflag, size = 0x4, scoped, tag = 'scoped memory for tpu_custom_call.1']
    #allocation6 [shape = 'u8[49152]{0}', space=vmem, size = 0xc000, scoped, tag = 'output window, operand 0, single buffered']
    %7 = vsyncpa [#allocation4], 0
    %8 = vsyncpa [#allocation5], 0
    // Predicated region
    $region2: #{tpu_custom_call.1} parent=1 // pred_check
      _
    $region3: #{tpu_custom_call.1} parent=1 // pred_check_branch
      %10 = sbr.rel (0) target = $region5
    $region4: #{tpu_custom_call.1} parent=1 // pred_region
      _
    $region5: #{tpu_custom_call.1} parent=1 // pred_fallthru
      _
    // Predicated region
    $region6: #{tpu_custom_call.1} parent=1 // pred_check
      _
    $region7: #{tpu_custom_call.1} parent=1 // pred_check_branch
      %12 = sbr.rel (0) target = $region9
    $region8: #{tpu_custom_call.1} parent=1 // pred_region
      %s14 = ssub.s32 39168, 39168
      %15 = vsyncadd [#allocation4], %s14
      %s16 = sshll.u32 [#allocation3], 4
      %s17 = int_to_ptr.vmem [resolvable:$true] %s16
      %22 = dma.hbm_to_vmem [thread:$0]  %s1, 39168, %s17, [#allocation4], 128, 128, 8
    $region9: #{tpu_custom_call.1} parent=1 // pred_fallthru
      _
    // Predicated region
    $region10: #{tpu_custom_call.1} parent=1 // pred_check
      _
    $region11: #{tpu_custom_call.1} parent=1 // pred_check_branch
      %24 = sbr.rel (0) target = $region13
    $region12: #{tpu_custom_call.1} parent=1 // pred_region
      %25 = dma.done [#allocation4], 39168
    $region13: #{tpu_custom_call.1} parent=1 // pred_fallthru
      _
    %26 = vst [vmem:[#allocation2] sm:$0xff] 0.0
    %27 = vst [vmem:[#allocation2 + $0x8] sm:$0xff] 0.0
    %28 = vst [vmem:[#allocation2 + $0x40] sm:$0xff] 0.0
    %29 = vst [vmem:[#allocation2 + $0x48] sm:$0xff] 0.0
    %v30 = vld [vmem:[#allocation3] sm:$0xf]
    %v31 = vld [vmem:[#allocation3 + $0x4] sm:$0x1]
    %v32 = vld [vmem:[%s0] sm:$0xff]
    %v33 = vld [vmem:[%s0 + $0x8] sm:$0xff]
    %v34 = vld [vmem:[%s0 + $0x10] sm:$0xff]
    %v35 = vld [vmem:[%s0 + $0x18] sm:$0xff]
    %v36 = vld [vmem:[%s0 + $0x20] sm:$0xff]
    %v37 = vld [vmem:[%s0 + $0x28] sm:$0xff]
    %v38 = vld [vmem:[%s0 + $0x30] sm:$0xff]
    %v39 = vld [vmem:[%s0 + $0x38] sm:$0xff]
    %v40 = vld [vmem:[%s0 + $0x40] sm:$0xff]
    %v41 = vld [vmem:[%s0 + $0x48] sm:$0xff]
    %v42 = vld [vmem:[%s0 + $0x50] sm:$0xff]
    %v43 = vld [vmem:[%s0 + $0x58] sm:$0xff]
    %v44 = vlaneseq
    %v45 = vshrl.u32 %v44, 7
    %v46 = vsub.s32 0, %v45
    %v47 = vrot.slane %v31, %v46
    %vm48 = vcmask 31744
    %v50 = vsel %vm48, %v32, 0
    %v53 = vsel %vm48, %v33, 0
    %v56 = vsel %vm48, %v34, 0
    %v59 = vsel %vm48, %v35, 0
    %v62 = vsel %vm48, %v36, 0
    %v65 = vsel %vm48, %v37, 0
    %v68 = vsel %vm48, %v38, 0
    %v71 = vsel %vm48, %v39, 0
    %v74 = vsel %vm48, %v40, 0
    %v77 = vsel %vm48, %v41, 0
    %v80 = vsel %vm48, %v42, 0
    %v83 = vsel %vm48, %v43, 0
    %vm85 = vcmask 1043456
    %v87 = vsel %vm85, %v30, 0
    %89 = vmatprep.subr.mxu0 0.0
    %90 = vmatpush1.msra.mxu0 0.0
    %91 = vmatprep.subr.mxu0 0.0
    %92 = vmatpush1.msra.mxu0 0.0
    %93 = vmatprep.subr.mxu0 0.0
    %94 = vmatpush1.msra.mxu0 0.0
    %95 = vmatprep.subr.mxu0 0.0
    %96 = vmatpush1.msra.mxu0 0.0
    %97 = vmatprep.subr.mxu0 0.0
    %98 = vmatpush1.msra.mxu0 0.0
    %99 = vmatprep.subr.mxu0 0.0
    %100 = vmatpush1.msra.mxu0 0.0
    %101 = vmatprep.subr.mxu0 0.0
    %102 = vmatpush1.msra.mxu0 0.0
    %103 = vmatprep.subr.mxu0 0.0
    %104 = vmatpush1.msra.mxu0 0.0
    %105 = vmatprep.subr.mxu0 0.0
    %106 = vmatpush1.msra.mxu0 0.0
    %107 = vmatprep.subr.mxu0 0.0
    %108 = vmatpush1.msra.mxu0 0.0
    %109 = vmatprep.subr.mxu0 0.0
    %110 = vmatpush1.msra.mxu0 0.0
    %111 = vmatprep.subr.mxu0 0.0
    %112 = vmatpush1.msra.mxu0 0.0
    %113 = vmatprep.subr.mxu0 0.0
    %114 = vmatpush1.msra.mxu0 0.0
    %115 = vmatprep.subr.mxu0 0.0
    %116 = vmatpush1.msra.mxu0 0.0
    %117 = vmatprep.subr.mxu0 0.0
    %118 = vmatpush1.msra.mxu0 0.0
    %119 = vmatprep.subr.mxu0 0.0
    %120 = vmatpush1.msra.mxu0 %v87
    %121 = vmatprep.subr.mxu0 0.0
    %122 = vmatpush2.msra.mxu0 0.0
    %123 = vmatprep.subr.mxu0 0.0
    %124 = vmatpush2.msra.mxu0 0.0
    %125 = vmatprep.subr.mxu0 0.0
    %126 = vmatpush2.msra.mxu0 0.0
    %127 = vmatprep.subr.mxu0 0.0
    %128 = vmatpush2.msra.mxu0 0.0
    %129 = vmatprep.subr.mxu0 0.0
    %130 = vmatpush2.msra.mxu0 0.0
    %131 = vmatprep.subr.mxu0 0.0
    %132 = vmatpush2.msra.mxu0 0.0
    %133 = vmatprep.subr.mxu0 0.0
    %134 = vmatpush2.msra.mxu0 0.0
    %135 = vmatprep.subr.mxu0 0.0
    %136 = vmatpush2.msra.mxu0 0.0
    %137 = vmatprep.subr.mxu0 0.0
    %138 = vmatpush2.msra.mxu0 0.0
    %139 = vmatprep.subr.mxu0 0.0
    %140 = vmatpush2.msra.mxu0 0.0
    %141 = vmatprep.subr.mxu0 0.0
    %142 = vmatpush2.msra.mxu0 0.0
    %143 = vmatprep.subr.mxu0 0.0
    %144 = vmatpush2.msra.mxu0 0.0
    %145 = vmatprep.subr.mxu0 0.0
    %146 = vmatpush2.msra.mxu0 0.0
    %147 = vmatprep.subr.mxu0 0.0
    %148 = vmatpush2.msra.mxu0 0.0
    %149 = vmatprep.subr.mxu0 0.0
    %150 = vmatpush2.msra.mxu0 0.0
    %151 = vmatprep.subr.mxu0 0.0
    %152 = vmatpush2.msra.mxu0 0.0
    %153 = vmatprep.mubr.f32.mxu0 0.0
    %154 = vmatmul.mubr.f32.gmra.mxu0 %v50
    %v155 = vpop.f32.mrf.mxu0
    %v156 = vadd.f32 %v47, %v155
    %v157 = vpop.f32.mrf.mxu0
    %158 = vmatprep.mubr.f32.mxu0 0.0
    %159 = vmatmul.mubr.f32.gmra.mxu0 %v53
    %v160 = vpop.f32.mrf.mxu0
    %v161 = vadd.f32 %v47, %v160
    %v162 = vpop.f32.mrf.mxu0
    %163 = vmatprep.mubr.f32.mxu0 0.0
    %164 = vmatmul.mubr.f32.gmra.mxu0 %v56
    %v165 = vpop.f32.mrf.mxu0
    %v166 = vadd.f32 %v47, %v165
    %v167 = vpop.f32.mrf.mxu0
    %168 = vmatprep.mubr.f32.mxu0 0.0
    %169 = vmatmul.mubr.f32.gmra.mxu0 %v59
    %v170 = vpop.f32.mrf.mxu0
    %v171 = vadd.f32 %v47, %v170
    %v172 = vpop.f32.mrf.mxu0
    %173 = vmatprep.mubr.f32.mxu0 0.0
    %174 = vmatmul.mubr.f32.gmra.mxu0 %v62
    %v175 = vpop.f32.mrf.mxu0
    %v176 = vadd.f32 %v47, %v175
    %v177 = vpop.f32.mrf.mxu0
    %178 = vmatprep.mubr.f32.mxu0 0.0
    %179 = vmatmul.mubr.f32.gmra.mxu0 %v65
    %v180 = vpop.f32.mrf.mxu0
    %v181 = vadd.f32 %v47, %v180
    %v182 = vpop.f32.mrf.mxu0
    %183 = vmatprep.mubr.f32.mxu0 0.0
    %184 = vmatmul.mubr.f32.gmra.mxu0 %v68
    %v185 = vpop.f32.mrf.mxu0
    %v186 = vadd.f32 %v47, %v185
    %v187 = vpop.f32.mrf.mxu0
    %188 = vmatprep.mubr.f32.mxu0 0.0
    %189 = vmatmul.mubr.f32.gmra.mxu0 %v71
    %v190 = vpop.f32.mrf.mxu0
    %v191 = vadd.f32 %v47, %v190
    %v192 = vpop.f32.mrf.mxu0
    %193 = vmatprep.mubr.f32.mxu0 0.0
    %194 = vmatmul.mubr.f32.gmra.mxu0 %v74
    %v195 = vpop.f32.mrf.mxu0
    %v196 = vadd.f32 %v47, %v195
    %v197 = vpop.f32.mrf.mxu0
    %198 = vmatprep.mubr.f32.mxu0 0.0
    %199 = vmatmul.mubr.f32.gmra.mxu0 %v77
    %v200 = vpop.f32.mrf.mxu0
    %v201 = vadd.f32 %v47, %v200
    %v202 = vpop.f32.mrf.mxu0
    %203 = vmatprep.mubr.f32.mxu0 0.0
    %204 = vmatmul.mubr.f32.gmra.mxu0 %v80
    %v205 = vpop.f32.mrf.mxu0
    %v206 = vadd.f32 %v47, %v205
    %v207 = vpop.f32.mrf.mxu0
    %208 = vmatprep.mubr.f32.mxu0 0.0
    %209 = vmatmul.mubr.f32.gmra.mxu0 %v83
    %v210 = vpop.f32.mrf.mxu0
    %v211 = vadd.f32 %v47, %v210
    %v212 = vpop.f32.mrf.mxu0
    %213 = vdwg.mxu0
    %214 = vst [vmem:[#allocation2 + $0x10] sm:$0xff] %v156
    %215 = vst [vmem:[#allocation2 + $0x18] sm:$0xff] %v161
    %216 = vst [vmem:[#allocation2 + $0x20] sm:$0xff] %v166
    %217 = vst [vmem:[#allocation2 + $0x28] sm:$0xff] %v171
    %218 = vst [vmem:[#allocation2 + $0x30] sm:$0xff] %v176
    %219 = vst [vmem:[#allocation2 + $0x38] sm:$0xff] %v181
    %220 = vst [vmem:[#allocation2 + $0x50] sm:$0xff] %v186
    %221 = vst [vmem:[#allocation2 + $0x58] sm:$0xff] %v191
    %222 = vst [vmem:[#allocation2 + $0x60] sm:$0xff] %v196
    %223 = vst [vmem:[#allocation2 + $0x68] sm:$0xff] %v201
    %224 = vst [vmem:[#allocation2 + $0x70] sm:$0xff] %v206
    %225 = vst [vmem:[#allocation2 + $0x78] sm:$0xff] %v211
    %v226 = vld [vmem:[#allocation3 + $0x5] sm:$0xff]
    %v227 = vld [vmem:[#allocation3 + $0xd] sm:$0xff]
    %v228 = vld [vmem:[#allocation3 + $0x15] sm:$0xff]
    %v229 = vld [vmem:[#allocation3 + $0x1d] sm:$0xff]
    %v230 = vld [vmem:[#allocation3 + $0x25] sm:$0xff]
    %v231 = vld [vmem:[#allocation3 + $0x2d] sm:$0xff]
    %v232 = vld [vmem:[#allocation3 + $0x35] sm:$0xff]
    %v233 = vld [vmem:[#allocation3 + $0x3d] sm:$0xff]
    %v234 = vld [vmem:[#allocation3 + $0x45] sm:$0xff]
    %v235 = vld [vmem:[#allocation3 + $0x4d] sm:$0xff]
    %v236 = vld [vmem:[#allocation3 + $0x55] sm:$0xff]
    %v237 = vld [vmem:[#allocation3 + $0x5d] sm:$0xff]
    %v238 = vld [vmem:[#allocation3 + $0x65] sm:$0xff]
    %v239 = vld [vmem:[#allocation3 + $0x6d] sm:$0xff]
    %v240 = vld [vmem:[#allocation3 + $0x75] sm:$0xff]
    %v241 = vld [vmem:[#allocation3 + $0x7d] sm:$0xff]
    %v242 = vld [vmem:[#allocation2] sm:$0xff]
    %v243 = vld [vmem:[#allocation2 + $0x8] sm:$0xff]
    %v244 = vld [vmem:[#allocation2 + $0x10] sm:$0xff]
    %v245 = vld [vmem:[#allocation2 + $0x18] sm:$0xff]
    %v246 = vld [vmem:[#allocation2 + $0x20] sm:$0xff]
    %v247 = vld [vmem:[#allocation2 + $0x28] sm:$0xff]
    %v248 = vld [vmem:[#allocation2 + $0x40] sm:$0xff]
    %v249 = vld [vmem:[#allocation2 + $0x48] sm:$0xff]
    %v250 = vld [vmem:[#allocation2 + $0x50] sm:$0xff]
    %v251 = vld [vmem:[#allocation2 + $0x58] sm:$0xff]
    %v252 = vld [vmem:[#allocation2 + $0x60] sm:$0xff]
    %v253 = vld [vmem:[#allocation2 + $0x68] sm:$0xff]
    %v254 = vld [vmem:[#allocation3 + $0x85] sm:$0xff]
    %v255 = vld [vmem:[#allocation3 + $0x8d] sm:$0xff]
    %v256 = vld [vmem:[#allocation3 + $0x95] sm:$0xff]
    %v257 = vld [vmem:[#allocation3 + $0x9d] sm:$0xff]
    %v258 = vld [vmem:[#allocation3 + $0xa5] sm:$0xff]
    %v259 = vld [vmem:[#allocation3 + $0xad] sm:$0xff]
    %v260 = vld [vmem:[#allocation3 + $0xb5] sm:$0xff]
    %v261 = vld [vmem:[#allocation3 + $0xbd] sm:$0xff]
    %v262 = vld [vmem:[#allocation3 + $0xc5] sm:$0xff]
    %v263 = vld [vmem:[#allocation3 + $0xcd] sm:$0xff]
    %v264 = vld [vmem:[#allocation3 + $0xd5] sm:$0xff]
    %v265 = vld [vmem:[#allocation3 + $0xdd] sm:$0xff]
    %v266 = vld [vmem:[#allocation3 + $0xe5] sm:$0xff]
    %v267 = vld [vmem:[#allocation3 + $0xed] sm:$0xff]
    %v268 = vld [vmem:[#allocation3 + $0xf5] sm:$0xff]
    %v269 = vld [vmem:[#allocation3 + $0xfd] sm:$0xff]
    %v270 = vld [vmem:[#allocation2 + $0x30] sm:$0xff]
    %v271 = vld [vmem:[#allocation2 + $0x70] sm:$0xff]
    %272 = vmatprep.subr.mxu0 0.0
    %273 = vmatpush1.msra.mxu0 %v269
    %274 = vmatprep.subr.mxu0 0.0
    %275 = vmatpush1.msra.mxu0 %v268
    %276 = vmatprep.subr.mxu0 0.0
    %277 = vmatpush1.msra.mxu0 %v267
    %278 = vmatprep.subr.mxu0 0.0
    %279 = vmatpush1.msra.mxu0 %v266
    %280 = vmatprep.subr.mxu0 0.0
    %281 = vmatpush1.msra.mxu0 %v265
    %282 = vmatprep.subr.mxu0 0.0
    %283 = vmatpush1.msra.mxu0 %v264
    %284 = vmatprep.subr.mxu0 0.0
    %285 = vmatpush1.msra.mxu0 %v263
    %286 = vmatprep.subr.mxu0 0.0
    %287 = vmatpush1.msra.mxu0 %v262
    %288 = vmatprep.subr.mxu0 0.0
    %289 = vmatpush1.msra.mxu0 %v261
    %290 = vmatprep.subr.mxu0 0.0
    %291 = vmatpush1.msra.mxu0 %v260
    %292 = vmatprep.subr.mxu0 0.0
    %293 = vmatpush1.msra.mxu0 %v259
    %294 = vmatprep.subr.mxu0 0.0
    %295 = vmatpush1.msra.mxu0 %v258
    %296 = vmatprep.subr.mxu0 0.0
    %297 = vmatpush1.msra.mxu0 %v257
    %298 = vmatprep.subr.mxu0 0.0
    %299 = vmatpush1.msra.mxu0 %v256
    %300 = vmatprep.subr.mxu0 0.0
    %301 = vmatpush1.msra.mxu0 %v255
    %302 = vmatprep.subr.mxu0 0.0
    %303 = vmatpush1.msra.mxu0 %v254
    %304 = vmatprep.subr.mxu0 0.0
    %305 = vmatpush2.msra.mxu0 0.0
    %306 = vmatprep.subr.mxu0 0.0
    %307 = vmatpush2.msra.mxu0 0.0
    %308 = vmatprep.subr.mxu0 0.0
    %309 = vmatpush2.msra.mxu0 0.0
    %310 = vmatprep.subr.mxu0 0.0
    %311 = vmatpush2.msra.mxu0 0.0
    %312 = vmatprep.subr.mxu0 0.0
    %313 = vmatpush2.msra.mxu0 0.0
    %314 = vmatprep.subr.mxu0 0.0
    %315 = vmatpush2.msra.mxu0 0.0
    %316 = vmatprep.subr.mxu0 0.0
    %317 = vmatpush2.msra.mxu0 0.0
    %318 = vmatprep.subr.mxu0 0.0
    %319 = vmatpush2.msra.mxu0 0.0
    %320 = vmatprep.subr.mxu0 0.0
    %321 = vmatpush2.msra.mxu0 0.0
    %322 = vmatprep.subr.mxu0 0.0
    %323 = vmatpush2.msra.mxu0 0.0
    %324 = vmatprep.subr.mxu0 0.0
    %325 = vmatpush2.msra.mxu0 0.0
    %326 = vmatprep.subr.mxu0 0.0
    %327 = vmatpush2.msra.mxu0 0.0
    %328 = vmatprep.subr.mxu0 0.0
    %329 = vmatpush2.msra.mxu0 0.0
    %330 = vmatprep.subr.mxu0 0.0
    %331 = vmatpush2.msra.mxu0 0.0
    %332 = vmatprep.subr.mxu0 0.0
    %333 = vmatpush2.msra.mxu0 0.0
    %334 = vmatprep.subr.mxu0 0.0
    %335 = vmatpush2.msra.mxu0 0.0
    %336 = vmatprep.mubr.f32.mxu0 0.0
    %337 = vmatmul.mubr.f32.gmra.mxu0 %v243
    %v338 = vpop.f32.mrf.mxu0
    %v339 = vadd.f32 0.0, %v338
    %v340 = vpop.f32.mrf.mxu0
    %341 = vmatprep.mubr.f32.mxu0 0.0
    %342 = vmatmul.mubr.f32.gmra.mxu0 %v244
    %v343 = vpop.f32.mrf.mxu0
    %v344 = vadd.f32 0.0, %v343
    %v345 = vpop.f32.mrf.mxu0
    %346 = vmatprep.mubr.f32.mxu0 0.0
    %347 = vmatmul.mubr.f32.gmra.mxu0 %v245
    %v348 = vpop.f32.mrf.mxu0
    %v349 = vadd.f32 0.0, %v348
    %v350 = vpop.f32.mrf.mxu0
    %351 = vmatprep.mubr.f32.mxu0 0.0
    %352 = vmatmul.mubr.f32.gmra.mxu0 %v246
    %v353 = vpop.f32.mrf.mxu0
    %v354 = vadd.f32 0.0, %v353
    %v355 = vpop.f32.mrf.mxu0
    %356 = vmatprep.mubr.f32.mxu0 0.0
    %357 = vmatmul.mubr.f32.gmra.mxu0 %v247
    %v358 = vpop.f32.mrf.mxu0
    %v359 = vadd.f32 0.0, %v358
    %v360 = vpop.f32.mrf.mxu0
    %361 = vmatprep.mubr.f32.mxu0 0.0
    %362 = vmatmul.mubr.f32.gmra.mxu0 %v270
    %v363 = vpop.f32.mrf.mxu0
    %v364 = vadd.f32 0.0, %v363
    %v365 = vpop.f32.mrf.mxu0
    %366 = vmatprep.mubr.f32.mxu0 0.0
    %367 = vmatmul.mubr.f32.gmra.mxu0 %v249
    %v368 = vpop.f32.mrf.mxu0
    %v369 = vadd.f32 0.0, %v368
    %v370 = vpop.f32.mrf.mxu0
    %371 = vmatprep.mubr.f32.mxu0 0.0
    %372 = vmatmul.mubr.f32.gmra.mxu0 %v250
    %v373 = vpop.f32.mrf.mxu0
    %v374 = vadd.f32 0.0, %v373
    %v375 = vpop.f32.mrf.mxu0
    %376 = vmatprep.mubr.f32.mxu0 0.0
    %377 = vmatmul.mubr.f32.gmra.mxu0 %v251
    %v378 = vpop.f32.mrf.mxu0
    %v379 = vadd.f32 0.0, %v378
    %v380 = vpop.f32.mrf.mxu0
    %381 = vmatprep.mubr.f32.mxu0 0.0
    %382 = vmatmul.mubr.f32.gmra.mxu0 %v252
    %v383 = vpop.f32.mrf.mxu0
    %v384 = vadd.f32 0.0, %v383
    %v385 = vpop.f32.mrf.mxu0
    %386 = vmatprep.mubr.f32.mxu0 0.0
    %387 = vmatmul.mubr.f32.gmra.mxu0 %v253
    %v388 = vpop.f32.mrf.mxu0
    %v389 = vadd.f32 0.0, %v388
    %v390 = vpop.f32.mrf.mxu0
    %391 = vmatprep.mubr.f32.mxu0 0.0
    %392 = vmatmul.mubr.f32.gmra.mxu0 %v271
    %v393 = vpop.f32.mrf.mxu0
    %v394 = vadd.f32 0.0, %v393
    %v395 = vpop.f32.mrf.mxu0
    %396 = vdwg.mxu0
    %397 = vmatprep.subr.mxu0 0.0
    %398 = vmatpush1.msra.mxu0 %v241
    %399 = vmatprep.subr.mxu0 0.0
    %400 = vmatpush1.msra.mxu0 %v240
    %401 = vmatprep.subr.mxu0 0.0
    %402 = vmatpush1.msra.mxu0 %v239
    %403 = vmatprep.subr.mxu0 0.0
    %404 = vmatpush1.msra.mxu0 %v238
    %405 = vmatprep.subr.mxu0 0.0
    %406 = vmatpush1.msra.mxu0 %v237
    %407 = vmatprep.subr.mxu0 0.0
    %408 = vmatpush1.msra.mxu0 %v236
    %409 = vmatprep.subr.mxu0 0.0
    %410 = vmatpush1.msra.mxu0 %v235
    %411 = vmatprep.subr.mxu0 0.0
    %412 = vmatpush1.msra.mxu0 %v234
    %413 = vmatprep.subr.mxu0 0.0
    %414 = vmatpush1.msra.mxu0 %v233
    %415 = vmatprep.subr.mxu0 0.0
    %416 = vmatpush1.msra.mxu0 %v232
    %417 = vmatprep.subr.mxu0 0.0
    %418 = vmatpush1.msra.mxu0 %v231
    %419 = vmatprep.subr.mxu0 0.0
    %420 = vmatpush1.msra.mxu0 %v230
    %421 = vmatprep.subr.mxu0 0.0
    %422 = vmatpush1.msra.mxu0 %v229
    %423 = vmatprep.subr.mxu0 0.0
    %424 = vmatpush1.msra.mxu0 %v228
    %425 = vmatprep.subr.mxu0 0.0
    %426 = vmatpush1.msra.mxu0 %v227
    %427 = vmatprep.subr.mxu0 0.0
    %428 = vmatpush1.msra.mxu0 %v226
    %429 = vmatprep.subr.mxu0 0.0
    %430 = vmatpush2.msra.mxu0 0.0
    %431 = vmatprep.subr.mxu0 0.0
    %432 = vmatpush2.msra.mxu0 0.0
    %433 = vmatprep.subr.mxu0 0.0
    %434 = vmatpush2.msra.mxu0 0.0
    %435 = vmatprep.subr.mxu0 0.0
    %436 = vmatpush2.msra.mxu0 0.0
    %437 = vmatprep.subr.mxu0 0.0
    %438 = vmatpush2.msra.mxu0 0.0
    %439 = vmatprep.subr.mxu0 0.0
    %440 = vmatpush2.msra.mxu0 0.0
    %441 = vmatprep.subr.mxu0 0.0
    %442 = vmatpush2.msra.mxu0 0.0
    %443 = vmatprep.subr.mxu0 0.0
    %444 = vmatpush2.msra.mxu0 0.0
    %445 = vmatprep.subr.mxu0 0.0
    %446 = vmatpush2.msra.mxu0 0.0
    %447 = vmatprep.subr.mxu0 0.0
    %448 = vmatpush2.msra.mxu0 0.0
    %449 = vmatprep.subr.mxu0 0.0
    %450 = vmatpush2.msra.mxu0 0.0
    %451 = vmatprep.subr.mxu0 0.0
    %452 = vmatpush2.msra.mxu0 0.0
    %453 = vmatprep.subr.mxu0 0.0
    %454 = vmatpush2.msra.mxu0 0.0
    %455 = vmatprep.subr.mxu0 0.0
    %456 = vmatpush2.msra.mxu0 0.0
    %457 = vmatprep.subr.mxu0 0.0
    %458 = vmatpush2.msra.mxu0 0.0
    %459 = vmatprep.subr.mxu0 0.0
    %460 = vmatpush2.msra.mxu0 0.0
    %461 = vmatprep.mubr.f32.mxu0 0.0
    %462 = vmatmul.mubr.f32.gmra.mxu0 %v242
    %v463 = vpop.f32.mrf.mxu0
    %v464 = vadd.f32 %v339, %v463
    %v465 = vpop.f32.mrf.mxu0
    %466 = vmatprep.mubr.f32.mxu0 0.0
    %467 = vmatmul.mubr.f32.gmra.mxu0 %v243
    %v468 = vpop.f32.mrf.mxu0
    %v469 = vadd.f32 %v344, %v468
    %v470 = vpop.f32.mrf.mxu0
    %471 = vmatprep.mubr.f32.mxu0 0.0
    %472 = vmatmul.mubr.f32.gmra.mxu0 %v244
    %v473 = vpop.f32.mrf.mxu0
    %v474 = vadd.f32 %v349, %v473
    %v475 = vpop.f32.mrf.mxu0
    %476 = vmatprep.mubr.f32.mxu0 0.0
    %477 = vmatmul.mubr.f32.gmra.mxu0 %v245
    %v478 = vpop.f32.mrf.mxu0
    %v479 = vadd.f32 %v354, %v478
    %v480 = vpop.f32.mrf.mxu0
    %481 = vmatprep.mubr.f32.mxu0 0.0
    %482 = vmatmul.mubr.f32.gmra.mxu0 %v246
    %v483 = vpop.f32.mrf.mxu0
    %v484 = vadd.f32 %v359, %v483
    %v485 = vpop.f32.mrf.mxu0
    %486 = vmatprep.mubr.f32.mxu0 0.0
    %487 = vmatmul.mubr.f32.gmra.mxu0 %v247
    %v488 = vpop.f32.mrf.mxu0
    %v489 = vadd.f32 %v364, %v488
    %v490 = vpop.f32.mrf.mxu0
    %491 = vmatprep.mubr.f32.mxu0 0.0
    %492 = vmatmul.mubr.f32.gmra.mxu0 %v248
    %v493 = vpop.f32.mrf.mxu0
    %v494 = vadd.f32 %v369, %v493
    %v495 = vpop.f32.mrf.mxu0
    %496 = vmatprep.mubr.f32.mxu0 0.0
    %497 = vmatmul.mubr.f32.gmra.mxu0 %v249
    %v498 = vpop.f32.mrf.mxu0
    %v499 = vadd.f32 %v374, %v498
    %v500 = vpop.f32.mrf.mxu0
    %501 = vmatprep.mubr.f32.mxu0 0.0
    %502 = vmatmul.mubr.f32.gmra.mxu0 %v250
    %v503 = vpop.f32.mrf.mxu0
    %v504 = vadd.f32 %v379, %v503
    %v505 = vpop.f32.mrf.mxu0
    %506 = vmatprep.mubr.f32.mxu0 0.0
    %507 = vmatmul.mubr.f32.gmra.mxu0 %v251
    %v508 = vpop.f32.mrf.mxu0
    %v509 = vadd.f32 %v384, %v508
    %v510 = vpop.f32.mrf.mxu0
    %511 = vmatprep.mubr.f32.mxu0 0.0
    %512 = vmatmul.mubr.f32.gmra.mxu0 %v252
    %v513 = vpop.f32.mrf.mxu0
    %v514 = vadd.f32 %v389, %v513
    %v515 = vpop.f32.mrf.mxu0
    %516 = vmatprep.mubr.f32.mxu0 0.0
    %517 = vmatmul.mubr.f32.gmra.mxu0 %v253
    %v518 = vpop.f32.mrf.mxu0
    %v519 = vadd.f32 %v394, %v518
    %v520 = vpop.f32.mrf.mxu0
    %521 = vdwg.mxu0
    %v522 = vld [vmem:[#allocation3 + $0x105] sm:$0xff]
    %v523 = vld [vmem:[#allocation3 + $0x10d] sm:$0xff]
    %v524 = vld [vmem:[#allocation3 + $0x115] sm:$0xff]
    %v525 = vld [vmem:[#allocation3 + $0x11d] sm:$0xff]
    %v526 = vld [vmem:[#allocation3 + $0x125] sm:$0xff]
    %v527 = vld [vmem:[#allocation3 + $0x12d] sm:$0xff]
    %v528 = vld [vmem:[#allocation3 + $0x135] sm:$0xff]
    %v529 = vld [vmem:[#allocation3 + $0x13d] sm:$0xff]
    %v530 = vld [vmem:[#allocation3 + $0x145] sm:$0xff]
    %v531 = vld [vmem:[#allocation3 + $0x14d] sm:$0xff]
    %v532 = vld [vmem:[#allocation3 + $0x155] sm:$0xff]
    %v533 = vld [vmem:[#allocation3 + $0x15d] sm:$0xff]
    %v534 = vld [vmem:[#allocation3 + $0x165] sm:$0xff]
    %v535 = vld [vmem:[#allocation3 + $0x16d] sm:$0xff]
    %v536 = vld [vmem:[#allocation3 + $0x175] sm:$0xff]
    %v537 = vld [vmem:[#allocation3 + $0x17d] sm:$0xff]
    %v538 = vld [vmem:[#allocation2 + $0xe] sm:$0xff]
    %v539 = vld [vmem:[#allocation2 + $0x16] sm:$0xff]
    %v540 = vld [vmem:[#allocation2 + $0x1e] sm:$0xff]
    %v541 = vld [vmem:[#allocation2 + $0x26] sm:$0xff]
    %v542 = vld [vmem:[#allocation2 + $0x2e] sm:$0xff]
    %v543 = vld [vmem:[#allocation2 + $0x36] sm:$0xff]
    %v544 = vld [vmem:[#allocation2 + $0x4e] sm:$0xff]
    %v545 = vld [vmem:[#allocation2 + $0x56] sm:$0xff]
    %v546 = vld [vmem:[#allocation2 + $0x5e] sm:$0xff]
    %v547 = vld [vmem:[#allocation2 + $0x66] sm:$0xff]
    %v548 = vld [vmem:[#allocation2 + $0x6e] sm:$0xff]
    %v549 = vld [vmem:[#allocation2 + $0x76] sm:$0xff]
    %550 = vmatprep.subr.mxu0 0.0
    %551 = vmatpush1.msra.mxu0 %v537
    %552 = vmatprep.subr.mxu0 0.0
    %553 = vmatpush1.msra.mxu0 %v536
    %554 = vmatprep.subr.mxu0 0.0
    %555 = vmatpush1.msra.mxu0 %v535
    %556 = vmatprep.subr.mxu0 0.0
    %557 = vmatpush1.msra.mxu0 %v534
    %558 = vmatprep.subr.mxu0 0.0
    %559 = vmatpush1.msra.mxu0 %v533
    %560 = vmatprep.subr.mxu0 0.0
    %561 = vmatpush1.msra.mxu0 %v532
    %562 = vmatprep.subr.mxu0 0.0
    %563 = vmatpush1.msra.mxu0 %v531
    %564 = vmatprep.subr.mxu0 0.0
    %565 = vmatpush1.msra.mxu0 %v530
    %566 = vmatprep.subr.mxu0 0.0
    %567 = vmatpush1.msra.mxu0 %v529
    %568 = vmatprep.subr.mxu0 0.0
    %569 = vmatpush1.msra.mxu0 %v528
    %570 = vmatprep.subr.mxu0 0.0
    %571 = vmatpush1.msra.mxu0 %v527
    %572 = vmatprep.subr.mxu0 0.0
    %573 = vmatpush1.msra.mxu0 %v526
    %574 = vmatprep.subr.mxu0 0.0
    %575 = vmatpush1.msra.mxu0 %v525
    %576 = vmatprep.subr.mxu0 0.0
    %577 = vmatpush1.msra.mxu0 %v524
    %578 = vmatprep.subr.mxu0 0.0
    %579 = vmatpush1.msra.mxu0 %v523
    %580 = vmatprep.subr.mxu0 0.0
    %581 = vmatpush1.msra.mxu0 %v522
    %582 = vmatprep.subr.mxu0 0.0
    %583 = vmatpush2.msra.mxu0 0.0
    %584 = vmatprep.subr.mxu0 0.0
    %585 = vmatpush2.msra.mxu0 0.0
    %586 = vmatprep.subr.mxu0 0.0
    %587 = vmatpush2.msra.mxu0 0.0
    %588 = vmatprep.subr.mxu0 0.0
    %589 = vmatpush2.msra.mxu0 0.0
    %590 = vmatprep.subr.mxu0 0.0
    %591 = vmatpush2.msra.mxu0 0.0
    %592 = vmatprep.subr.mxu0 0.0
    %593 = vmatpush2.msra.mxu0 0.0
    %594 = vmatprep.subr.mxu0 0.0
    %595 = vmatpush2.msra.mxu0 0.0
    %596 = vmatprep.subr.mxu0 0.0
    %597 = vmatpush2.msra.mxu0 0.0
    %598 = vmatprep.subr.mxu0 0.0
    %599 = vmatpush2.msra.mxu0 0.0
    %600 = vmatprep.subr.mxu0 0.0
    %601 = vmatpush2.msra.mxu0 0.0
    %602 = vmatprep.subr.mxu0 0.0
    %603 = vmatpush2.msra.mxu0 0.0
    %604 = vmatprep.subr.mxu0 0.0
    %605 = vmatpush2.msra.mxu0 0.0
    %606 = vmatprep.subr.mxu0 0.0
    %607 = vmatpush2.msra.mxu0 0.0
    %608 = vmatprep.subr.mxu0 0.0
    %609 = vmatpush2.msra.mxu0 0.0
    %610 = vmatprep.subr.mxu0 0.0
    %611 = vmatpush2.msra.mxu0 0.0
    %612 = vmatprep.subr.mxu0 0.0
    %613 = vmatpush2.msra.mxu0 0.0
    %614 = vmatprep.mubr.f32.mxu0 0.0
    %615 = vmatmul.mubr.f32.gmra.mxu0 %v538
    %v616 = vpop.f32.mrf.mxu0
    %v617 = vadd.f32 0.0, %v616
    %v618 = vpop.f32.mrf.mxu0
    %619 = vmatprep.mubr.f32.mxu0 0.0
    %620 = vmatmul.mubr.f32.gmra.mxu0 %v539
    %v621 = vpop.f32.mrf.mxu0
    %v622 = vadd.f32 0.0, %v621
    %v623 = vpop.f32.mrf.mxu0
    %624 = vmatprep.mubr.f32.mxu0 0.0
    %625 = vmatmul.mubr.f32.gmra.mxu0 %v540
    %v626 = vpop.f32.mrf.mxu0
    %v627 = vadd.f32 0.0, %v626
    %v628 = vpop.f32.mrf.mxu0
    %629 = vmatprep.mubr.f32.mxu0 0.0
    %630 = vmatmul.mubr.f32.gmra.mxu0 %v541
    %v631 = vpop.f32.mrf.mxu0
    %v632 = vadd.f32 0.0, %v631
    %v633 = vpop.f32.mrf.mxu0
    %634 = vmatprep.mubr.f32.mxu0 0.0
    %635 = vmatmul.mubr.f32.gmra.mxu0 %v542
    %v636 = vpop.f32.mrf.mxu0
    %v637 = vadd.f32 0.0, %v636
    %v638 = vpop.f32.mrf.mxu0
    %639 = vmatprep.mubr.f32.mxu0 0.0
    %640 = vmatmul.mubr.f32.gmra.mxu0 %v543
    %v641 = vpop.f32.mrf.mxu0
    %v642 = vadd.f32 0.0, %v641
    %v643 = vpop.f32.mrf.mxu0
    %644 = vmatprep.mubr.f32.mxu0 0.0
    %645 = vmatmul.mubr.f32.gmra.mxu0 %v544
    %v646 = vpop.f32.mrf.mxu0
    %v647 = vadd.f32 0.0, %v646
    %v648 = vpop.f32.mrf.mxu0
    %649 = vmatprep.mubr.f32.mxu0 0.0
    %650 = vmatmul.mubr.f32.gmra.mxu0 %v545
    %v651 = vpop.f32.mrf.mxu0
    %v652 = vadd.f32 0.0, %v651
    %v653 = vpop.f32.mrf.mxu0
    %654 = vmatprep.mubr.f32.mxu0 0.0
    %655 = vmatmul.mubr.f32.gmra.mxu0 %v546
    %v656 = vpop.f32.mrf.mxu0
    %v657 = vadd.f32 0.0, %v656
    %v658 = vpop.f32.mrf.mxu0
    %659 = vmatprep.mubr.f32.mxu0 0.0
    %660 = vmatmul.mubr.f32.gmra.mxu0 %v547
    %v661 = vpop.f32.mrf.mxu0
    %v662 = vadd.f32 0.0, %v661
    %v663 = vpop.f32.mrf.mxu0
    %664 = vmatprep.mubr.f32.mxu0 0.0
    %665 = vmatmul.mubr.f32.gmra.mxu0 %v548
    %v666 = vpop.f32.mrf.mxu0
    %v667 = vadd.f32 0.0, %v666
    %v668 = vpop.f32.mrf.mxu0
    %669 = vmatprep.mubr.f32.mxu0 0.0
    %670 = vmatmul.mubr.f32.gmra.mxu0 %v549
    %v671 = vpop.f32.mrf.mxu0
    %v672 = vadd.f32 0.0, %v671
    %v673 = vpop.f32.mrf.mxu0
    %674 = vdwg.mxu0
    %v675 = vadd.f32 %v464, %v617
    %v676 = vadd.f32 %v469, %v622
    %v677 = vadd.f32 %v474, %v627
    %v678 = vadd.f32 %v479, %v632
    %v679 = vadd.f32 %v484, %v637
    %v680 = vadd.f32 %v489, %v642
    %v681 = vadd.f32 %v494, %v647
    %v682 = vadd.f32 %v499, %v652
    %v683 = vadd.f32 %v504, %v657
    %v684 = vadd.f32 %v509, %v662
    %v685 = vadd.f32 %v514, %v667
    %v686 = vadd.f32 %v519, %v672
    %v687 = vld [vmem:[#allocation3 + $0x185] sm:$0xff]
    %v688 = vld [vmem:[#allocation3 + $0x18d] sm:$0xff]
    %v689 = vld [vmem:[#allocation3 + $0x195] sm:$0xff]
    %v690 = vld [vmem:[#allocation3 + $0x19d] sm:$0xff]
    %v691 = vld [vmem:[#allocation3 + $0x1a5] sm:$0xff]
    %v692 = vld [vmem:[#allocation3 + $0x1ad] sm:$0xff]
    %v693 = vld [vmem:[#allocation3 + $0x1b5] sm:$0xff]
    %v694 = vld [vmem:[#allocation3 + $0x1bd] sm:$0xff]
    %v695 = vld [vmem:[#allocation3 + $0x1c5] sm:$0xff]
    %v696 = vld [vmem:[#allocation3 + $0x1cd] sm:$0xff]
    %v697 = vld [vmem:[#allocation3 + $0x1d5] sm:$0xff]
    %v698 = vld [vmem:[#allocation3 + $0x1dd] sm:$0xff]
    %v699 = vld [vmem:[#allocation3 + $0x1e5] sm:$0xff]
    %v700 = vld [vmem:[#allocation3 + $0x1ed] sm:$0xff]
    %v701 = vld [vmem:[#allocation3 + $0x1f5] sm:$0xff]
    %v702 = vld [vmem:[#allocation3 + $0x1fd] sm:$0xff]
    %v703 = vld [vmem:[#allocation2 + $0xf] sm:$0xff]
    %v704 = vld [vmem:[#allocation2 + $0x17] sm:$0xff]
    %v705 = vld [vmem:[#allocation2 + $0x1f] sm:$0xff]
    %v706 = vld [vmem:[#allocation2 + $0x27] sm:$0xff]
    %v707 = vld [vmem:[#allocation2 + $0x2f] sm:$0xff]
    %v708 = vld [vmem:[#allocation2 + $0x37] sm:$0xff]
    %v709 = vld [vmem:[#allocation2 + $0x4f] sm:$0xff]
    %v710 = vld [vmem:[#allocation2 + $0x57] sm:$0xff]
    %v711 = vld [vmem:[#allocation2 + $0x5f] sm:$0xff]
    %v712 = vld [vmem:[#allocation2 + $0x67] sm:$0xff]
    %v713 = vld [vmem:[#allocation2 + $0x6f] sm:$0xff]
    %v714 = vld [vmem:[#allocation2 + $0x77] sm:$0xff]
    %715 = vmatprep.subr.mxu0 0.0
    %716 = vmatpush1.msra.mxu0 %v702
    %717 = vmatprep.subr.mxu0 0.0
    %718 = vmatpush1.msra.mxu0 %v701
    %719 = vmatprep.subr.mxu0 0.0
    %720 = vmatpush1.msra.mxu0 %v700
    %721 = vmatprep.subr.mxu0 0.0
    %722 = vmatpush1.msra.mxu0 %v699
    %723 = vmatprep.subr.mxu0 0.0
    %724 = vmatpush1.msra.mxu0 %v698
    %725 = vmatprep.subr.mxu0 0.0
    %726 = vmatpush1.msra.mxu0 %v697
    %727 = vmatprep.subr.mxu0 0.0
    %728 = vmatpush1.msra.mxu0 %v696
    %729 = vmatprep.subr.mxu0 0.0
    %730 = vmatpush1.msra.mxu0 %v695
    %731 = vmatprep.subr.mxu0 0.0
    %732 = vmatpush1.msra.mxu0 %v694
    %733 = vmatprep.subr.mxu0 0.0
    %734 = vmatpush1.msra.mxu0 %v693
    %735 = vmatprep.subr.mxu0 0.0
    %736 = vmatpush1.msra.mxu0 %v692
    %737 = vmatprep.subr.mxu0 0.0
    %738 = vmatpush1.msra.mxu0 %v691
    %739 = vmatprep.subr.mxu0 0.0
    %740 = vmatpush1.msra.mxu0 %v690
    %741 = vmatprep.subr.mxu0 0.0
    %742 = vmatpush1.msra.mxu0 %v689
    %743 = vmatprep.subr.mxu0 0.0
    %744 = vmatpush1.msra.mxu0 %v688
    %745 = vmatprep.subr.mxu0 0.0
    %746 = vmatpush1.msra.mxu0 %v687
    %747 = vmatprep.subr.mxu0 0.0
    %748 = vmatpush2.msra.mxu0 0.0
    %749 = vmatprep.subr.mxu0 0.0
    %750 = vmatpush2.msra.mxu0 0.0
    %751 = vmatprep.subr.mxu0 0.0
    %752 = vmatpush2.msra.mxu0 0.0
    %753 = vmatprep.subr.mxu0 0.0
    %754 = vmatpush2.msra.mxu0 0.0
    %755 = vmatprep.subr.mxu0 0.0
    %756 = vmatpush2.msra.mxu0 0.0
    %757 = vmatprep.subr.mxu0 0.0
    %758 = vmatpush2.msra.mxu0 0.0
    %759 = vmatprep.subr.mxu0 0.0
    %760 = vmatpush2.msra.mxu0 0.0
    %761 = vmatprep.subr.mxu0 0.0
    %762 = vmatpush2.msra.mxu0 0.0
    %763 = vmatprep.subr.mxu0 0.0
    %764 = vmatpush2.msra.mxu0 0.0
    %765 = vmatprep.subr.mxu0 0.0
    %766 = vmatpush2.msra.mxu0 0.0
    %767 = vmatprep.subr.mxu0 0.0
    %768 = vmatpush2.msra.mxu0 0.0
    %769 = vmatprep.subr.mxu0 0.0
    %770 = vmatpush2.msra.mxu0 0.0
    %771 = vmatprep.subr.mxu0 0.0
    %772 = vmatpush2.msra.mxu0 0.0
    %773 = vmatprep.subr.mxu0 0.0
    %774 = vmatpush2.msra.mxu0 0.0
    %775 = vmatprep.subr.mxu0 0.0
    %776 = vmatpush2.msra.mxu0 0.0
    %777 = vmatprep.subr.mxu0 0.0
    %778 = vmatpush2.msra.mxu0 0.0
    %779 = vmatprep.mubr.f32.mxu0 0.0
    %780 = vmatmul.mubr.f32.gmra.mxu0 %v703
    %v781 = vpop.f32.mrf.mxu0
    %v782 = vadd.f32 0.0, %v781
    %v783 = vpop.f32.mrf.mxu0
    %784 = vmatprep.mubr.f32.mxu0 0.0
    %785 = vmatmul.mubr.f32.gmra.mxu0 %v704
    %v786 = vpop.f32.mrf.mxu0
    %v787 = vadd.f32 0.0, %v786
    %v788 = vpop.f32.mrf.mxu0
    %789 = vmatprep.mubr.f32.mxu0 0.0
    %790 = vmatmul.mubr.f32.gmra.mxu0 %v705
    %v791 = vpop.f32.mrf.mxu0
    %v792 = vadd.f32 0.0, %v791
    %v793 = vpop.f32.mrf.mxu0
    %794 = vmatprep.mubr.f32.mxu0 0.0
    %795 = vmatmul.mubr.f32.gmra.mxu0 %v706
    %v796 = vpop.f32.mrf.mxu0
    %v797 = vadd.f32 0.0, %v796
    %v798 = vpop.f32.mrf.mxu0
    %799 = vmatprep.mubr.f32.mxu0 0.0
    %800 = vmatmul.mubr.f32.gmra.mxu0 %v707
    %v801 = vpop.f32.mrf.mxu0
    %v802 = vadd.f32 0.0, %v801
    %v803 = vpop.f32.mrf.mxu0
    %804 = vmatprep.mubr.f32.mxu0 0.0
    %805 = vmatmul.mubr.f32.gmra.mxu0 %v708
    %v806 = vpop.f32.mrf.mxu0
    %v807 = vadd.f32 0.0, %v806
    %v808 = vpop.f32.mrf.mxu0
    %809 = vmatprep.mubr.f32.mxu0 0.0
    %810 = vmatmul.mubr.f32.gmra.mxu0 %v709
    %v811 = vpop.f32.mrf.mxu0
    %v812 = vadd.f32 0.0, %v811
    %v813 = vpop.f32.mrf.mxu0
    %814 = vmatprep.mubr.f32.mxu0 0.0
    %815 = vmatmul.mubr.f32.gmra.mxu0 %v710
    %v816 = vpop.f32.mrf.mxu0
    %v817 = vadd.f32 0.0, %v816
    %v818 = vpop.f32.mrf.mxu0
    %819 = vmatprep.mubr.f32.mxu0 0.0
    %820 = vmatmul.mubr.f32.gmra.mxu0 %v711
    %v821 = vpop.f32.mrf.mxu0
    %v822 = vadd.f32 0.0, %v821
    %v823 = vpop.f32.mrf.mxu0
    %824 = vmatprep.mubr.f32.mxu0 0.0
    %825 = vmatmul.mubr.f32.gmra.mxu0 %v712
    %v826 = vpop.f32.mrf.mxu0
    %v827 = vadd.f32 0.0, %v826
    %v828 = vpop.f32.mrf.mxu0
    %829 = vmatprep.mubr.f32.mxu0 0.0
    %830 = vmatmul.mubr.f32.gmra.mxu0 %v713
    %v831 = vpop.f32.mrf.mxu0
    %v832 = vadd.f32 0.0, %v831
    %v833 = vpop.f32.mrf.mxu0
    %834 = vmatprep.mubr.f32.mxu0 0.0
    %835 = vmatmul.mubr.f32.gmra.mxu0 %v714
    %v836 = vpop.f32.mrf.mxu0
    %v837 = vadd.f32 0.0, %v836
    %v838 = vpop.f32.mrf.mxu0
    %839 = vdwg.mxu0
    %v840 = vadd.f32 %v675, %v782
    %v841 = vadd.f32 %v676, %v787
    %v842 = vadd.f32 %v677, %v792
    %v843 = vadd.f32 %v678, %v797
    %v844 = vadd.f32 %v679, %v802
    %v845 = vadd.f32 %v680, %v807
    %v846 = vadd.f32 %v681, %v812
    %v847 = vadd.f32 %v682, %v817
    %v848 = vadd.f32 %v683, %v822
    %v849 = vadd.f32 %v684, %v827
    %v850 = vadd.f32 %v685, %v832
    %v851 = vadd.f32 %v686, %v837
    %v852 = vld [vmem:[#allocation3 + $0x205] sm:$0xff]
    %v853 = vld [vmem:[#allocation3 + $0x20d] sm:$0xff]
    %v854 = vld [vmem:[#allocation3 + $0x215] sm:$0xff]
    %v855 = vld [vmem:[#allocation3 + $0x21d] sm:$0xff]
    %v856 = vld [vmem:[#allocation3 + $0x225] sm:$0xff]
    %v857 = vld [vmem:[#allocation3 + $0x22d] sm:$0xff]
    %v858 = vld [vmem:[#allocation3 + $0x235] sm:$0xff]
    %v859 = vld [vmem:[#allocation3 + $0x23d] sm:$0xff]
    %v860 = vld [vmem:[#allocation3 + $0x245] sm:$0xff]
    %v861 = vld [vmem:[#allocation3 + $0x24d] sm:$0xff]
    %v862 = vld [vmem:[#allocation3 + $0x255] sm:$0xff]
    %v863 = vld [vmem:[#allocation3 + $0x25d] sm:$0xff]
    %v864 = vld [vmem:[#allocation3 + $0x265] sm:$0xff]
    %v865 = vld [vmem:[#allocation3 + $0x26d] sm:$0xff]
    %v866 = vld [vmem:[#allocation3 + $0x275] sm:$0xff]
    %v867 = vld [vmem:[#allocation3 + $0x27d] sm:$0xff]
    %868 = vmatprep.subr.mxu0 0.0
    %869 = vmatpush1.msra.mxu0 %v867
    %870 = vmatprep.subr.mxu0 0.0
    %871 = vmatpush1.msra.mxu0 %v866
    %872 = vmatprep.subr.mxu0 0.0
    %873 = vmatpush1.msra.mxu0 %v865
    %874 = vmatprep.subr.mxu0 0.0
    %875 = vmatpush1.msra.mxu0 %v864
    %876 = vmatprep.subr.mxu0 0.0
    %877 = vmatpush1.msra.mxu0 %v863
    %878 = vmatprep.subr.mxu0 0.0
    %879 = vmatpush1.msra.mxu0 %v862
    %880 = vmatprep.subr.mxu0 0.0
    %881 = vmatpush1.msra.mxu0 %v861
    %882 = vmatprep.subr.mxu0 0.0
    %883 = vmatpush1.msra.mxu0 %v860
    %884 = vmatprep.subr.mxu0 0.0
    %885 = vmatpush1.msra.mxu0 %v859
    %886 = vmatprep.subr.mxu0 0.0
    %887 = vmatpush1.msra.mxu0 %v858
    %888 = vmatprep.subr.mxu0 0.0
    %889 = vmatpush1.msra.mxu0 %v857
    %890 = vmatprep.subr.mxu0 0.0
    %891 = vmatpush1.msra.mxu0 %v856
    %892 = vmatprep.subr.mxu0 0.0
    %893 = vmatpush1.msra.mxu0 %v855
    %894 = vmatprep.subr.mxu0 0.0
    %895 = vmatpush1.msra.mxu0 %v854
    %896 = vmatprep.subr.mxu0 0.0
    %897 = vmatpush1.msra.mxu0 %v853
    %898 = vmatprep.subr.mxu0 0.0
    %899 = vmatpush1.msra.mxu0 %v852
    %900 = vmatprep.subr.mxu0 0.0
    %901 = vmatpush2.msra.mxu0 0.0
    %902 = vmatprep.subr.mxu0 0.0
    %903 = vmatpush2.msra.mxu0 0.0
    %904 = vmatprep.subr.mxu0 0.0
    %905 = vmatpush2.msra.mxu0 0.0
    %906 = vmatprep.subr.mxu0 0.0
    %907 = vmatpush2.msra.mxu0 0.0
    %908 = vmatprep.subr.mxu0 0.0
    %909 = vmatpush2.msra.mxu0 0.0
    %910 = vmatprep.subr.mxu0 0.0
    %911 = vmatpush2.msra.mxu0 0.0
    %912 = vmatprep.subr.mxu0 0.0
    %913 = vmatpush2.msra.mxu0 0.0
    %914 = vmatprep.subr.mxu0 0.0
    %915 = vmatpush2.msra.mxu0 0.0
    %916 = vmatprep.subr.mxu0 0.0
    %917 = vmatpush2.msra.mxu0 0.0
    %918 = vmatprep.subr.mxu0 0.0
    %919 = vmatpush2.msra.mxu0 0.0
    %920 = vmatprep.subr.mxu0 0.0
    %921 = vmatpush2.msra.mxu0 0.0
    %922 = vmatprep.subr.mxu0 0.0
    %923 = vmatpush2.msra.mxu0 0.0
    %924 = vmatprep.subr.mxu0 0.0
    %925 = vmatpush2.msra.mxu0 0.0
    %926 = vmatprep.subr.mxu0 0.0
    %927 = vmatpush2.msra.mxu0 0.0
    %928 = vmatprep.subr.mxu0 0.0
    %929 = vmatpush2.msra.mxu0 0.0
    %930 = vmatprep.subr.mxu0 0.0
    %931 = vmatpush2.msra.mxu0 0.0
    %932 = vmatprep.mubr.f32.mxu0 0.0
    %933 = vmatmul.mubr.f32.gmra.mxu0 %v156
    %v934 = vpop.f32.mrf.mxu0
    %v935 = vadd.f32 0.0, %v934
    %v936 = vpop.f32.mrf.mxu0
    %937 = vmatprep.mubr.f32.mxu0 0.0
    %938 = vmatmul.mubr.f32.gmra.mxu0 %v161
    %v939 = vpop.f32.mrf.mxu0
    %v940 = vadd.f32 0.0, %v939
    %v941 = vpop.f32.mrf.mxu0
    %942 = vmatprep.mubr.f32.mxu0 0.0
    %943 = vmatmul.mubr.f32.gmra.mxu0 %v166
    %v944 = vpop.f32.mrf.mxu0
    %v945 = vadd.f32 0.0, %v944
    %v946 = vpop.f32.mrf.mxu0
    %947 = vmatprep.mubr.f32.mxu0 0.0
    %948 = vmatmul.mubr.f32.gmra.mxu0 %v171
    %v949 = vpop.f32.mrf.mxu0
    %v950 = vadd.f32 0.0, %v949
    %v951 = vpop.f32.mrf.mxu0
    %952 = vmatprep.mubr.f32.mxu0 0.0
    %953 = vmatmul.mubr.f32.gmra.mxu0 %v176
    %v954 = vpop.f32.mrf.mxu0
    %v955 = vadd.f32 0.0, %v954
    %v956 = vpop.f32.mrf.mxu0
    %957 = vmatprep.mubr.f32.mxu0 0.0
    %958 = vmatmul.mubr.f32.gmra.mxu0 %v181
    %v959 = vpop.f32.mrf.mxu0
    %v960 = vadd.f32 0.0, %v959
    %v961 = vpop.f32.mrf.mxu0
    %962 = vmatprep.mubr.f32.mxu0 0.0
    %963 = vmatmul.mubr.f32.gmra.mxu0 %v186
    %v964 = vpop.f32.mrf.mxu0
    %v965 = vadd.f32 0.0, %v964
    %v966 = vpop.f32.mrf.mxu0
    %967 = vmatprep.mubr.f32.mxu0 0.0
    %968 = vmatmul.mubr.f32.gmra.mxu0 %v191
    %v969 = vpop.f32.mrf.mxu0
    %v970 = vadd.f32 0.0, %v969
    %v971 = vpop.f32.mrf.mxu0
    %972 = vmatprep.mubr.f32.mxu0 0.0
    %973 = vmatmul.mubr.f32.gmra.mxu0 %v196
    %v974 = vpop.f32.mrf.mxu0
    %v975 = vadd.f32 0.0, %v974
    %v976 = vpop.f32.mrf.mxu0
    %977 = vmatprep.mubr.f32.mxu0 0.0
    %978 = vmatmul.mubr.f32.gmra.mxu0 %v201
    %v979 = vpop.f32.mrf.mxu0
    %v980 = vadd.f32 0.0, %v979
    %v981 = vpop.f32.mrf.mxu0
    %982 = vmatprep.mubr.f32.mxu0 0.0
    %983 = vmatmul.mubr.f32.gmra.mxu0 %v206
    %v984 = vpop.f32.mrf.mxu0
    %v985 = vadd.f32 0.0, %v984
    %v986 = vpop.f32.mrf.mxu0
    %987 = vmatprep.mubr.f32.mxu0 0.0
    %988 = vmatmul.mubr.f32.gmra.mxu0 %v211
    %v989 = vpop.f32.mrf.mxu0
    %v990 = vadd.f32 0.0, %v989
    %v991 = vpop.f32.mrf.mxu0
    %992 = vdwg.mxu0
    %v993 = vadd.f32 %v840, %v935
    %v994 = vadd.f32 %v841, %v940
    %v995 = vadd.f32 %v842, %v945
    %v996 = vadd.f32 %v843, %v950
    %v997 = vadd.f32 %v844, %v955
    %v998 = vadd.f32 %v845, %v960
    %v999 = vadd.f32 %v846, %v965
    %v1000 = vadd.f32 %v847, %v970
    %v1001 = vadd.f32 %v848, %v975
    %v1002 = vadd.f32 %v849, %v980
    %v1003 = vadd.f32 %v850, %v985
    %v1004 = vadd.f32 %v851, %v990
    %v1005 = vld [vmem:[#allocation3 + $0x905] sm:$0x1]
    %v1006 = vlaneseq
    %v1007 = vshrl.u32 %v1006, 7
    %v1008 = vsub.s32 0, %v1007
    %v1009 = vrot.slane %v1005, %v1008
    %v1010 = vadd.f32 %v993, %v1009
    %v1011 = vadd.f32 %v994, %v1009
    %v1012 = vadd.f32 %v995, %v1009
    %v1013 = vadd.f32 %v996, %v1009
    %v1014 = vadd.f32 %v997, %v1009
    %v1015 = vadd.f32 %v998, %v1009
    %v1016 = vadd.f32 %v999, %v1009
    %v1017 = vadd.f32 %v1000, %v1009
    %v1018 = vadd.f32 %v1001, %v1009
    %v1019 = vadd.f32 %v1002, %v1009
    %v1020 = vadd.f32 %v1003, %v1009
    %v1021 = vadd.f32 %v1004, %v1009
    %v1022 = vmax.f32 %v1010, 0.0
    %v1023 = vmax.f32 %v1011, 0.0
    %v1024 = vmax.f32 %v1012, 0.0
    %v1025 = vmax.f32 %v1013, 0.0
    %v1026 = vmax.f32 %v1014, 0.0
    %v1027 = vmax.f32 %v1015, 0.0
    %v1028 = vmax.f32 %v1016, 0.0
    %v1029 = vmax.f32 %v1017, 0.0
    %v1030 = vmax.f32 %v1018, 0.0
    %v1031 = vmax.f32 %v1019, 0.0
    %v1032 = vmax.f32 %v1020, 0.0
    %v1033 = vmax.f32 %v1021, 0.0
    %v1034 = vadd.f32 %v1022, %v156
    %v1035 = vadd.f32 %v1023, %v161
    %v1036 = vadd.f32 %v1024, %v166
    %v1037 = vadd.f32 %v1025, %v171
    %v1038 = vadd.f32 %v1026, %v176
    %v1039 = vadd.f32 %v1027, %v181
    %v1040 = vadd.f32 %v1028, %v186
    %v1041 = vadd.f32 %v1029, %v191
    %v1042 = vadd.f32 %v1030, %v196
    %v1043 = vadd.f32 %v1031, %v201
    %v1044 = vadd.f32 %v1032, %v206
    %v1045 = vadd.f32 %v1033, %v211
    %1046 = vst [vmem:[#allocation2 + $0x10] sm:$0xff] %v1034
    %1047 = vst [vmem:[#allocation2 + $0x18] sm:$0xff] %v1035
    %1048 = vst [vmem:[#allocation2 + $0x20] sm:$0xff] %v1036
    %1049 = vst [vmem:[#allocation2 + $0x28] sm:$0xff] %v1037
    %1050 = vst [vmem:[#allocation2 + $0x30] sm:$0xff] %v1038
    %1051 = vst [vmem:[#allocation2 + $0x38] sm:$0xff] %v1039
    %1052 = vst [vmem:[#allocation2 + $0x50] sm:$0xff] %v1040
    %1053 = vst [vmem:[#allocation2 + $0x58] sm:$0xff] %v1041
    %1054 = vst [vmem:[#allocation2 + $0x60] sm:$0xff] %v1042
    %1055 = vst [vmem:[#allocation2 + $0x68] sm:$0xff] %v1043
    %1056 = vst [vmem:[#allocation2 + $0x70] sm:$0xff] %v1044
    %1057 = vst [vmem:[#allocation2 + $0x78] sm:$0xff] %v1045
    %v1058 = vld [vmem:[#allocation3 + $0x285] sm:$0xff]
    %v1059 = vld [vmem:[#allocation3 + $0x28d] sm:$0xff]
    %v1060 = vld [vmem:[#allocation3 + $0x295] sm:$0xff]
    %v1061 = vld [vmem:[#allocation3 + $0x29d] sm:$0xff]
    %v1062 = vld [vmem:[#allocation3 + $0x2a5] sm:$0xff]
    %v1063 = vld [vmem:[#allocation3 + $0x2ad] sm:$0xff]
    %v1064 = vld [vmem:[#allocation3 + $0x2b5] sm:$0xff]
    %v1065 = vld [vmem:[#allocation3 + $0x2bd] sm:$0xff]
    %v1066 = vld [vmem:[#allocation3 + $0x2c5] sm:$0xff]
    %v1067 = vld [vmem:[#allocation3 + $0x2cd] sm:$0xff]
    %v1068 = vld [vmem:[#allocation3 + $0x2d5] sm:$0xff]
    %v1069 = vld [vmem:[#allocation3 + $0x2dd] sm:$0xff]
    %v1070 = vld [vmem:[#allocation3 + $0x2e5] sm:$0xff]
    %v1071 = vld [vmem:[#allocation3 + $0x2ed] sm:$0xff]
    %v1072 = vld [vmem:[#allocation3 + $0x2f5] sm:$0xff]
    %v1073 = vld [vmem:[#allocation3 + $0x2fd] sm:$0xff]
    %v1074 = vld [vmem:[#allocation2 + $0x8] sm:$0xff]
    %v1075 = vld [vmem:[#allocation2 + $0x10] sm:$0xff]
    %v1076 = vld [vmem:[#allocation2 + $0x18] sm:$0xff]
    %v1077 = vld [vmem:[#allocation2 + $0x20] sm:$0xff]
    %v1078 = vld [vmem:[#allocation2 + $0x28] sm:$0xff]
    %v1079 = vld [vmem:[#allocation2 + $0x30] sm:$0xff]
    %v1080 = vld [vmem:[#allocation2 + $0x48] sm:$0xff]
    %v1081 = vld [vmem:[#allocation2 + $0x50] sm:$0xff]
    %v1082 = vld [vmem:[#allocation2 + $0x58] sm:$0xff]
    %v1083 = vld [vmem:[#allocation2 + $0x60] sm:$0xff]
    %v1084 = vld [vmem:[#allocation2 + $0x68] sm:$0xff]
    %v1085 = vld [vmem:[#allocation2 + $0x70] sm:$0xff]
    %v1086 = vld [vmem:[#allocation3 + $0x305] sm:$0xff]
    %v1087 = vld [vmem:[#allocation3 + $0x30d] sm:$0xff]
    %v1088 = vld [vmem:[#allocation3 + $0x315] sm:$0xff]
    %v1089 = vld [vmem:[#allocation3 + $0x31d] sm:$0xff]
    %v1090 = vld [vmem:[#allocation3 + $0x325] sm:$0xff]
    %v1091 = vld [vmem:[#allocation3 + $0x32d] sm:$0xff]
    %v1092 = vld [vmem:[#allocation3 + $0x335] sm:$0xff]
    %v1093 = vld [vmem:[#allocation3 + $0x33d] sm:$0xff]
    %v1094 = vld [vmem:[#allocation3 + $0x345] sm:$0xff]
    %v1095 = vld [vmem:[#allocation3 + $0x34d] sm:$0xff]
    %v1096 = vld [vmem:[#allocation3 + $0x355] sm:$0xff]
    %v1097 = vld [vmem:[#allocation3 + $0x35d] sm:$0xff]
    %v1098 = vld [vmem:[#allocation3 + $0x365] sm:$0xff]
    %v1099 = vld [vmem:[#allocation3 + $0x36d] sm:$0xff]
    %v1100 = vld [vmem:[#allocation3 + $0x375] sm:$0xff]
    %v1101 = vld [vmem:[#allocation3 + $0x37d] sm:$0xff]
    %v1102 = vld [vmem:[#allocation2 + $0xc] sm:$0xff]
    %v1103 = vld [vmem:[#allocation2 + $0x14] sm:$0xff]
    %v1104 = vld [vmem:[#allocation2 + $0x1c] sm:$0xff]
    %v1105 = vld [vmem:[#allocation2 + $0x24] sm:$0xff]
    %v1106 = vld [vmem:[#allocation2 + $0x2c] sm:$0xff]
    %v1107 = vld [vmem:[#allocation2 + $0x34] sm:$0xff]
    %v1108 = vld [vmem:[#allocation2 + $0x4c] sm:$0xff]
    %v1109 = vld [vmem:[#allocation2 + $0x54] sm:$0xff]
    %v1110 = vld [vmem:[#allocation2 + $0x5c] sm:$0xff]
    %v1111 = vld [vmem:[#allocation2 + $0x64] sm:$0xff]
    %v1112 = vld [vmem:[#allocation2 + $0x6c] sm:$0xff]
    %v1113 = vld [vmem:[#allocation2 + $0x74] sm:$0xff]
    %1114 = vmatprep.subr.mxu0 0.0
    %1115 = vmatpush1.msra.mxu0 %v1101
    %1116 = vmatprep.subr.mxu0 0.0
    %1117 = vmatpush1.msra.mxu0 %v1100
    %1118 = vmatprep.subr.mxu0 0.0
    %1119 = vmatpush1.msra.mxu0 %v1099
    %1120 = vmatprep.subr.mxu0 0.0
    %1121 = vmatpush1.msra.mxu0 %v1098
    %1122 = vmatprep.subr.mxu0 0.0
    %1123 = vmatpush1.msra.mxu0 %v1097
    %1124 = vmatprep.subr.mxu0 0.0
    %1125 = vmatpush1.msra.mxu0 %v1096
    %1126 = vmatprep.subr.mxu0 0.0
    %1127 = vmatpush1.msra.mxu0 %v1095
    %1128 = vmatprep.subr.mxu0 0.0
    %1129 = vmatpush1.msra.mxu0 %v1094
    %1130 = vmatprep.subr.mxu0 0.0
    %1131 = vmatpush1.msra.mxu0 %v1093
    %1132 = vmatprep.subr.mxu0 0.0
    %1133 = vmatpush1.msra.mxu0 %v1092
    %1134 = vmatprep.subr.mxu0 0.0
    %1135 = vmatpush1.msra.mxu0 %v1091
    %1136 = vmatprep.subr.mxu0 0.0
    %1137 = vmatpush1.msra.mxu0 %v1090
    %1138 = vmatprep.subr.mxu0 0.0
    %1139 = vmatpush1.msra.mxu0 %v1089
    %1140 = vmatprep.subr.mxu0 0.0
    %1141 = vmatpush1.msra.mxu0 %v1088
    %1142 = vmatprep.subr.mxu0 0.0
    %1143 = vmatpush1.msra.mxu0 %v1087
    %1144 = vmatprep.subr.mxu0 0.0
    %1145 = vmatpush1.msra.mxu0 %v1086
    %1146 = vmatprep.subr.mxu0 0.0
    %1147 = vmatpush2.msra.mxu0 0.0
    %1148 = vmatprep.subr.mxu0 0.0
    %1149 = vmatpush2.msra.mxu0 0.0
    %1150 = vmatprep.subr.mxu0 0.0
    %1151 = vmatpush2.msra.mxu0 0.0
    %1152 = vmatprep.subr.mxu0 0.0
    %1153 = vmatpush2.msra.mxu0 0.0
    %1154 = vmatprep.subr.mxu0 0.0
    %1155 = vmatpush2.msra.mxu0 0.0
    %1156 = vmatprep.subr.mxu0 0.0
    %1157 = vmatpush2.msra.mxu0 0.0
    %1158 = vmatprep.subr.mxu0 0.0
    %1159 = vmatpush2.msra.mxu0 0.0
    %1160 = vmatprep.subr.mxu0 0.0
    %1161 = vmatpush2.msra.mxu0 0.0
    %1162 = vmatprep.subr.mxu0 0.0
    %1163 = vmatpush2.msra.mxu0 0.0
    %1164 = vmatprep.subr.mxu0 0.0
    %1165 = vmatpush2.msra.mxu0 0.0
    %1166 = vmatprep.subr.mxu0 0.0
    %1167 = vmatpush2.msra.mxu0 0.0
    %1168 = vmatprep.subr.mxu0 0.0
    %1169 = vmatpush2.msra.mxu0 0.0
    %1170 = vmatprep.subr.mxu0 0.0
    %1171 = vmatpush2.msra.mxu0 0.0
    %1172 = vmatprep.subr.mxu0 0.0
    %1173 = vmatpush2.msra.mxu0 0.0
    %1174 = vmatprep.subr.mxu0 0.0
    %1175 = vmatpush2.msra.mxu0 0.0
    %1176 = vmatprep.subr.mxu0 0.0
    %1177 = vmatpush2.msra.mxu0 0.0
    %1178 = vmatprep.mubr.f32.mxu0 0.0
    %1179 = vmatmul.mubr.f32.gmra.mxu0 %v1102
    %v1180 = vpop.f32.mrf.mxu0
    %v1181 = vadd.f32 0.0, %v1180
    %v1182 = vpop.f32.mrf.mxu0
    %1183 = vmatprep.mubr.f32.mxu0 0.0
    %1184 = vmatmul.mubr.f32.gmra.mxu0 %v1103
    %v1185 = vpop.f32.mrf.mxu0
    %v1186 = vadd.f32 0.0, %v1185
    %v1187 = vpop.f32.mrf.mxu0
    %1188 = vmatprep.mubr.f32.mxu0 0.0
    %1189 = vmatmul.mubr.f32.gmra.mxu0 %v1104
    %v1190 = vpop.f32.mrf.mxu0
    %v1191 = vadd.f32 0.0, %v1190
    %v1192 = vpop.f32.mrf.mxu0
    %1193 = vmatprep.mubr.f32.mxu0 0.0
    %1194 = vmatmul.mubr.f32.gmra.mxu0 %v1105
    %v1195 = vpop.f32.mrf.mxu0
    %v1196 = vadd.f32 0.0, %v1195
    %v1197 = vpop.f32.mrf.mxu0
    %1198 = vmatprep.mubr.f32.mxu0 0.0
    %1199 = vmatmul.mubr.f32.gmra.mxu0 %v1106
    %v1200 = vpop.f32.mrf.mxu0
    %v1201 = vadd.f32 0.0, %v1200
    %v1202 = vpop.f32.mrf.mxu0
    %1203 = vmatprep.mubr.f32.mxu0 0.0
    %1204 = vmatmul.mubr.f32.gmra.mxu0 %v1107
    %v1205 = vpop.f32.mrf.mxu0
    %v1206 = vadd.f32 0.0, %v1205
    %v1207 = vpop.f32.mrf.mxu0
    %1208 = vmatprep.mubr.f32.mxu0 0.0
    %1209 = vmatmul.mubr.f32.gmra.mxu0 %v1108
    %v1210 = vpop.f32.mrf.mxu0
    %v1211 = vadd.f32 0.0, %v1210
    %v1212 = vpop.f32.mrf.mxu0
    %1213 = vmatprep.mubr.f32.mxu0 0.0
    %1214 = vmatmul.mubr.f32.gmra.mxu0 %v1109
    %v1215 = vpop.f32.mrf.mxu0
    %v1216 = vadd.f32 0.0, %v1215
    %v1217 = vpop.f32.mrf.mxu0
    %1218 = vmatprep.mubr.f32.mxu0 0.0
    %1219 = vmatmul.mubr.f32.gmra.mxu0 %v1110
    %v1220 = vpop.f32.mrf.mxu0
    %v1221 = vadd.f32 0.0, %v1220
    %v1222 = vpop.f32.mrf.mxu0
    %1223 = vmatprep.mubr.f32.mxu0 0.0
    %1224 = vmatmul.mubr.f32.gmra.mxu0 %v1111
    %v1225 = vpop.f32.mrf.mxu0
    %v1226 = vadd.f32 0.0, %v1225
    %v1227 = vpop.f32.mrf.mxu0
    %1228 = vmatprep.mubr.f32.mxu0 0.0
    %1229 = vmatmul.mubr.f32.gmra.mxu0 %v1112
    %v1230 = vpop.f32.mrf.mxu0
    %v1231 = vadd.f32 0.0, %v1230
    %v1232 = vpop.f32.mrf.mxu0
    %1233 = vmatprep.mubr.f32.mxu0 0.0
    %1234 = vmatmul.mubr.f32.gmra.mxu0 %v1113
    %v1235 = vpop.f32.mrf.mxu0
    %v1236 = vadd.f32 0.0, %v1235
    %v1237 = vpop.f32.mrf.mxu0
    %1238 = vdwg.mxu0
    %1239 = vmatprep.subr.mxu0 0.0
    %1240 = vmatpush1.msra.mxu0 %v1073
    %1241 = vmatprep.subr.mxu0 0.0
    %1242 = vmatpush1.msra.mxu0 %v1072
    %1243 = vmatprep.subr.mxu0 0.0
    %1244 = vmatpush1.msra.mxu0 %v1071
    %1245 = vmatprep.subr.mxu0 0.0
    %1246 = vmatpush1.msra.mxu0 %v1070
    %1247 = vmatprep.subr.mxu0 0.0
    %1248 = vmatpush1.msra.mxu0 %v1069
    %1249 = vmatprep.subr.mxu0 0.0
    %1250 = vmatpush1.msra.mxu0 %v1068
    %1251 = vmatprep.subr.mxu0 0.0
    %1252 = vmatpush1.msra.mxu0 %v1067
    %1253 = vmatprep.subr.mxu0 0.0
    %1254 = vmatpush1.msra.mxu0 %v1066
    %1255 = vmatprep.subr.mxu0 0.0
    %1256 = vmatpush1.msra.mxu0 %v1065
    %1257 = vmatprep.subr.mxu0 0.0
    %1258 = vmatpush1.msra.mxu0 %v1064
    %1259 = vmatprep.subr.mxu0 0.0
    %1260 = vmatpush1.msra.mxu0 %v1063
    %1261 = vmatprep.subr.mxu0 0.0
    %1262 = vmatpush1.msra.mxu0 %v1062
    %1263 = vmatprep.subr.mxu0 0.0
    %1264 = vmatpush1.msra.mxu0 %v1061
    %1265 = vmatprep.subr.mxu0 0.0
    %1266 = vmatpush1.msra.mxu0 %v1060
    %1267 = vmatprep.subr.mxu0 0.0
    %1268 = vmatpush1.msra.mxu0 %v1059
    %1269 = vmatprep.subr.mxu0 0.0
    %1270 = vmatpush1.msra.mxu0 %v1058
    %1271 = vmatprep.subr.mxu0 0.0
    %1272 = vmatpush2.msra.mxu0 0.0
    %1273 = vmatprep.subr.mxu0 0.0
    %1274 = vmatpush2.msra.mxu0 0.0
    %1275 = vmatprep.subr.mxu0 0.0
    %1276 = vmatpush2.msra.mxu0 0.0
    %1277 = vmatprep.subr.mxu0 0.0
    %1278 = vmatpush2.msra.mxu0 0.0
    %1279 = vmatprep.subr.mxu0 0.0
    %1280 = vmatpush2.msra.mxu0 0.0
    %1281 = vmatprep.subr.mxu0 0.0
    %1282 = vmatpush2.msra.mxu0 0.0
    %1283 = vmatprep.subr.mxu0 0.0
    %1284 = vmatpush2.msra.mxu0 0.0
    %1285 = vmatprep.subr.mxu0 0.0
    %1286 = vmatpush2.msra.mxu0 0.0
    %1287 = vmatprep.subr.mxu0 0.0
    %1288 = vmatpush2.msra.mxu0 0.0
    %1289 = vmatprep.subr.mxu0 0.0
    %1290 = vmatpush2.msra.mxu0 0.0
    %1291 = vmatprep.subr.mxu0 0.0
    %1292 = vmatpush2.msra.mxu0 0.0
    %1293 = vmatprep.subr.mxu0 0.0
    %1294 = vmatpush2.msra.mxu0 0.0
    %1295 = vmatprep.subr.mxu0 0.0
    %1296 = vmatpush2.msra.mxu0 0.0
    %1297 = vmatprep.subr.mxu0 0.0
    %1298 = vmatpush2.msra.mxu0 0.0
    %1299 = vmatprep.subr.mxu0 0.0
    %1300 = vmatpush2.msra.mxu0 0.0
    %1301 = vmatprep.subr.mxu0 0.0
    %1302 = vmatpush2.msra.mxu0 0.0
    %1303 = vmatprep.mubr.f32.mxu0 0.0
    %1304 = vmatmul.mubr.f32.gmra.mxu0 %v1074
    %v1305 = vpop.f32.mrf.mxu0
    %v1306 = vadd.f32 %v1181, %v1305
    %v1307 = vpop.f32.mrf.mxu0
    %1308 = vmatprep.mubr.f32.mxu0 0.0
    %1309 = vmatmul.mubr.f32.gmra.mxu0 %v1075
    %v1310 = vpop.f32.mrf.mxu0
    %v1311 = vadd.f32 %v1186, %v1310
    %v1312 = vpop.f32.mrf.mxu0
    %1313 = vmatprep.mubr.f32.mxu0 0.0
    %1314 = vmatmul.mubr.f32.gmra.mxu0 %v1076
    %v1315 = vpop.f32.mrf.mxu0
    %v1316 = vadd.f32 %v1191, %v1315
    %v1317 = vpop.f32.mrf.mxu0
    %1318 = vmatprep.mubr.f32.mxu0 0.0
    %1319 = vmatmul.mubr.f32.gmra.mxu0 %v1077
    %v1320 = vpop.f32.mrf.mxu0
    %v1321 = vadd.f32 %v1196, %v1320
    %v1322 = vpop.f32.mrf.mxu0
    %1323 = vmatprep.mubr.f32.mxu0 0.0
    %1324 = vmatmul.mubr.f32.gmra.mxu0 %v1078
    %v1325 = vpop.f32.mrf.mxu0
    %v1326 = vadd.f32 %v1201, %v1325
    %v1327 = vpop.f32.mrf.mxu0
    %1328 = vmatprep.mubr.f32.mxu0 0.0
    %1329 = vmatmul.mubr.f32.gmra.mxu0 %v1079
    %v1330 = vpop.f32.mrf.mxu0
    %v1331 = vadd.f32 %v1206, %v1330
    %v1332 = vpop.f32.mrf.mxu0
    %1333 = vmatprep.mubr.f32.mxu0 0.0
    %1334 = vmatmul.mubr.f32.gmra.mxu0 %v1080
    %v1335 = vpop.f32.mrf.mxu0
    %v1336 = vadd.f32 %v1211, %v1335
    %v1337 = vpop.f32.mrf.mxu0
    %1338 = vmatprep.mubr.f32.mxu0 0.0
    %1339 = vmatmul.mubr.f32.gmra.mxu0 %v1081
    %v1340 = vpop.f32.mrf.mxu0
    %v1341 = vadd.f32 %v1216, %v1340
    %v1342 = vpop.f32.mrf.mxu0
    %1343 = vmatprep.mubr.f32.mxu0 0.0
    %1344 = vmatmul.mubr.f32.gmra.mxu0 %v1082
    %v1345 = vpop.f32.mrf.mxu0
    %v1346 = vadd.f32 %v1221, %v1345
    %v1347 = vpop.f32.mrf.mxu0
    %1348 = vmatprep.mubr.f32.mxu0 0.0
    %1349 = vmatmul.mubr.f32.gmra.mxu0 %v1083
    %v1350 = vpop.f32.mrf.mxu0
    %v1351 = vadd.f32 %v1226, %v1350
    %v1352 = vpop.f32.mrf.mxu0
    %1353 = vmatprep.mubr.f32.mxu0 0.0
    %1354 = vmatmul.mubr.f32.gmra.mxu0 %v1084
    %v1355 = vpop.f32.mrf.mxu0
    %v1356 = vadd.f32 %v1231, %v1355
    %v1357 = vpop.f32.mrf.mxu0
    %1358 = vmatprep.mubr.f32.mxu0 0.0
    %1359 = vmatmul.mubr.f32.gmra.mxu0 %v1085
    %v1360 = vpop.f32.mrf.mxu0
    %v1361 = vadd.f32 %v1236, %v1360
    %v1362 = vpop.f32.mrf.mxu0
    %1363 = vdwg.mxu0
    %v1364 = vld [vmem:[#allocation3 + $0x385] sm:$0xff]
    %v1365 = vld [vmem:[#allocation3 + $0x38d] sm:$0xff]
    %v1366 = vld [vmem:[#allocation3 + $0x395] sm:$0xff]
    %v1367 = vld [vmem:[#allocation3 + $0x39d] sm:$0xff]
    %v1368 = vld [vmem:[#allocation3 + $0x3a5] sm:$0xff]
    %v1369 = vld [vmem:[#allocation3 + $0x3ad] sm:$0xff]
    %v1370 = vld [vmem:[#allocation3 + $0x3b5] sm:$0xff]
    %v1371 = vld [vmem:[#allocation3 + $0x3bd] sm:$0xff]
    %v1372 = vld [vmem:[#allocation3 + $0x3c5] sm:$0xff]
    %v1373 = vld [vmem:[#allocation3 + $0x3cd] sm:$0xff]
    %v1374 = vld [vmem:[#allocation3 + $0x3d5] sm:$0xff]
    %v1375 = vld [vmem:[#allocation3 + $0x3dd] sm:$0xff]
    %v1376 = vld [vmem:[#allocation3 + $0x3e5] sm:$0xff]
    %v1377 = vld [vmem:[#allocation3 + $0x3ed] sm:$0xff]
    %v1378 = vld [vmem:[#allocation3 + $0x3f5] sm:$0xff]
    %v1379 = vld [vmem:[#allocation3 + $0x3fd] sm:$0xff]
    %v1380 = vld [vmem:[#allocation2 + $0xe] sm:$0xff]
    %v1381 = vld [vmem:[#allocation2 + $0x16] sm:$0xff]
    %v1382 = vld [vmem:[#allocation2 + $0x1e] sm:$0xff]
    %v1383 = vld [vmem:[#allocation2 + $0x26] sm:$0xff]
    %v1384 = vld [vmem:[#allocation2 + $0x2e] sm:$0xff]
    %v1385 = vld [vmem:[#allocation2 + $0x36] sm:$0xff]
    %v1386 = vld [vmem:[#allocation2 + $0x4e] sm:$0xff]
    %v1387 = vld [vmem:[#allocation2 + $0x56] sm:$0xff]
    %v1388 = vld [vmem:[#allocation2 + $0x5e] sm:$0xff]
    %v1389 = vld [vmem:[#allocation2 + $0x66] sm:$0xff]
    %v1390 = vld [vmem:[#allocation2 + $0x6e] sm:$0xff]
    %v1391 = vld [vmem:[#allocation2 + $0x76] sm:$0xff]
    %1392 = vmatprep.subr.mxu0 0.0
    %1393 = vmatpush1.msra.mxu0 %v1379
    %1394 = vmatprep.subr.mxu0 0.0
    %1395 = vmatpush1.msra.mxu0 %v1378
    %1396 = vmatprep.subr.mxu0 0.0
    %1397 = vmatpush1.msra.mxu0 %v1377
    %1398 = vmatprep.subr.mxu0 0.0
    %1399 = vmatpush1.msra.mxu0 %v1376
    %1400 = vmatprep.subr.mxu0 0.0
    %1401 = vmatpush1.msra.mxu0 %v1375
    %1402 = vmatprep.subr.mxu0 0.0
    %1403 = vmatpush1.msra.mxu0 %v1374
    %1404 = vmatprep.subr.mxu0 0.0
    %1405 = vmatpush1.msra.mxu0 %v1373
    %1406 = vmatprep.subr.mxu0 0.0
    %1407 = vmatpush1.msra.mxu0 %v1372
    %1408 = vmatprep.subr.mxu0 0.0
    %1409 = vmatpush1.msra.mxu0 %v1371
    %1410 = vmatprep.subr.mxu0 0.0
    %1411 = vmatpush1.msra.mxu0 %v1370
    %1412 = vmatprep.subr.mxu0 0.0
    %1413 = vmatpush1.msra.mxu0 %v1369
    %1414 = vmatprep.subr.mxu0 0.0
    %1415 = vmatpush1.msra.mxu0 %v1368
    %1416 = vmatprep.subr.mxu0 0.0
    %1417 = vmatpush1.msra.mxu0 %v1367
    %1418 = vmatprep.subr.mxu0 0.0
    %1419 = vmatpush1.msra.mxu0 %v1366
    %1420 = vmatprep.subr.mxu0 0.0
    %1421 = vmatpush1.msra.mxu0 %v1365
    %1422 = vmatprep.subr.mxu0 0.0
    %1423 = vmatpush1.msra.mxu0 %v1364
    %1424 = vmatprep.subr.mxu0 0.0
    %1425 = vmatpush2.msra.mxu0 0.0
    %1426 = vmatprep.subr.mxu0 0.0
    %1427 = vmatpush2.msra.mxu0 0.0
    %1428 = vmatprep.subr.mxu0 0.0
    %1429 = vmatpush2.msra.mxu0 0.0
    %1430 = vmatprep.subr.mxu0 0.0
    %1431 = vmatpush2.msra.mxu0 0.0
    %1432 = vmatprep.subr.mxu0 0.0
    %1433 = vmatpush2.msra.mxu0 0.0
    %1434 = vmatprep.subr.mxu0 0.0
    %1435 = vmatpush2.msra.mxu0 0.0
    %1436 = vmatprep.subr.mxu0 0.0
    %1437 = vmatpush2.msra.mxu0 0.0
    %1438 = vmatprep.subr.mxu0 0.0
    %1439 = vmatpush2.msra.mxu0 0.0
    %1440 = vmatprep.subr.mxu0 0.0
    %1441 = vmatpush2.msra.mxu0 0.0
    %1442 = vmatprep.subr.mxu0 0.0
    %1443 = vmatpush2.msra.mxu0 0.0
    %1444 = vmatprep.subr.mxu0 0.0
    %1445 = vmatpush2.msra.mxu0 0.0
    %1446 = vmatprep.subr.mxu0 0.0
    %1447 = vmatpush2.msra.mxu0 0.0
    %1448 = vmatprep.subr.mxu0 0.0
    %1449 = vmatpush2.msra.mxu0 0.0
    %1450 = vmatprep.subr.mxu0 0.0
    %1451 = vmatpush2.msra.mxu0 0.0
    %1452 = vmatprep.subr.mxu0 0.0
    %1453 = vmatpush2.msra.mxu0 0.0
    %1454 = vmatprep.subr.mxu0 0.0
    %1455 = vmatpush2.msra.mxu0 0.0
    %1456 = vmatprep.mubr.f32.mxu0 0.0
    %1457 = vmatmul.mubr.f32.gmra.mxu0 %v1380
    %v1458 = vpop.f32.mrf.mxu0
    %v1459 = vadd.f32 0.0, %v1458
    %v1460 = vpop.f32.mrf.mxu0
    %1461 = vmatprep.mubr.f32.mxu0 0.0
    %1462 = vmatmul.mubr.f32.gmra.mxu0 %v1381
    %v1463 = vpop.f32.mrf.mxu0
    %v1464 = vadd.f32 0.0, %v1463
    %v1465 = vpop.f32.mrf.mxu0
    %1466 = vmatprep.mubr.f32.mxu0 0.0
    %1467 = vmatmul.mubr.f32.gmra.mxu0 %v1382
    %v1468 = vpop.f32.mrf.mxu0
    %v1469 = vadd.f32 0.0, %v1468
    %v1470 = vpop.f32.mrf.mxu0
    %1471 = vmatprep.mubr.f32.mxu0 0.0
    %1472 = vmatmul.mubr.f32.gmra.mxu0 %v1383
    %v1473 = vpop.f32.mrf.mxu0
    %v1474 = vadd.f32 0.0, %v1473
    %v1475 = vpop.f32.mrf.mxu0
    %1476 = vmatprep.mubr.f32.mxu0 0.0
    %1477 = vmatmul.mubr.f32.gmra.mxu0 %v1384
    %v1478 = vpop.f32.mrf.mxu0
    %v1479 = vadd.f32 0.0, %v1478
    %v1480 = vpop.f32.mrf.mxu0
    %1481 = vmatprep.mubr.f32.mxu0 0.0
    %1482 = vmatmul.mubr.f32.gmra.mxu0 %v1385
    %v1483 = vpop.f32.mrf.mxu0
    %v1484 = vadd.f32 0.0, %v1483
    %v1485 = vpop.f32.mrf.mxu0
    %1486 = vmatprep.mubr.f32.mxu0 0.0
    %1487 = vmatmul.mubr.f32.gmra.mxu0 %v1386
    %v1488 = vpop.f32.mrf.mxu0
    %v1489 = vadd.f32 0.0, %v1488
    %v1490 = vpop.f32.mrf.mxu0
    %1491 = vmatprep.mubr.f32.mxu0 0.0
    %1492 = vmatmul.mubr.f32.gmra.mxu0 %v1387
    %v1493 = vpop.f32.mrf.mxu0
    %v1494 = vadd.f32 0.0, %v1493
    %v1495 = vpop.f32.mrf.mxu0
    %1496 = vmatprep.mubr.f32.mxu0 0.0
    %1497 = vmatmul.mubr.f32.gmra.mxu0 %v1388
    %v1498 = vpop.f32.mrf.mxu0
    %v1499 = vadd.f32 0.0, %v1498
    %v1500 = vpop.f32.mrf.mxu0
    %1501 = vmatprep.mubr.f32.mxu0 0.0
    %1502 = vmatmul.mubr.f32.gmra.mxu0 %v1389
    %v1503 = vpop.f32.mrf.mxu0
    %v1504 = vadd.f32 0.0, %v1503
    %v1505 = vpop.f32.mrf.mxu0
    %1506 = vmatprep.mubr.f32.mxu0 0.0
    %1507 = vmatmul.mubr.f32.gmra.mxu0 %v1390
    %v1508 = vpop.f32.mrf.mxu0
    %v1509 = vadd.f32 0.0, %v1508
    %v1510 = vpop.f32.mrf.mxu0
    %1511 = vmatprep.mubr.f32.mxu0 0.0
    %1512 = vmatmul.mubr.f32.gmra.mxu0 %v1391
    %v1513 = vpop.f32.mrf.mxu0
    %v1514 = vadd.f32 0.0, %v1513
    %v1515 = vpop.f32.mrf.mxu0
    %1516 = vdwg.mxu0
    %v1517 = vadd.f32 %v1306, %v1459
    %v1518 = vadd.f32 %v1311, %v1464
    %v1519 = vadd.f32 %v1316, %v1469
    %v1520 = vadd.f32 %v1321, %v1474
    %v1521 = vadd.f32 %v1326, %v1479
    %v1522 = vadd.f32 %v1331, %v1484
    %v1523 = vadd.f32 %v1336, %v1489
    %v1524 = vadd.f32 %v1341, %v1494
    %v1525 = vadd.f32 %v1346, %v1499
    %v1526 = vadd.f32 %v1351, %v1504
    %v1527 = vadd.f32 %v1356, %v1509
    %v1528 = vadd.f32 %v1361, %v1514
    %v1529 = vld [vmem:[#allocation3 + $0x405] sm:$0xff]
    %v1530 = vld [vmem:[#allocation3 + $0x40d] sm:$0xff]
    %v1531 = vld [vmem:[#allocation3 + $0x415] sm:$0xff]
    %v1532 = vld [vmem:[#allocation3 + $0x41d] sm:$0xff]
    %v1533 = vld [vmem:[#allocation3 + $0x425] sm:$0xff]
    %v1534 = vld [vmem:[#allocation3 + $0x42d] sm:$0xff]
    %v1535 = vld [vmem:[#allocation3 + $0x435] sm:$0xff]
    %v1536 = vld [vmem:[#allocation3 + $0x43d] sm:$0xff]
    %v1537 = vld [vmem:[#allocation3 + $0x445] sm:$0xff]
    %v1538 = vld [vmem:[#allocation3 + $0x44d] sm:$0xff]
    %v1539 = vld [vmem:[#allocation3 + $0x455] sm:$0xff]
    %v1540 = vld [vmem:[#allocation3 + $0x45d] sm:$0xff]
    %v1541 = vld [vmem:[#allocation3 + $0x465] sm:$0xff]
    %v1542 = vld [vmem:[#allocation3 + $0x46d] sm:$0xff]
    %v1543 = vld [vmem:[#allocation3 + $0x475] sm:$0xff]
    %v1544 = vld [vmem:[#allocation3 + $0x47d] sm:$0xff]
    %1545 = vmatprep.subr.mxu0 0.0
    %1546 = vmatpush1.msra.mxu0 %v1544
    %1547 = vmatprep.subr.mxu0 0.0
    %1548 = vmatpush1.msra.mxu0 %v1543
    %1549 = vmatprep.subr.mxu0 0.0
    %1550 = vmatpush1.msra.mxu0 %v1542
    %1551 = vmatprep.subr.mxu0 0.0
    %1552 = vmatpush1.msra.mxu0 %v1541
    %1553 = vmatprep.subr.mxu0 0.0
    %1554 = vmatpush1.msra.mxu0 %v1540
    %1555 = vmatprep.subr.mxu0 0.0
    %1556 = vmatpush1.msra.mxu0 %v1539
    %1557 = vmatprep.subr.mxu0 0.0
    %1558 = vmatpush1.msra.mxu0 %v1538
    %1559 = vmatprep.subr.mxu0 0.0
    %1560 = vmatpush1.msra.mxu0 %v1537
    %1561 = vmatprep.subr.mxu0 0.0
    %1562 = vmatpush1.msra.mxu0 %v1536
    %1563 = vmatprep.subr.mxu0 0.0
    %1564 = vmatpush1.msra.mxu0 %v1535
    %1565 = vmatprep.subr.mxu0 0.0
    %1566 = vmatpush1.msra.mxu0 %v1534
    %1567 = vmatprep.subr.mxu0 0.0
    %1568 = vmatpush1.msra.mxu0 %v1533
    %1569 = vmatprep.subr.mxu0 0.0
    %1570 = vmatpush1.msra.mxu0 %v1532
    %1571 = vmatprep.subr.mxu0 0.0
    %1572 = vmatpush1.msra.mxu0 %v1531
    %1573 = vmatprep.subr.mxu0 0.0
    %1574 = vmatpush1.msra.mxu0 %v1530
    %1575 = vmatprep.subr.mxu0 0.0
    %1576 = vmatpush1.msra.mxu0 %v1529
    %1577 = vmatprep.subr.mxu0 0.0
    %1578 = vmatpush2.msra.mxu0 0.0
    %1579 = vmatprep.subr.mxu0 0.0
    %1580 = vmatpush2.msra.mxu0 0.0
    %1581 = vmatprep.subr.mxu0 0.0
    %1582 = vmatpush2.msra.mxu0 0.0
    %1583 = vmatprep.subr.mxu0 0.0
    %1584 = vmatpush2.msra.mxu0 0.0
    %1585 = vmatprep.subr.mxu0 0.0
    %1586 = vmatpush2.msra.mxu0 0.0
    %1587 = vmatprep.subr.mxu0 0.0
    %1588 = vmatpush2.msra.mxu0 0.0
    %1589 = vmatprep.subr.mxu0 0.0
    %1590 = vmatpush2.msra.mxu0 0.0
    %1591 = vmatprep.subr.mxu0 0.0
    %1592 = vmatpush2.msra.mxu0 0.0
    %1593 = vmatprep.subr.mxu0 0.0
    %1594 = vmatpush2.msra.mxu0 0.0
    %1595 = vmatprep.subr.mxu0 0.0
    %1596 = vmatpush2.msra.mxu0 0.0
    %1597 = vmatprep.subr.mxu0 0.0
    %1598 = vmatpush2.msra.mxu0 0.0
    %1599 = vmatprep.subr.mxu0 0.0
    %1600 = vmatpush2.msra.mxu0 0.0
    %1601 = vmatprep.subr.mxu0 0.0
    %1602 = vmatpush2.msra.mxu0 0.0
    %1603 = vmatprep.subr.mxu0 0.0
    %1604 = vmatpush2.msra.mxu0 0.0
    %1605 = vmatprep.subr.mxu0 0.0
    %1606 = vmatpush2.msra.mxu0 0.0
    %1607 = vmatprep.subr.mxu0 0.0
    %1608 = vmatpush2.msra.mxu0 0.0
    %1609 = vmatprep.mubr.f32.mxu0 0.0
    %1610 = vmatmul.mubr.f32.gmra.mxu0 %v1034
    %v1611 = vpop.f32.mrf.mxu0
    %v1612 = vadd.f32 0.0, %v1611
    %v1613 = vpop.f32.mrf.mxu0
    %1614 = vmatprep.mubr.f32.mxu0 0.0
    %1615 = vmatmul.mubr.f32.gmra.mxu0 %v1035
    %v1616 = vpop.f32.mrf.mxu0
    %v1617 = vadd.f32 0.0, %v1616
    %v1618 = vpop.f32.mrf.mxu0
    %1619 = vmatprep.mubr.f32.mxu0 0.0
    %1620 = vmatmul.mubr.f32.gmra.mxu0 %v1036
    %v1621 = vpop.f32.mrf.mxu0
    %v1622 = vadd.f32 0.0, %v1621
    %v1623 = vpop.f32.mrf.mxu0
    %1624 = vmatprep.mubr.f32.mxu0 0.0
    %1625 = vmatmul.mubr.f32.gmra.mxu0 %v1037
    %v1626 = vpop.f32.mrf.mxu0
    %v1627 = vadd.f32 0.0, %v1626
    %v1628 = vpop.f32.mrf.mxu0
    %1629 = vmatprep.mubr.f32.mxu0 0.0
    %1630 = vmatmul.mubr.f32.gmra.mxu0 %v1038
    %v1631 = vpop.f32.mrf.mxu0
    %v1632 = vadd.f32 0.0, %v1631
    %v1633 = vpop.f32.mrf.mxu0
    %1634 = vmatprep.mubr.f32.mxu0 0.0
    %1635 = vmatmul.mubr.f32.gmra.mxu0 %v1039
    %v1636 = vpop.f32.mrf.mxu0
    %v1637 = vadd.f32 0.0, %v1636
    %v1638 = vpop.f32.mrf.mxu0
    %1639 = vmatprep.mubr.f32.mxu0 0.0
    %1640 = vmatmul.mubr.f32.gmra.mxu0 %v1040
    %v1641 = vpop.f32.mrf.mxu0
    %v1642 = vadd.f32 0.0, %v1641
    %v1643 = vpop.f32.mrf.mxu0
    %1644 = vmatprep.mubr.f32.mxu0 0.0
    %1645 = vmatmul.mubr.f32.gmra.mxu0 %v1041
    %v1646 = vpop.f32.mrf.mxu0
    %v1647 = vadd.f32 0.0, %v1646
    %v1648 = vpop.f32.mrf.mxu0
    %1649 = vmatprep.mubr.f32.mxu0 0.0
    %1650 = vmatmul.mubr.f32.gmra.mxu0 %v1042
    %v1651 = vpop.f32.mrf.mxu0
    %v1652 = vadd.f32 0.0, %v1651
    %v1653 = vpop.f32.mrf.mxu0
    %1654 = vmatprep.mubr.f32.mxu0 0.0
    %1655 = vmatmul.mubr.f32.gmra.mxu0 %v1043
    %v1656 = vpop.f32.mrf.mxu0
    %v1657 = vadd.f32 0.0, %v1656
    %v1658 = vpop.f32.mrf.mxu0
    %1659 = vmatprep.mubr.f32.mxu0 0.0
    %1660 = vmatmul.mubr.f32.gmra.mxu0 %v1044
    %v1661 = vpop.f32.mrf.mxu0
    %v1662 = vadd.f32 0.0, %v1661
    %v1663 = vpop.f32.mrf.mxu0
    %1664 = vmatprep.mubr.f32.mxu0 0.0
    %1665 = vmatmul.mubr.f32.gmra.mxu0 %v1045
    %v1666 = vpop.f32.mrf.mxu0
    %v1667 = vadd.f32 0.0, %v1666
    %v1668 = vpop.f32.mrf.mxu0
    %1669 = vdwg.mxu0
    %v1670 = vadd.f32 %v1517, %v1612
    %v1671 = vadd.f32 %v1518, %v1617
    %v1672 = vadd.f32 %v1519, %v1622
    %v1673 = vadd.f32 %v1520, %v1627
    %v1674 = vadd.f32 %v1521, %v1632
    %v1675 = vadd.f32 %v1522, %v1637
    %v1676 = vadd.f32 %v1523, %v1642
    %v1677 = vadd.f32 %v1524, %v1647
    %v1678 = vadd.f32 %v1525, %v1652
    %v1679 = vadd.f32 %v1526, %v1657
    %v1680 = vadd.f32 %v1527, %v1662
    %v1681 = vadd.f32 %v1528, %v1667
    %v1682 = vld [vmem:[#allocation3 + $0x906] sm:$0x1]
    %v1683 = vlaneseq
    %v1684 = vshrl.u32 %v1683, 7
    %v1685 = vsub.s32 0, %v1684
    %v1686 = vrot.slane %v1682, %v1685
    %v1687 = vadd.f32 %v1670, %v1686
    %v1688 = vadd.f32 %v1671, %v1686
    %v1689 = vadd.f32 %v1672, %v1686
    %v1690 = vadd.f32 %v1673, %v1686
    %v1691 = vadd.f32 %v1674, %v1686
    %v1692 = vadd.f32 %v1675, %v1686
    %v1693 = vadd.f32 %v1676, %v1686
    %v1694 = vadd.f32 %v1677, %v1686
    %v1695 = vadd.f32 %v1678, %v1686
    %v1696 = vadd.f32 %v1679, %v1686
    %v1697 = vadd.f32 %v1680, %v1686
    %v1698 = vadd.f32 %v1681, %v1686
    %v1699 = vmax.f32 %v1687, 0.0
    %v1700 = vmax.f32 %v1688, 0.0
    %v1701 = vmax.f32 %v1689, 0.0
    %v1702 = vmax.f32 %v1690, 0.0
    %v1703 = vmax.f32 %v1691, 0.0
    %v1704 = vmax.f32 %v1692, 0.0
    %v1705 = vmax.f32 %v1693, 0.0
    %v1706 = vmax.f32 %v1694, 0.0
    %v1707 = vmax.f32 %v1695, 0.0
    %v1708 = vmax.f32 %v1696, 0.0
    %v1709 = vmax.f32 %v1697, 0.0
    %v1710 = vmax.f32 %v1698, 0.0
    %v1711 = vadd.f32 %v1699, %v1034
    %v1712 = vadd.f32 %v1700, %v1035
    %v1713 = vadd.f32 %v1701, %v1036
    %v1714 = vadd.f32 %v1702, %v1037
    %v1715 = vadd.f32 %v1703, %v1038
    %v1716 = vadd.f32 %v1704, %v1039
    %v1717 = vadd.f32 %v1705, %v1040
    %v1718 = vadd.f32 %v1706, %v1041
    %v1719 = vadd.f32 %v1707, %v1042
    %v1720 = vadd.f32 %v1708, %v1043
    %v1721 = vadd.f32 %v1709, %v1044
    %v1722 = vadd.f32 %v1710, %v1045
    %1723 = vst [vmem:[#allocation2 + $0x10] sm:$0xff] %v1711
    %1724 = vst [vmem:[#allocation2 + $0x18] sm:$0xff] %v1712
    %1725 = vst [vmem:[#allocation2 + $0x20] sm:$0xff] %v1713
    %1726 = vst [vmem:[#allocation2 + $0x28] sm:$0xff] %v1714
    %1727 = vst [vmem:[#allocation2 + $0x30] sm:$0xff] %v1715
    %1728 = vst [vmem:[#allocation2 + $0x38] sm:$0xff] %v1716
    %1729 = vst [vmem:[#allocation2 + $0x50] sm:$0xff] %v1717
    %1730 = vst [vmem:[#allocation2 + $0x58] sm:$0xff] %v1718
    %1731 = vst [vmem:[#allocation2 + $0x60] sm:$0xff] %v1719
    %1732 = vst [vmem:[#allocation2 + $0x68] sm:$0xff] %v1720
    %1733 = vst [vmem:[#allocation2 + $0x70] sm:$0xff] %v1721
    %1734 = vst [vmem:[#allocation2 + $0x78] sm:$0xff] %v1722
    %v1735 = vld [vmem:[#allocation3 + $0x485] sm:$0xff]
    %v1736 = vld [vmem:[#allocation3 + $0x48d] sm:$0xff]
    %v1737 = vld [vmem:[#allocation3 + $0x495] sm:$0xff]
    %v1738 = vld [vmem:[#allocation3 + $0x49d] sm:$0xff]
    %v1739 = vld [vmem:[#allocation3 + $0x4a5] sm:$0xff]
    %v1740 = vld [vmem:[#allocation3 + $0x4ad] sm:$0xff]
    %v1741 = vld [vmem:[#allocation3 + $0x4b5] sm:$0xff]
    %v1742 = vld [vmem:[#allocation3 + $0x4bd] sm:$0xff]
    %v1743 = vld [vmem:[#allocation3 + $0x4c5] sm:$0xff]
    %v1744 = vld [vmem:[#allocation3 + $0x4cd] sm:$0xff]
    %v1745 = vld [vmem:[#allocation3 + $0x4d5] sm:$0xff]
    %v1746 = vld [vmem:[#allocation3 + $0x4dd] sm:$0xff]
    %v1747 = vld [vmem:[#allocation3 + $0x4e5] sm:$0xff]
    %v1748 = vld [vmem:[#allocation3 + $0x4ed] sm:$0xff]
    %v1749 = vld [vmem:[#allocation3 + $0x4f5] sm:$0xff]
    %v1750 = vld [vmem:[#allocation3 + $0x4fd] sm:$0xff]
    %v1751 = vld [vmem:[#allocation2 + $0x8] sm:$0xff]
    %v1752 = vld [vmem:[#allocation2 + $0x10] sm:$0xff]
    %v1753 = vld [vmem:[#allocation2 + $0x18] sm:$0xff]
    %v1754 = vld [vmem:[#allocation2 + $0x20] sm:$0xff]
    %v1755 = vld [vmem:[#allocation2 + $0x28] sm:$0xff]
    %v1756 = vld [vmem:[#allocation2 + $0x30] sm:$0xff]
    %v1757 = vld [vmem:[#allocation2 + $0x48] sm:$0xff]
    %v1758 = vld [vmem:[#allocation2 + $0x50] sm:$0xff]
    %v1759 = vld [vmem:[#allocation2 + $0x58] sm:$0xff]
    %v1760 = vld [vmem:[#allocation2 + $0x60] sm:$0xff]
    %v1761 = vld [vmem:[#allocation2 + $0x68] sm:$0xff]
    %v1762 = vld [vmem:[#allocation2 + $0x70] sm:$0xff]
    %v1763 = vld [vmem:[#allocation3 + $0x505] sm:$0xff]
    %v1764 = vld [vmem:[#allocation3 + $0x50d] sm:$0xff]
    %v1765 = vld [vmem:[#allocation3 + $0x515] sm:$0xff]
    %v1766 = vld [vmem:[#allocation3 + $0x51d] sm:$0xff]
    %v1767 = vld [vmem:[#allocation3 + $0x525] sm:$0xff]
    %v1768 = vld [vmem:[#allocation3 + $0x52d] sm:$0xff]
    %v1769 = vld [vmem:[#allocation3 + $0x535] sm:$0xff]
    %v1770 = vld [vmem:[#allocation3 + $0x53d] sm:$0xff]
    %v1771 = vld [vmem:[#allocation3 + $0x545] sm:$0xff]
    %v1772 = vld [vmem:[#allocation3 + $0x54d] sm:$0xff]
    %v1773 = vld [vmem:[#allocation3 + $0x555] sm:$0xff]
    %v1774 = vld [vmem:[#allocation3 + $0x55d] sm:$0xff]
    %v1775 = vld [vmem:[#allocation3 + $0x565] sm:$0xff]
    %v1776 = vld [vmem:[#allocation3 + $0x56d] sm:$0xff]
    %v1777 = vld [vmem:[#allocation3 + $0x575] sm:$0xff]
    %v1778 = vld [vmem:[#allocation3 + $0x57d] sm:$0xff]
    %v1779 = vld [vmem:[#allocation2 + $0xc] sm:$0xff]
    %v1780 = vld [vmem:[#allocation2 + $0x14] sm:$0xff]
    %v1781 = vld [vmem:[#allocation2 + $0x1c] sm:$0xff]
    %v1782 = vld [vmem:[#allocation2 + $0x24] sm:$0xff]
    %v1783 = vld [vmem:[#allocation2 + $0x2c] sm:$0xff]
    %v1784 = vld [vmem:[#allocation2 + $0x34] sm:$0xff]
    %v1785 = vld [vmem:[#allocation2 + $0x4c] sm:$0xff]
    %v1786 = vld [vmem:[#allocation2 + $0x54] sm:$0xff]
    %v1787 = vld [vmem:[#allocation2 + $0x5c] sm:$0xff]
    %v1788 = vld [vmem:[#allocation2 + $0x64] sm:$0xff]
    %v1789 = vld [vmem:[#allocation2 + $0x6c] sm:$0xff]
    %v1790 = vld [vmem:[#allocation2 + $0x74] sm:$0xff]
    %1791 = vmatprep.subr.mxu0 0.0
    %1792 = vmatpush1.msra.mxu0 %v1778
    %1793 = vmatprep.subr.mxu0 0.0
    %1794 = vmatpush1.msra.mxu0 %v1777
    %1795 = vmatprep.subr.mxu0 0.0
    %1796 = vmatpush1.msra.mxu0 %v1776
    %1797 = vmatprep.subr.mxu0 0.0
    %1798 = vmatpush1.msra.mxu0 %v1775
    %1799 = vmatprep.subr.mxu0 0.0
    %1800 = vmatpush1.msra.mxu0 %v1774
    %1801 = vmatprep.subr.mxu0 0.0
    %1802 = vmatpush1.msra.mxu0 %v1773
    %1803 = vmatprep.subr.mxu0 0.0
    %1804 = vmatpush1.msra.mxu0 %v1772
    %1805 = vmatprep.subr.mxu0 0.0
    %1806 = vmatpush1.msra.mxu0 %v1771
    %1807 = vmatprep.subr.mxu0 0.0
    %1808 = vmatpush1.msra.mxu0 %v1770
    %1809 = vmatprep.subr.mxu0 0.0
    %1810 = vmatpush1.msra.mxu0 %v1769
    %1811 = vmatprep.subr.mxu0 0.0
    %1812 = vmatpush1.msra.mxu0 %v1768
    %1813 = vmatprep.subr.mxu0 0.0
    %1814 = vmatpush1.msra.mxu0 %v1767
    %1815 = vmatprep.subr.mxu0 0.0
    %1816 = vmatpush1.msra.mxu0 %v1766
    %1817 = vmatprep.subr.mxu0 0.0
    %1818 = vmatpush1.msra.mxu0 %v1765
    %1819 = vmatprep.subr.mxu0 0.0
    %1820 = vmatpush1.msra.mxu0 %v1764
    %1821 = vmatprep.subr.mxu0 0.0
    %1822 = vmatpush1.msra.mxu0 %v1763
    %1823 = vmatprep.subr.mxu0 0.0
    %1824 = vmatpush2.msra.mxu0 0.0
    %1825 = vmatprep.subr.mxu0 0.0
    %1826 = vmatpush2.msra.mxu0 0.0
    %1827 = vmatprep.subr.mxu0 0.0
    %1828 = vmatpush2.msra.mxu0 0.0
    %1829 = vmatprep.subr.mxu0 0.0
    %1830 = vmatpush2.msra.mxu0 0.0
    %1831 = vmatprep.subr.mxu0 0.0
    %1832 = vmatpush2.msra.mxu0 0.0
    %1833 = vmatprep.subr.mxu0 0.0
    %1834 = vmatpush2.msra.mxu0 0.0
    %1835 = vmatprep.subr.mxu0 0.0
    %1836 = vmatpush2.msra.mxu0 0.0
    %1837 = vmatprep.subr.mxu0 0.0
    %1838 = vmatpush2.msra.mxu0 0.0
    %1839 = vmatprep.subr.mxu0 0.0
    %1840 = vmatpush2.msra.mxu0 0.0
    %1841 = vmatprep.subr.mxu0 0.0
    %1842 = vmatpush2.msra.mxu0 0.0
    %1843 = vmatprep.subr.mxu0 0.0
    %1844 = vmatpush2.msra.mxu0 0.0
    %1845 = vmatprep.subr.mxu0 0.0
    %1846 = vmatpush2.msra.mxu0 0.0
    %1847 = vmatprep.subr.mxu0 0.0
    %1848 = vmatpush2.msra.mxu0 0.0
    %1849 = vmatprep.subr.mxu0 0.0
    %1850 = vmatpush2.msra.mxu0 0.0
    %1851 = vmatprep.subr.mxu0 0.0
    %1852 = vmatpush2.msra.mxu0 0.0
    %1853 = vmatprep.subr.mxu0 0.0
    %1854 = vmatpush2.msra.mxu0 0.0
    %1855 = vmatprep.mubr.f32.mxu0 0.0
    %1856 = vmatmul.mubr.f32.gmra.mxu0 %v1779
    %v1857 = vpop.f32.mrf.mxu0
    %v1858 = vadd.f32 0.0, %v1857
    %v1859 = vpop.f32.mrf.mxu0
    %1860 = vmatprep.mubr.f32.mxu0 0.0
    %1861 = vmatmul.mubr.f32.gmra.mxu0 %v1780
    %v1862 = vpop.f32.mrf.mxu0
    %v1863 = vadd.f32 0.0, %v1862
    %v1864 = vpop.f32.mrf.mxu0
    %1865 = vmatprep.mubr.f32.mxu0 0.0
    %1866 = vmatmul.mubr.f32.gmra.mxu0 %v1781
    %v1867 = vpop.f32.mrf.mxu0
    %v1868 = vadd.f32 0.0, %v1867
    %v1869 = vpop.f32.mrf.mxu0
    %1870 = vmatprep.mubr.f32.mxu0 0.0
    %1871 = vmatmul.mubr.f32.gmra.mxu0 %v1782
    %v1872 = vpop.f32.mrf.mxu0
    %v1873 = vadd.f32 0.0, %v1872
    %v1874 = vpop.f32.mrf.mxu0
    %1875 = vmatprep.mubr.f32.mxu0 0.0
    %1876 = vmatmul.mubr.f32.gmra.mxu0 %v1783
    %v1877 = vpop.f32.mrf.mxu0
    %v1878 = vadd.f32 0.0, %v1877
    %v1879 = vpop.f32.mrf.mxu0
    %1880 = vmatprep.mubr.f32.mxu0 0.0
    %1881 = vmatmul.mubr.f32.gmra.mxu0 %v1784
    %v1882 = vpop.f32.mrf.mxu0
    %v1883 = vadd.f32 0.0, %v1882
    %v1884 = vpop.f32.mrf.mxu0
    %1885 = vmatprep.mubr.f32.mxu0 0.0
    %1886 = vmatmul.mubr.f32.gmra.mxu0 %v1785
    %v1887 = vpop.f32.mrf.mxu0
    %v1888 = vadd.f32 0.0, %v1887
    %v1889 = vpop.f32.mrf.mxu0
    %1890 = vmatprep.mubr.f32.mxu0 0.0
    %1891 = vmatmul.mubr.f32.gmra.mxu0 %v1786
    %v1892 = vpop.f32.mrf.mxu0
    %v1893 = vadd.f32 0.0, %v1892
    %v1894 = vpop.f32.mrf.mxu0
    %1895 = vmatprep.mubr.f32.mxu0 0.0
    %1896 = vmatmul.mubr.f32.gmra.mxu0 %v1787
    %v1897 = vpop.f32.mrf.mxu0
    %v1898 = vadd.f32 0.0, %v1897
    %v1899 = vpop.f32.mrf.mxu0
    %1900 = vmatprep.mubr.f32.mxu0 0.0
    %1901 = vmatmul.mubr.f32.gmra.mxu0 %v1788
    %v1902 = vpop.f32.mrf.mxu0
    %v1903 = vadd.f32 0.0, %v1902
    %v1904 = vpop.f32.mrf.mxu0
    %1905 = vmatprep.mubr.f32.mxu0 0.0
    %1906 = vmatmul.mubr.f32.gmra.mxu0 %v1789
    %v1907 = vpop.f32.mrf.mxu0
    %v1908 = vadd.f32 0.0, %v1907
    %v1909 = vpop.f32.mrf.mxu0
    %1910 = vmatprep.mubr.f32.mxu0 0.0
    %1911 = vmatmul.mubr.f32.gmra.mxu0 %v1790
    %v1912 = vpop.f32.mrf.mxu0
    %v1913 = vadd.f32 0.0, %v1912
    %v1914 = vpop.f32.mrf.mxu0
    %1915 = vdwg.mxu0
    %1916 = vmatprep.subr.mxu0 0.0
    %1917 = vmatpush1.msra.mxu0 %v1750
    %1918 = vmatprep.subr.mxu0 0.0
    %1919 = vmatpush1.msra.mxu0 %v1749
    %1920 = vmatprep.subr.mxu0 0.0
    %1921 = vmatpush1.msra.mxu0 %v1748
    %1922 = vmatprep.subr.mxu0 0.0
    %1923 = vmatpush1.msra.mxu0 %v1747
    %1924 = vmatprep.subr.mxu0 0.0
    %1925 = vmatpush1.msra.mxu0 %v1746
    %1926 = vmatprep.subr.mxu0 0.0
    %1927 = vmatpush1.msra.mxu0 %v1745
    %1928 = vmatprep.subr.mxu0 0.0
    %1929 = vmatpush1.msra.mxu0 %v1744
    %1930 = vmatprep.subr.mxu0 0.0
    %1931 = vmatpush1.msra.mxu0 %v1743
    %1932 = vmatprep.subr.mxu0 0.0
    %1933 = vmatpush1.msra.mxu0 %v1742
    %1934 = vmatprep.subr.mxu0 0.0
    %1935 = vmatpush1.msra.mxu0 %v1741
    %1936 = vmatprep.subr.mxu0 0.0
    %1937 = vmatpush1.msra.mxu0 %v1740
    %1938 = vmatprep.subr.mxu0 0.0
    %1939 = vmatpush1.msra.mxu0 %v1739
    %1940 = vmatprep.subr.mxu0 0.0
    %1941 = vmatpush1.msra.mxu0 %v1738
    %1942 = vmatprep.subr.mxu0 0.0
    %1943 = vmatpush1.msra.mxu0 %v1737
    %1944 = vmatprep.subr.mxu0 0.0
    %1945 = vmatpush1.msra.mxu0 %v1736
    %1946 = vmatprep.subr.mxu0 0.0
    %1947 = vmatpush1.msra.mxu0 %v1735
    %1948 = vmatprep.subr.mxu0 0.0
    %1949 = vmatpush2.msra.mxu0 0.0
    %1950 = vmatprep.subr.mxu0 0.0
    %1951 = vmatpush2.msra.mxu0 0.0
    %1952 = vmatprep.subr.mxu0 0.0
    %1953 = vmatpush2.msra.mxu0 0.0
    %1954 = vmatprep.subr.mxu0 0.0
    %1955 = vmatpush2.msra.mxu0 0.0
    %1956 = vmatprep.subr.mxu0 0.0
    %1957 = vmatpush2.msra.mxu0 0.0
    %1958 = vmatprep.subr.mxu0 0.0
    %1959 = vmatpush2.msra.mxu0 0.0
    %1960 = vmatprep.subr.mxu0 0.0
    %1961 = vmatpush2.msra.mxu0 0.0
    %1962 = vmatprep.subr.mxu0 0.0
    %1963 = vmatpush2.msra.mxu0 0.0
    %1964 = vmatprep.subr.mxu0 0.0
    %1965 = vmatpush2.msra.mxu0 0.0
    %1966 = vmatprep.subr.mxu0 0.0
    %1967 = vmatpush2.msra.mxu0 0.0
    %1968 = vmatprep.subr.mxu0 0.0
    %1969 = vmatpush2.msra.mxu0 0.0
    %1970 = vmatprep.subr.mxu0 0.0
    %1971 = vmatpush2.msra.mxu0 0.0
    %1972 = vmatprep.subr.mxu0 0.0
    %1973 = vmatpush2.msra.mxu0 0.0
    %1974 = vmatprep.subr.mxu0 0.0
    %1975 = vmatpush2.msra.mxu0 0.0
    %1976 = vmatprep.subr.mxu0 0.0
    %1977 = vmatpush2.msra.mxu0 0.0
    %1978 = vmatprep.subr.mxu0 0.0
    %1979 = vmatpush2.msra.mxu0 0.0
    %1980 = vmatprep.mubr.f32.mxu0 0.0
    %1981 = vmatmul.mubr.f32.gmra.mxu0 %v1751
    %v1982 = vpop.f32.mrf.mxu0
    %v1983 = vadd.f32 %v1858, %v1982
    %v1984 = vpop.f32.mrf.mxu0
    %1985 = vmatprep.mubr.f32.mxu0 0.0
    %1986 = vmatmul.mubr.f32.gmra.mxu0 %v1752
    %v1987 = vpop.f32.mrf.mxu0
    %v1988 = vadd.f32 %v1863, %v1987
    %v1989 = vpop.f32.mrf.mxu0
    %1990 = vmatprep.mubr.f32.mxu0 0.0
    %1991 = vmatmul.mubr.f32.gmra.mxu0 %v1753
    %v1992 = vpop.f32.mrf.mxu0
    %v1993 = vadd.f32 %v1868, %v1992
    %v1994 = vpop.f32.mrf.mxu0
    %1995 = vmatprep.mubr.f32.mxu0 0.0
    %1996 = vmatmul.mubr.f32.gmra.mxu0 %v1754
    %v1997 = vpop.f32.mrf.mxu0
    %v1998 = vadd.f32 %v1873, %v1997
    %v1999 = vpop.f32.mrf.mxu0
    %2000 = vmatprep.mubr.f32.mxu0 0.0
    %2001 = vmatmul.mubr.f32.gmra.mxu0 %v1755
    %v2002 = vpop.f32.mrf.mxu0
    %v2003 = vadd.f32 %v1878, %v2002
    %v2004 = vpop.f32.mrf.mxu0
    %2005 = vmatprep.mubr.f32.mxu0 0.0
    %2006 = vmatmul.mubr.f32.gmra.mxu0 %v1756
    %v2007 = vpop.f32.mrf.mxu0
    %v2008 = vadd.f32 %v1883, %v2007
    %v2009 = vpop.f32.mrf.mxu0
    %2010 = vmatprep.mubr.f32.mxu0 0.0
    %2011 = vmatmul.mubr.f32.gmra.mxu0 %v1757
    %v2012 = vpop.f32.mrf.mxu0
    %v2013 = vadd.f32 %v1888, %v2012
    %v2014 = vpop.f32.mrf.mxu0
    %2015 = vmatprep.mubr.f32.mxu0 0.0
    %2016 = vmatmul.mubr.f32.gmra.mxu0 %v1758
    %v2017 = vpop.f32.mrf.mxu0
    %v2018 = vadd.f32 %v1893, %v2017
    %v2019 = vpop.f32.mrf.mxu0
    %2020 = vmatprep.mubr.f32.mxu0 0.0
    %2021 = vmatmul.mubr.f32.gmra.mxu0 %v1759
    %v2022 = vpop.f32.mrf.mxu0
    %v2023 = vadd.f32 %v1898, %v2022
    %v2024 = vpop.f32.mrf.mxu0
    %2025 = vmatprep.mubr.f32.mxu0 0.0
    %2026 = vmatmul.mubr.f32.gmra.mxu0 %v1760
    %v2027 = vpop.f32.mrf.mxu0
    %v2028 = vadd.f32 %v1903, %v2027
    %v2029 = vpop.f32.mrf.mxu0
    %2030 = vmatprep.mubr.f32.mxu0 0.0
    %2031 = vmatmul.mubr.f32.gmra.mxu0 %v1761
    %v2032 = vpop.f32.mrf.mxu0
    %v2033 = vadd.f32 %v1908, %v2032
    %v2034 = vpop.f32.mrf.mxu0
    %2035 = vmatprep.mubr.f32.mxu0 0.0
    %2036 = vmatmul.mubr.f32.gmra.mxu0 %v1762
    %v2037 = vpop.f32.mrf.mxu0
    %v2038 = vadd.f32 %v1913, %v2037
    %v2039 = vpop.f32.mrf.mxu0
    %2040 = vdwg.mxu0
    %v2041 = vld [vmem:[#allocation3 + $0x585] sm:$0xff]
    %v2042 = vld [vmem:[#allocation3 + $0x58d] sm:$0xff]
    %v2043 = vld [vmem:[#allocation3 + $0x595] sm:$0xff]
    %v2044 = vld [vmem:[#allocation3 + $0x59d] sm:$0xff]
    %v2045 = vld [vmem:[#allocation3 + $0x5a5] sm:$0xff]
    %v2046 = vld [vmem:[#allocation3 + $0x5ad] sm:$0xff]
    %v2047 = vld [vmem:[#allocation3 + $0x5b5] sm:$0xff]
    %v2048 = vld [vmem:[#allocation3 + $0x5bd] sm:$0xff]
    %v2049 = vld [vmem:[#allocation3 + $0x5c5] sm:$0xff]
    %v2050 = vld [vmem:[#allocation3 + $0x5cd] sm:$0xff]
    %v2051 = vld [vmem:[#allocation3 + $0x5d5] sm:$0xff]
    %v2052 = vld [vmem:[#allocation3 + $0x5dd] sm:$0xff]
    %v2053 = vld [vmem:[#allocation3 + $0x5e5] sm:$0xff]
    %v2054 = vld [vmem:[#allocation3 + $0x5ed] sm:$0xff]
    %v2055 = vld [vmem:[#allocation3 + $0x5f5] sm:$0xff]
    %v2056 = vld [vmem:[#allocation3 + $0x5fd] sm:$0xff]
    %v2057 = vld [vmem:[#allocation2 + $0xe] sm:$0xff]
    %v2058 = vld [vmem:[#allocation2 + $0x16] sm:$0xff]
    %v2059 = vld [vmem:[#allocation2 + $0x1e] sm:$0xff]
    %v2060 = vld [vmem:[#allocation2 + $0x26] sm:$0xff]
    %v2061 = vld [vmem:[#allocation2 + $0x2e] sm:$0xff]
    %v2062 = vld [vmem:[#allocation2 + $0x36] sm:$0xff]
    %v2063 = vld [vmem:[#allocation2 + $0x4e] sm:$0xff]
    %v2064 = vld [vmem:[#allocation2 + $0x56] sm:$0xff]
    %v2065 = vld [vmem:[#allocation2 + $0x5e] sm:$0xff]
    %v2066 = vld [vmem:[#allocation2 + $0x66] sm:$0xff]
    %v2067 = vld [vmem:[#allocation2 + $0x6e] sm:$0xff]
    %v2068 = vld [vmem:[#allocation2 + $0x76] sm:$0xff]
    %2069 = vmatprep.subr.mxu0 0.0
    %2070 = vmatpush1.msra.mxu0 %v2056
    %2071 = vmatprep.subr.mxu0 0.0
    %2072 = vmatpush1.msra.mxu0 %v2055
    %2073 = vmatprep.subr.mxu0 0.0
    %2074 = vmatpush1.msra.mxu0 %v2054
    %2075 = vmatprep.subr.mxu0 0.0
    %2076 = vmatpush1.msra.mxu0 %v2053
    %2077 = vmatprep.subr.mxu0 0.0
    %2078 = vmatpush1.msra.mxu0 %v2052
    %2079 = vmatprep.subr.mxu0 0.0
    %2080 = vmatpush1.msra.mxu0 %v2051
    %2081 = vmatprep.subr.mxu0 0.0
    %2082 = vmatpush1.msra.mxu0 %v2050
    %2083 = vmatprep.subr.mxu0 0.0
    %2084 = vmatpush1.msra.mxu0 %v2049
    %2085 = vmatprep.subr.mxu0 0.0
    %2086 = vmatpush1.msra.mxu0 %v2048
    %2087 = vmatprep.subr.mxu0 0.0
    %2088 = vmatpush1.msra.mxu0 %v2047
    %2089 = vmatprep.subr.mxu0 0.0
    %2090 = vmatpush1.msra.mxu0 %v2046
    %2091 = vmatprep.subr.mxu0 0.0
    %2092 = vmatpush1.msra.mxu0 %v2045
    %2093 = vmatprep.subr.mxu0 0.0
    %2094 = vmatpush1.msra.mxu0 %v2044
    %2095 = vmatprep.subr.mxu0 0.0
    %2096 = vmatpush1.msra.mxu0 %v2043
    %2097 = vmatprep.subr.mxu0 0.0
    %2098 = vmatpush1.msra.mxu0 %v2042
    %2099 = vmatprep.subr.mxu0 0.0
    %2100 = vmatpush1.msra.mxu0 %v2041
    %2101 = vmatprep.subr.mxu0 0.0
    %2102 = vmatpush2.msra.mxu0 0.0
    %2103 = vmatprep.subr.mxu0 0.0
    %2104 = vmatpush2.msra.mxu0 0.0
    %2105 = vmatprep.subr.mxu0 0.0
    %2106 = vmatpush2.msra.mxu0 0.0
    %2107 = vmatprep.subr.mxu0 0.0
    %2108 = vmatpush2.msra.mxu0 0.0
    %2109 = vmatprep.subr.mxu0 0.0
    %2110 = vmatpush2.msra.mxu0 0.0
    %2111 = vmatprep.subr.mxu0 0.0
    %2112 = vmatpush2.msra.mxu0 0.0
    %2113 = vmatprep.subr.mxu0 0.0
    %2114 = vmatpush2.msra.mxu0 0.0
    %2115 = vmatprep.subr.mxu0 0.0
    %2116 = vmatpush2.msra.mxu0 0.0
    %2117 = vmatprep.subr.mxu0 0.0
    %2118 = vmatpush2.msra.mxu0 0.0
    %2119 = vmatprep.subr.mxu0 0.0
    %2120 = vmatpush2.msra.mxu0 0.0
    %2121 = vmatprep.subr.mxu0 0.0
    %2122 = vmatpush2.msra.mxu0 0.0
    %2123 = vmatprep.subr.mxu0 0.0
    %2124 = vmatpush2.msra.mxu0 0.0
    %2125 = vmatprep.subr.mxu0 0.0
    %2126 = vmatpush2.msra.mxu0 0.0
    %2127 = vmatprep.subr.mxu0 0.0
    %2128 = vmatpush2.msra.mxu0 0.0
    %2129 = vmatprep.subr.mxu0 0.0
    %2130 = vmatpush2.msra.mxu0 0.0
    %2131 = vmatprep.subr.mxu0 0.0
    %2132 = vmatpush2.msra.mxu0 0.0
    %2133 = vmatprep.mubr.f32.mxu0 0.0
    %2134 = vmatmul.mubr.f32.gmra.mxu0 %v2057
    %v2135 = vpop.f32.mrf.mxu0
    %v2136 = vadd.f32 0.0, %v2135
    %v2137 = vpop.f32.mrf.mxu0
    %2138 = vmatprep.mubr.f32.mxu0 0.0
    %2139 = vmatmul.mubr.f32.gmra.mxu0 %v2058
    %v2140 = vpop.f32.mrf.mxu0
    %v2141 = vadd.f32 0.0, %v2140
    %v2142 = vpop.f32.mrf.mxu0
    %2143 = vmatprep.mubr.f32.mxu0 0.0
    %2144 = vmatmul.mubr.f32.gmra.mxu0 %v2059
    %v2145 = vpop.f32.mrf.mxu0
    %v2146 = vadd.f32 0.0, %v2145
    %v2147 = vpop.f32.mrf.mxu0
    %2148 = vmatprep.mubr.f32.mxu0 0.0
    %2149 = vmatmul.mubr.f32.gmra.mxu0 %v2060
    %v2150 = vpop.f32.mrf.mxu0
    %v2151 = vadd.f32 0.0, %v2150
    %v2152 = vpop.f32.mrf.mxu0
    %2153 = vmatprep.mubr.f32.mxu0 0.0
    %2154 = vmatmul.mubr.f32.gmra.mxu0 %v2061
    %v2155 = vpop.f32.mrf.mxu0
    %v2156 = vadd.f32 0.0, %v2155
    %v2157 = vpop.f32.mrf.mxu0
    %2158 = vmatprep.mubr.f32.mxu0 0.0
    %2159 = vmatmul.mubr.f32.gmra.mxu0 %v2062
    %v2160 = vpop.f32.mrf.mxu0
    %v2161 = vadd.f32 0.0, %v2160
    %v2162 = vpop.f32.mrf.mxu0
    %2163 = vmatprep.mubr.f32.mxu0 0.0
    %2164 = vmatmul.mubr.f32.gmra.mxu0 %v2063
    %v2165 = vpop.f32.mrf.mxu0
    %v2166 = vadd.f32 0.0, %v2165
    %v2167 = vpop.f32.mrf.mxu0
    %2168 = vmatprep.mubr.f32.mxu0 0.0
    %2169 = vmatmul.mubr.f32.gmra.mxu0 %v2064
    %v2170 = vpop.f32.mrf.mxu0
    %v2171 = vadd.f32 0.0, %v2170
    %v2172 = vpop.f32.mrf.mxu0
    %2173 = vmatprep.mubr.f32.mxu0 0.0
    %2174 = vmatmul.mubr.f32.gmra.mxu0 %v2065
    %v2175 = vpop.f32.mrf.mxu0
    %v2176 = vadd.f32 0.0, %v2175
    %v2177 = vpop.f32.mrf.mxu0
    %2178 = vmatprep.mubr.f32.mxu0 0.0
    %2179 = vmatmul.mubr.f32.gmra.mxu0 %v2066
    %v2180 = vpop.f32.mrf.mxu0
    %v2181 = vadd.f32 0.0, %v2180
    %v2182 = vpop.f32.mrf.mxu0
    %2183 = vmatprep.mubr.f32.mxu0 0.0
    %2184 = vmatmul.mubr.f32.gmra.mxu0 %v2067
    %v2185 = vpop.f32.mrf.mxu0
    %v2186 = vadd.f32 0.0, %v2185
    %v2187 = vpop.f32.mrf.mxu0
    %2188 = vmatprep.mubr.f32.mxu0 0.0
    %2189 = vmatmul.mubr.f32.gmra.mxu0 %v2068
    %v2190 = vpop.f32.mrf.mxu0
    %v2191 = vadd.f32 0.0, %v2190
    %v2192 = vpop.f32.mrf.mxu0
    %2193 = vdwg.mxu0
    %v2194 = vadd.f32 %v1983, %v2136
    %v2195 = vadd.f32 %v1988, %v2141
    %v2196 = vadd.f32 %v1993, %v2146
    %v2197 = vadd.f32 %v1998, %v2151
    %v2198 = vadd.f32 %v2003, %v2156
    %v2199 = vadd.f32 %v2008, %v2161
    %v2200 = vadd.f32 %v2013, %v2166
    %v2201 = vadd.f32 %v2018, %v2171
    %v2202 = vadd.f32 %v2023, %v2176
    %v2203 = vadd.f32 %v2028, %v2181
    %v2204 = vadd.f32 %v2033, %v2186
    %v2205 = vadd.f32 %v2038, %v2191
    %v2206 = vld [vmem:[#allocation3 + $0x605] sm:$0xff]
    %v2207 = vld [vmem:[#allocation3 + $0x60d] sm:$0xff]
    %v2208 = vld [vmem:[#allocation3 + $0x615] sm:$0xff]
    %v2209 = vld [vmem:[#allocation3 + $0x61d] sm:$0xff]
    %v2210 = vld [vmem:[#allocation3 + $0x625] sm:$0xff]
    %v2211 = vld [vmem:[#allocation3 + $0x62d] sm:$0xff]
    %v2212 = vld [vmem:[#allocation3 + $0x635] sm:$0xff]
    %v2213 = vld [vmem:[#allocation3 + $0x63d] sm:$0xff]
    %v2214 = vld [vmem:[#allocation3 + $0x645] sm:$0xff]
    %v2215 = vld [vmem:[#allocation3 + $0x64d] sm:$0xff]
    %v2216 = vld [vmem:[#allocation3 + $0x655] sm:$0xff]
    %v2217 = vld [vmem:[#allocation3 + $0x65d] sm:$0xff]
    %v2218 = vld [vmem:[#allocation3 + $0x665] sm:$0xff]
    %v2219 = vld [vmem:[#allocation3 + $0x66d] sm:$0xff]
    %v2220 = vld [vmem:[#allocation3 + $0x675] sm:$0xff]
    %v2221 = vld [vmem:[#allocation3 + $0x67d] sm:$0xff]
    %2222 = vmatprep.subr.mxu0 0.0
    %2223 = vmatpush1.msra.mxu0 %v2221
    %2224 = vmatprep.subr.mxu0 0.0
    %2225 = vmatpush1.msra.mxu0 %v2220
    %2226 = vmatprep.subr.mxu0 0.0
    %2227 = vmatpush1.msra.mxu0 %v2219
    %2228 = vmatprep.subr.mxu0 0.0
    %2229 = vmatpush1.msra.mxu0 %v2218
    %2230 = vmatprep.subr.mxu0 0.0
    %2231 = vmatpush1.msra.mxu0 %v2217
    %2232 = vmatprep.subr.mxu0 0.0
    %2233 = vmatpush1.msra.mxu0 %v2216
    %2234 = vmatprep.subr.mxu0 0.0
    %2235 = vmatpush1.msra.mxu0 %v2215
    %2236 = vmatprep.subr.mxu0 0.0
    %2237 = vmatpush1.msra.mxu0 %v2214
    %2238 = vmatprep.subr.mxu0 0.0
    %2239 = vmatpush1.msra.mxu0 %v2213
    %2240 = vmatprep.subr.mxu0 0.0
    %2241 = vmatpush1.msra.mxu0 %v2212
    %2242 = vmatprep.subr.mxu0 0.0
    %2243 = vmatpush1.msra.mxu0 %v2211
    %2244 = vmatprep.subr.mxu0 0.0
    %2245 = vmatpush1.msra.mxu0 %v2210
    %2246 = vmatprep.subr.mxu0 0.0
    %2247 = vmatpush1.msra.mxu0 %v2209
    %2248 = vmatprep.subr.mxu0 0.0
    %2249 = vmatpush1.msra.mxu0 %v2208
    %2250 = vmatprep.subr.mxu0 0.0
    %2251 = vmatpush1.msra.mxu0 %v2207
    %2252 = vmatprep.subr.mxu0 0.0
    %2253 = vmatpush1.msra.mxu0 %v2206
    %2254 = vmatprep.subr.mxu0 0.0
    %2255 = vmatpush2.msra.mxu0 0.0
    %2256 = vmatprep.subr.mxu0 0.0
    %2257 = vmatpush2.msra.mxu0 0.0
    %2258 = vmatprep.subr.mxu0 0.0
    %2259 = vmatpush2.msra.mxu0 0.0
    %2260 = vmatprep.subr.mxu0 0.0
    %2261 = vmatpush2.msra.mxu0 0.0
    %2262 = vmatprep.subr.mxu0 0.0
    %2263 = vmatpush2.msra.mxu0 0.0
    %2264 = vmatprep.subr.mxu0 0.0
    %2265 = vmatpush2.msra.mxu0 0.0
    %2266 = vmatprep.subr.mxu0 0.0
    %2267 = vmatpush2.msra.mxu0 0.0
    %2268 = vmatprep.subr.mxu0 0.0
    %2269 = vmatpush2.msra.mxu0 0.0
    %2270 = vmatprep.subr.mxu0 0.0
    %2271 = vmatpush2.msra.mxu0 0.0
    %2272 = vmatprep.subr.mxu0 0.0
    %2273 = vmatpush2.msra.mxu0 0.0
    %2274 = vmatprep.subr.mxu0 0.0
    %2275 = vmatpush2.msra.mxu0 0.0
    %2276 = vmatprep.subr.mxu0 0.0
    %2277 = vmatpush2.msra.mxu0 0.0
    %2278 = vmatprep.subr.mxu0 0.0
    %2279 = vmatpush2.msra.mxu0 0.0
    %2280 = vmatprep.subr.mxu0 0.0
    %2281 = vmatpush2.msra.mxu0 0.0
    %2282 = vmatprep.subr.mxu0 0.0
    %2283 = vmatpush2.msra.mxu0 0.0
    %2284 = vmatprep.subr.mxu0 0.0
    %2285 = vmatpush2.msra.mxu0 0.0
    %2286 = vmatprep.mubr.f32.mxu0 0.0
    %2287 = vmatmul.mubr.f32.gmra.mxu0 %v1711
    %v2288 = vpop.f32.mrf.mxu0
    %v2289 = vadd.f32 0.0, %v2288
    %v2290 = vpop.f32.mrf.mxu0
    %2291 = vmatprep.mubr.f32.mxu0 0.0
    %2292 = vmatmul.mubr.f32.gmra.mxu0 %v1712
    %v2293 = vpop.f32.mrf.mxu0
    %v2294 = vadd.f32 0.0, %v2293
    %v2295 = vpop.f32.mrf.mxu0
    %2296 = vmatprep.mubr.f32.mxu0 0.0
    %2297 = vmatmul.mubr.f32.gmra.mxu0 %v1713
    %v2298 = vpop.f32.mrf.mxu0
    %v2299 = vadd.f32 0.0, %v2298
    %v2300 = vpop.f32.mrf.mxu0
    %2301 = vmatprep.mubr.f32.mxu0 0.0
    %2302 = vmatmul.mubr.f32.gmra.mxu0 %v1714
    %v2303 = vpop.f32.mrf.mxu0
    %v2304 = vadd.f32 0.0, %v2303
    %v2305 = vpop.f32.mrf.mxu0
    %2306 = vmatprep.mubr.f32.mxu0 0.0
    %2307 = vmatmul.mubr.f32.gmra.mxu0 %v1715
    %v2308 = vpop.f32.mrf.mxu0
    %v2309 = vadd.f32 0.0, %v2308
    %v2310 = vpop.f32.mrf.mxu0
    %2311 = vmatprep.mubr.f32.mxu0 0.0
    %2312 = vmatmul.mubr.f32.gmra.mxu0 %v1716
    %v2313 = vpop.f32.mrf.mxu0
    %v2314 = vadd.f32 0.0, %v2313
    %v2315 = vpop.f32.mrf.mxu0
    %2316 = vmatprep.mubr.f32.mxu0 0.0
    %2317 = vmatmul.mubr.f32.gmra.mxu0 %v1717
    %v2318 = vpop.f32.mrf.mxu0
    %v2319 = vadd.f32 0.0, %v2318
    %v2320 = vpop.f32.mrf.mxu0
    %2321 = vmatprep.mubr.f32.mxu0 0.0
    %2322 = vmatmul.mubr.f32.gmra.mxu0 %v1718
    %v2323 = vpop.f32.mrf.mxu0
    %v2324 = vadd.f32 0.0, %v2323
    %v2325 = vpop.f32.mrf.mxu0
    %2326 = vmatprep.mubr.f32.mxu0 0.0
    %2327 = vmatmul.mubr.f32.gmra.mxu0 %v1719
    %v2328 = vpop.f32.mrf.mxu0
    %v2329 = vadd.f32 0.0, %v2328
    %v2330 = vpop.f32.mrf.mxu0
    %2331 = vmatprep.mubr.f32.mxu0 0.0
    %2332 = vmatmul.mubr.f32.gmra.mxu0 %v1720
    %v2333 = vpop.f32.mrf.mxu0
    %v2334 = vadd.f32 0.0, %v2333
    %v2335 = vpop.f32.mrf.mxu0
    %2336 = vmatprep.mubr.f32.mxu0 0.0
    %2337 = vmatmul.mubr.f32.gmra.mxu0 %v1721
    %v2338 = vpop.f32.mrf.mxu0
    %v2339 = vadd.f32 0.0, %v2338
    %v2340 = vpop.f32.mrf.mxu0
    %2341 = vmatprep.mubr.f32.mxu0 0.0
    %2342 = vmatmul.mubr.f32.gmra.mxu0 %v1722
    %v2343 = vpop.f32.mrf.mxu0
    %v2344 = vadd.f32 0.0, %v2343
    %v2345 = vpop.f32.mrf.mxu0
    %2346 = vdwg.mxu0
    %v2347 = vadd.f32 %v2194, %v2289
    %v2348 = vadd.f32 %v2195, %v2294
    %v2349 = vadd.f32 %v2196, %v2299
    %v2350 = vadd.f32 %v2197, %v2304
    %v2351 = vadd.f32 %v2198, %v2309
    %v2352 = vadd.f32 %v2199, %v2314
    %v2353 = vadd.f32 %v2200, %v2319
    %v2354 = vadd.f32 %v2201, %v2324
    %v2355 = vadd.f32 %v2202, %v2329
    %v2356 = vadd.f32 %v2203, %v2334
    %v2357 = vadd.f32 %v2204, %v2339
    %v2358 = vadd.f32 %v2205, %v2344
    %v2359 = vld [vmem:[#allocation3 + $0x907] sm:$0x1]
    %v2360 = vlaneseq
    %v2361 = vshrl.u32 %v2360, 7
    %v2362 = vsub.s32 0, %v2361
    %v2363 = vrot.slane %v2359, %v2362
    %v2364 = vadd.f32 %v2347, %v2363
    %v2365 = vadd.f32 %v2348, %v2363
    %v2366 = vadd.f32 %v2349, %v2363
    %v2367 = vadd.f32 %v2350, %v2363
    %v2368 = vadd.f32 %v2351, %v2363
    %v2369 = vadd.f32 %v2352, %v2363
    %v2370 = vadd.f32 %v2353, %v2363
    %v2371 = vadd.f32 %v2354, %v2363
    %v2372 = vadd.f32 %v2355, %v2363
    %v2373 = vadd.f32 %v2356, %v2363
    %v2374 = vadd.f32 %v2357, %v2363
    %v2375 = vadd.f32 %v2358, %v2363
    %v2376 = vmax.f32 %v2364, 0.0
    %v2377 = vmax.f32 %v2365, 0.0
    %v2378 = vmax.f32 %v2366, 0.0
    %v2379 = vmax.f32 %v2367, 0.0
    %v2380 = vmax.f32 %v2368, 0.0
    %v2381 = vmax.f32 %v2369, 0.0
    %v2382 = vmax.f32 %v2370, 0.0
    %v2383 = vmax.f32 %v2371, 0.0
    %v2384 = vmax.f32 %v2372, 0.0
    %v2385 = vmax.f32 %v2373, 0.0
    %v2386 = vmax.f32 %v2374, 0.0
    %v2387 = vmax.f32 %v2375, 0.0
    %v2388 = vadd.f32 %v2376, %v1711
    %v2389 = vadd.f32 %v2377, %v1712
    %v2390 = vadd.f32 %v2378, %v1713
    %v2391 = vadd.f32 %v2379, %v1714
    %v2392 = vadd.f32 %v2380, %v1715
    %v2393 = vadd.f32 %v2381, %v1716
    %v2394 = vadd.f32 %v2382, %v1717
    %v2395 = vadd.f32 %v2383, %v1718
    %v2396 = vadd.f32 %v2384, %v1719
    %v2397 = vadd.f32 %v2385, %v1720
    %v2398 = vadd.f32 %v2386, %v1721
    %v2399 = vadd.f32 %v2387, %v1722
    %2400 = vst [vmem:[#allocation2 + $0x10] sm:$0xff] %v2388
    %2401 = vst [vmem:[#allocation2 + $0x18] sm:$0xff] %v2389
    %2402 = vst [vmem:[#allocation2 + $0x20] sm:$0xff] %v2390
    %2403 = vst [vmem:[#allocation2 + $0x28] sm:$0xff] %v2391
    %2404 = vst [vmem:[#allocation2 + $0x30] sm:$0xff] %v2392
    %2405 = vst [vmem:[#allocation2 + $0x38] sm:$0xff] %v2393
    %2406 = vst [vmem:[#allocation2 + $0x50] sm:$0xff] %v2394
    %2407 = vst [vmem:[#allocation2 + $0x58] sm:$0xff] %v2395
    %2408 = vst [vmem:[#allocation2 + $0x60] sm:$0xff] %v2396
    %2409 = vst [vmem:[#allocation2 + $0x68] sm:$0xff] %v2397
    %2410 = vst [vmem:[#allocation2 + $0x70] sm:$0xff] %v2398
    %2411 = vst [vmem:[#allocation2 + $0x78] sm:$0xff] %v2399
    %v2412 = vld [vmem:[#allocation3 + $0x685] sm:$0xff]
    %v2413 = vld [vmem:[#allocation3 + $0x68d] sm:$0xff]
    %v2414 = vld [vmem:[#allocation3 + $0x695] sm:$0xff]
    %v2415 = vld [vmem:[#allocation3 + $0x69d] sm:$0xff]
    %v2416 = vld [vmem:[#allocation3 + $0x6a5] sm:$0xff]
    %v2417 = vld [vmem:[#allocation3 + $0x6ad] sm:$0xff]
    %v2418 = vld [vmem:[#allocation3 + $0x6b5] sm:$0xff]
    %v2419 = vld [vmem:[#allocation3 + $0x6bd] sm:$0xff]
    %v2420 = vld [vmem:[#allocation3 + $0x6c5] sm:$0xff]
    %v2421 = vld [vmem:[#allocation3 + $0x6cd] sm:$0xff]
    %v2422 = vld [vmem:[#allocation3 + $0x6d5] sm:$0xff]
    %v2423 = vld [vmem:[#allocation3 + $0x6dd] sm:$0xff]
    %v2424 = vld [vmem:[#allocation3 + $0x6e5] sm:$0xff]
    %v2425 = vld [vmem:[#allocation3 + $0x6ed] sm:$0xff]
    %v2426 = vld [vmem:[#allocation3 + $0x6f5] sm:$0xff]
    %v2427 = vld [vmem:[#allocation3 + $0x6fd] sm:$0xff]
    %v2428 = vld [vmem:[#allocation2] sm:$0xff]
    %v2429 = vld [vmem:[#allocation2 + $0x8] sm:$0xff]
    %v2430 = vld [vmem:[#allocation2 + $0x10] sm:$0xff]
    %v2431 = vld [vmem:[#allocation2 + $0x18] sm:$0xff]
    %v2432 = vld [vmem:[#allocation2 + $0x20] sm:$0xff]
    %v2433 = vld [vmem:[#allocation2 + $0x28] sm:$0xff]
    %v2434 = vld [vmem:[#allocation2 + $0x40] sm:$0xff]
    %v2435 = vld [vmem:[#allocation2 + $0x48] sm:$0xff]
    %v2436 = vld [vmem:[#allocation2 + $0x50] sm:$0xff]
    %v2437 = vld [vmem:[#allocation2 + $0x58] sm:$0xff]
    %v2438 = vld [vmem:[#allocation2 + $0x60] sm:$0xff]
    %v2439 = vld [vmem:[#allocation2 + $0x68] sm:$0xff]
    %v2440 = vld [vmem:[#allocation3 + $0x705] sm:$0xff]
    %v2441 = vld [vmem:[#allocation3 + $0x70d] sm:$0xff]
    %v2442 = vld [vmem:[#allocation3 + $0x715] sm:$0xff]
    %v2443 = vld [vmem:[#allocation3 + $0x71d] sm:$0xff]
    %v2444 = vld [vmem:[#allocation3 + $0x725] sm:$0xff]
    %v2445 = vld [vmem:[#allocation3 + $0x72d] sm:$0xff]
    %v2446 = vld [vmem:[#allocation3 + $0x735] sm:$0xff]
    %v2447 = vld [vmem:[#allocation3 + $0x73d] sm:$0xff]
    %v2448 = vld [vmem:[#allocation3 + $0x745] sm:$0xff]
    %v2449 = vld [vmem:[#allocation3 + $0x74d] sm:$0xff]
    %v2450 = vld [vmem:[#allocation3 + $0x755] sm:$0xff]
    %v2451 = vld [vmem:[#allocation3 + $0x75d] sm:$0xff]
    %v2452 = vld [vmem:[#allocation3 + $0x765] sm:$0xff]
    %v2453 = vld [vmem:[#allocation3 + $0x76d] sm:$0xff]
    %v2454 = vld [vmem:[#allocation3 + $0x775] sm:$0xff]
    %v2455 = vld [vmem:[#allocation3 + $0x77d] sm:$0xff]
    %v2456 = vld [vmem:[#allocation2 + $0x30] sm:$0xff]
    %v2457 = vld [vmem:[#allocation2 + $0x70] sm:$0xff]
    %2458 = vmatprep.subr.mxu0 0.0
    %2459 = vmatpush1.msra.mxu0 %v2455
    %2460 = vmatprep.subr.mxu0 0.0
    %2461 = vmatpush1.msra.mxu0 %v2454
    %2462 = vmatprep.subr.mxu0 0.0
    %2463 = vmatpush1.msra.mxu0 %v2453
    %2464 = vmatprep.subr.mxu0 0.0
    %2465 = vmatpush1.msra.mxu0 %v2452
    %2466 = vmatprep.subr.mxu0 0.0
    %2467 = vmatpush1.msra.mxu0 %v2451
    %2468 = vmatprep.subr.mxu0 0.0
    %2469 = vmatpush1.msra.mxu0 %v2450
    %2470 = vmatprep.subr.mxu0 0.0
    %2471 = vmatpush1.msra.mxu0 %v2449
    %2472 = vmatprep.subr.mxu0 0.0
    %2473 = vmatpush1.msra.mxu0 %v2448
    %2474 = vmatprep.subr.mxu0 0.0
    %2475 = vmatpush1.msra.mxu0 %v2447
    %2476 = vmatprep.subr.mxu0 0.0
    %2477 = vmatpush1.msra.mxu0 %v2446
    %2478 = vmatprep.subr.mxu0 0.0
    %2479 = vmatpush1.msra.mxu0 %v2445
    %2480 = vmatprep.subr.mxu0 0.0
    %2481 = vmatpush1.msra.mxu0 %v2444
    %2482 = vmatprep.subr.mxu0 0.0
    %2483 = vmatpush1.msra.mxu0 %v2443
    %2484 = vmatprep.subr.mxu0 0.0
    %2485 = vmatpush1.msra.mxu0 %v2442
    %2486 = vmatprep.subr.mxu0 0.0
    %2487 = vmatpush1.msra.mxu0 %v2441
    %2488 = vmatprep.subr.mxu0 0.0
    %2489 = vmatpush1.msra.mxu0 %v2440
    %2490 = vmatprep.subr.mxu0 0.0
    %2491 = vmatpush2.msra.mxu0 0.0
    %2492 = vmatprep.subr.mxu0 0.0
    %2493 = vmatpush2.msra.mxu0 0.0
    %2494 = vmatprep.subr.mxu0 0.0
    %2495 = vmatpush2.msra.mxu0 0.0
    %2496 = vmatprep.subr.mxu0 0.0
    %2497 = vmatpush2.msra.mxu0 0.0
    %2498 = vmatprep.subr.mxu0 0.0
    %2499 = vmatpush2.msra.mxu0 0.0
    %2500 = vmatprep.subr.mxu0 0.0
    %2501 = vmatpush2.msra.mxu0 0.0
    %2502 = vmatprep.subr.mxu0 0.0
    %2503 = vmatpush2.msra.mxu0 0.0
    %2504 = vmatprep.subr.mxu0 0.0
    %2505 = vmatpush2.msra.mxu0 0.0
    %2506 = vmatprep.subr.mxu0 0.0
    %2507 = vmatpush2.msra.mxu0 0.0
    %2508 = vmatprep.subr.mxu0 0.0
    %2509 = vmatpush2.msra.mxu0 0.0
    %2510 = vmatprep.subr.mxu0 0.0
    %2511 = vmatpush2.msra.mxu0 0.0
    %2512 = vmatprep.subr.mxu0 0.0
    %2513 = vmatpush2.msra.mxu0 0.0
    %2514 = vmatprep.subr.mxu0 0.0
    %2515 = vmatpush2.msra.mxu0 0.0
    %2516 = vmatprep.subr.mxu0 0.0
    %2517 = vmatpush2.msra.mxu0 0.0
    %2518 = vmatprep.subr.mxu0 0.0
    %2519 = vmatpush2.msra.mxu0 0.0
    %2520 = vmatprep.subr.mxu0 0.0
    %2521 = vmatpush2.msra.mxu0 0.0
    %2522 = vmatprep.mubr.f32.mxu0 0.0
    %2523 = vmatmul.mubr.f32.gmra.mxu0 %v2429
    %v2524 = vpop.f32.mrf.mxu0
    %v2525 = vadd.f32 0.0, %v2524
    %v2526 = vpop.f32.mrf.mxu0
    %2527 = vmatprep.mubr.f32.mxu0 0.0
    %2528 = vmatmul.mubr.f32.gmra.mxu0 %v2430
    %v2529 = vpop.f32.mrf.mxu0
    %v2530 = vadd.f32 0.0, %v2529
    %v2531 = vpop.f32.mrf.mxu0
    %2532 = vmatprep.mubr.f32.mxu0 0.0
    %2533 = vmatmul.mubr.f32.gmra.mxu0 %v2431
    %v2534 = vpop.f32.mrf.mxu0
    %v2535 = vadd.f32 0.0, %v2534
    %v2536 = vpop.f32.mrf.mxu0
    %2537 = vmatprep.mubr.f32.mxu0 0.0
    %2538 = vmatmul.mubr.f32.gmra.mxu0 %v2432
    %v2539 = vpop.f32.mrf.mxu0
    %v2540 = vadd.f32 0.0, %v2539
    %v2541 = vpop.f32.mrf.mxu0
    %2542 = vmatprep.mubr.f32.mxu0 0.0
    %2543 = vmatmul.mubr.f32.gmra.mxu0 %v2433
    %v2544 = vpop.f32.mrf.mxu0
    %v2545 = vadd.f32 0.0, %v2544
    %v2546 = vpop.f32.mrf.mxu0
    %2547 = vmatprep.mubr.f32.mxu0 0.0
    %2548 = vmatmul.mubr.f32.gmra.mxu0 %v2456
    %v2549 = vpop.f32.mrf.mxu0
    %v2550 = vadd.f32 0.0, %v2549
    %v2551 = vpop.f32.mrf.mxu0
    %2552 = vmatprep.mubr.f32.mxu0 0.0
    %2553 = vmatmul.mubr.f32.gmra.mxu0 %v2435
    %v2554 = vpop.f32.mrf.mxu0
    %v2555 = vadd.f32 0.0, %v2554
    %v2556 = vpop.f32.mrf.mxu0
    %2557 = vmatprep.mubr.f32.mxu0 0.0
    %2558 = vmatmul.mubr.f32.gmra.mxu0 %v2436
    %v2559 = vpop.f32.mrf.mxu0
    %v2560 = vadd.f32 0.0, %v2559
    %v2561 = vpop.f32.mrf.mxu0
    %2562 = vmatprep.mubr.f32.mxu0 0.0
    %2563 = vmatmul.mubr.f32.gmra.mxu0 %v2437
    %v2564 = vpop.f32.mrf.mxu0
    %v2565 = vadd.f32 0.0, %v2564
    %v2566 = vpop.f32.mrf.mxu0
    %2567 = vmatprep.mubr.f32.mxu0 0.0
    %2568 = vmatmul.mubr.f32.gmra.mxu0 %v2438
    %v2569 = vpop.f32.mrf.mxu0
    %v2570 = vadd.f32 0.0, %v2569
    %v2571 = vpop.f32.mrf.mxu0
    %2572 = vmatprep.mubr.f32.mxu0 0.0
    %2573 = vmatmul.mubr.f32.gmra.mxu0 %v2439
    %v2574 = vpop.f32.mrf.mxu0
    %v2575 = vadd.f32 0.0, %v2574
    %v2576 = vpop.f32.mrf.mxu0
    %2577 = vmatprep.mubr.f32.mxu0 0.0
    %2578 = vmatmul.mubr.f32.gmra.mxu0 %v2457
    %v2579 = vpop.f32.mrf.mxu0
    %v2580 = vadd.f32 0.0, %v2579
    %v2581 = vpop.f32.mrf.mxu0
    %2582 = vdwg.mxu0
    %2583 = vmatprep.subr.mxu0 0.0
    %2584 = vmatpush1.msra.mxu0 %v2427
    %2585 = vmatprep.subr.mxu0 0.0
    %2586 = vmatpush1.msra.mxu0 %v2426
    %2587 = vmatprep.subr.mxu0 0.0
    %2588 = vmatpush1.msra.mxu0 %v2425
    %2589 = vmatprep.subr.mxu0 0.0
    %2590 = vmatpush1.msra.mxu0 %v2424
    %2591 = vmatprep.subr.mxu0 0.0
    %2592 = vmatpush1.msra.mxu0 %v2423
    %2593 = vmatprep.subr.mxu0 0.0
    %2594 = vmatpush1.msra.mxu0 %v2422
    %2595 = vmatprep.subr.mxu0 0.0
    %2596 = vmatpush1.msra.mxu0 %v2421
    %2597 = vmatprep.subr.mxu0 0.0
    %2598 = vmatpush1.msra.mxu0 %v2420
    %2599 = vmatprep.subr.mxu0 0.0
    %2600 = vmatpush1.msra.mxu0 %v2419
    %2601 = vmatprep.subr.mxu0 0.0
    %2602 = vmatpush1.msra.mxu0 %v2418
    %2603 = vmatprep.subr.mxu0 0.0
    %2604 = vmatpush1.msra.mxu0 %v2417
    %2605 = vmatprep.subr.mxu0 0.0
    %2606 = vmatpush1.msra.mxu0 %v2416
    %2607 = vmatprep.subr.mxu0 0.0
    %2608 = vmatpush1.msra.mxu0 %v2415
    %2609 = vmatprep.subr.mxu0 0.0
    %2610 = vmatpush1.msra.mxu0 %v2414
    %2611 = vmatprep.subr.mxu0 0.0
    %2612 = vmatpush1.msra.mxu0 %v2413
    %2613 = vmatprep.subr.mxu0 0.0
    %2614 = vmatpush1.msra.mxu0 %v2412
    %2615 = vmatprep.subr.mxu0 0.0
    %2616 = vmatpush2.msra.mxu0 0.0
    %2617 = vmatprep.subr.mxu0 0.0
    %2618 = vmatpush2.msra.mxu0 0.0
    %2619 = vmatprep.subr.mxu0 0.0
    %2620 = vmatpush2.msra.mxu0 0.0
    %2621 = vmatprep.subr.mxu0 0.0
    %2622 = vmatpush2.msra.mxu0 0.0
    %2623 = vmatprep.subr.mxu0 0.0
    %2624 = vmatpush2.msra.mxu0 0.0
    %2625 = vmatprep.subr.mxu0 0.0
    %2626 = vmatpush2.msra.mxu0 0.0
    %2627 = vmatprep.subr.mxu0 0.0
    %2628 = vmatpush2.msra.mxu0 0.0
    %2629 = vmatprep.subr.mxu0 0.0
    %2630 = vmatpush2.msra.mxu0 0.0
    %2631 = vmatprep.subr.mxu0 0.0
    %2632 = vmatpush2.msra.mxu0 0.0
    %2633 = vmatprep.subr.mxu0 0.0
    %2634 = vmatpush2.msra.mxu0 0.0
    %2635 = vmatprep.subr.mxu0 0.0
    %2636 = vmatpush2.msra.mxu0 0.0
    %2637 = vmatprep.subr.mxu0 0.0
    %2638 = vmatpush2.msra.mxu0 0.0
    %2639 = vmatprep.subr.mxu0 0.0
    %2640 = vmatpush2.msra.mxu0 0.0
    %2641 = vmatprep.subr.mxu0 0.0
    %2642 = vmatpush2.msra.mxu0 0.0
    %2643 = vmatprep.subr.mxu0 0.0
    %2644 = vmatpush2.msra.mxu0 0.0
    %2645 = vmatprep.subr.mxu0 0.0
    %2646 = vmatpush2.msra.mxu0 0.0
    %2647 = vmatprep.mubr.f32.mxu0 0.0
    %2648 = vmatmul.mubr.f32.gmra.mxu0 %v2428
    %v2649 = vpop.f32.mrf.mxu0
    %v2650 = vadd.f32 %v2525, %v2649
    %v2651 = vpop.f32.mrf.mxu0
    %2652 = vmatprep.mubr.f32.mxu0 0.0
    %2653 = vmatmul.mubr.f32.gmra.mxu0 %v2429
    %v2654 = vpop.f32.mrf.mxu0
    %v2655 = vadd.f32 %v2530, %v2654
    %v2656 = vpop.f32.mrf.mxu0
    %2657 = vmatprep.mubr.f32.mxu0 0.0
    %2658 = vmatmul.mubr.f32.gmra.mxu0 %v2430
    %v2659 = vpop.f32.mrf.mxu0
    %v2660 = vadd.f32 %v2535, %v2659
    %v2661 = vpop.f32.mrf.mxu0
    %2662 = vmatprep.mubr.f32.mxu0 0.0
    %2663 = vmatmul.mubr.f32.gmra.mxu0 %v2431
    %v2664 = vpop.f32.mrf.mxu0
    %v2665 = vadd.f32 %v2540, %v2664
    %v2666 = vpop.f32.mrf.mxu0
    %2667 = vmatprep.mubr.f32.mxu0 0.0
    %2668 = vmatmul.mubr.f32.gmra.mxu0 %v2432
    %v2669 = vpop.f32.mrf.mxu0
    %v2670 = vadd.f32 %v2545, %v2669
    %v2671 = vpop.f32.mrf.mxu0
    %2672 = vmatprep.mubr.f32.mxu0 0.0
    %2673 = vmatmul.mubr.f32.gmra.mxu0 %v2433
    %v2674 = vpop.f32.mrf.mxu0
    %v2675 = vadd.f32 %v2550, %v2674
    %v2676 = vpop.f32.mrf.mxu0
    %2677 = vmatprep.mubr.f32.mxu0 0.0
    %2678 = vmatmul.mubr.f32.gmra.mxu0 %v2434
    %v2679 = vpop.f32.mrf.mxu0
    %v2680 = vadd.f32 %v2555, %v2679
    %v2681 = vpop.f32.mrf.mxu0
    %2682 = vmatprep.mubr.f32.mxu0 0.0
    %2683 = vmatmul.mubr.f32.gmra.mxu0 %v2435
    %v2684 = vpop.f32.mrf.mxu0
    %v2685 = vadd.f32 %v2560, %v2684
    %v2686 = vpop.f32.mrf.mxu0
    %2687 = vmatprep.mubr.f32.mxu0 0.0
    %2688 = vmatmul.mubr.f32.gmra.mxu0 %v2436
    %v2689 = vpop.f32.mrf.mxu0
    %v2690 = vadd.f32 %v2565, %v2689
    %v2691 = vpop.f32.mrf.mxu0
    %2692 = vmatprep.mubr.f32.mxu0 0.0
    %2693 = vmatmul.mubr.f32.gmra.mxu0 %v2437
    %v2694 = vpop.f32.mrf.mxu0
    %v2695 = vadd.f32 %v2570, %v2694
    %v2696 = vpop.f32.mrf.mxu0
    %2697 = vmatprep.mubr.f32.mxu0 0.0
    %2698 = vmatmul.mubr.f32.gmra.mxu0 %v2438
    %v2699 = vpop.f32.mrf.mxu0
    %v2700 = vadd.f32 %v2575, %v2699
    %v2701 = vpop.f32.mrf.mxu0
    %2702 = vmatprep.mubr.f32.mxu0 0.0
    %2703 = vmatmul.mubr.f32.gmra.mxu0 %v2439
    %v2704 = vpop.f32.mrf.mxu0
    %v2705 = vadd.f32 %v2580, %v2704
    %v2706 = vpop.f32.mrf.mxu0
    %2707 = vdwg.mxu0
    %v2708 = vld [vmem:[#allocation3 + $0x785] sm:$0xff]
    %v2709 = vld [vmem:[#allocation3 + $0x78d] sm:$0xff]
    %v2710 = vld [vmem:[#allocation3 + $0x795] sm:$0xff]
    %v2711 = vld [vmem:[#allocation3 + $0x79d] sm:$0xff]
    %v2712 = vld [vmem:[#allocation3 + $0x7a5] sm:$0xff]
    %v2713 = vld [vmem:[#allocation3 + $0x7ad] sm:$0xff]
    %v2714 = vld [vmem:[#allocation3 + $0x7b5] sm:$0xff]
    %v2715 = vld [vmem:[#allocation3 + $0x7bd] sm:$0xff]
    %v2716 = vld [vmem:[#allocation3 + $0x7c5] sm:$0xff]
    %v2717 = vld [vmem:[#allocation3 + $0x7cd] sm:$0xff]
    %v2718 = vld [vmem:[#allocation3 + $0x7d5] sm:$0xff]
    %v2719 = vld [vmem:[#allocation3 + $0x7dd] sm:$0xff]
    %v2720 = vld [vmem:[#allocation3 + $0x7e5] sm:$0xff]
    %v2721 = vld [vmem:[#allocation3 + $0x7ed] sm:$0xff]
    %v2722 = vld [vmem:[#allocation3 + $0x7f5] sm:$0xff]
    %v2723 = vld [vmem:[#allocation3 + $0x7fd] sm:$0xff]
    %v2724 = vld [vmem:[#allocation2 + $0xe] sm:$0xff]
    %v2725 = vld [vmem:[#allocation2 + $0x16] sm:$0xff]
    %v2726 = vld [vmem:[#allocation2 + $0x1e] sm:$0xff]
    %v2727 = vld [vmem:[#allocation2 + $0x26] sm:$0xff]
    %v2728 = vld [vmem:[#allocation2 + $0x2e] sm:$0xff]
    %v2729 = vld [vmem:[#allocation2 + $0x36] sm:$0xff]
    %v2730 = vld [vmem:[#allocation2 + $0x4e] sm:$0xff]
    %v2731 = vld [vmem:[#allocation2 + $0x56] sm:$0xff]
    %v2732 = vld [vmem:[#allocation2 + $0x5e] sm:$0xff]
    %v2733 = vld [vmem:[#allocation2 + $0x66] sm:$0xff]
    %v2734 = vld [vmem:[#allocation2 + $0x6e] sm:$0xff]
    %v2735 = vld [vmem:[#allocation2 + $0x76] sm:$0xff]
    %2736 = vmatprep.subr.mxu0 0.0
    %2737 = vmatpush1.msra.mxu0 %v2723
    %2738 = vmatprep.subr.mxu0 0.0
    %2739 = vmatpush1.msra.mxu0 %v2722
    %2740 = vmatprep.subr.mxu0 0.0
    %2741 = vmatpush1.msra.mxu0 %v2721
    %2742 = vmatprep.subr.mxu0 0.0
    %2743 = vmatpush1.msra.mxu0 %v2720
    %2744 = vmatprep.subr.mxu0 0.0
    %2745 = vmatpush1.msra.mxu0 %v2719
    %2746 = vmatprep.subr.mxu0 0.0
    %2747 = vmatpush1.msra.mxu0 %v2718
    %2748 = vmatprep.subr.mxu0 0.0
    %2749 = vmatpush1.msra.mxu0 %v2717
    %2750 = vmatprep.subr.mxu0 0.0
    %2751 = vmatpush1.msra.mxu0 %v2716
    %2752 = vmatprep.subr.mxu0 0.0
    %2753 = vmatpush1.msra.mxu0 %v2715
    %2754 = vmatprep.subr.mxu0 0.0
    %2755 = vmatpush1.msra.mxu0 %v2714
    %2756 = vmatprep.subr.mxu0 0.0
    %2757 = vmatpush1.msra.mxu0 %v2713
    %2758 = vmatprep.subr.mxu0 0.0
    %2759 = vmatpush1.msra.mxu0 %v2712
    %2760 = vmatprep.subr.mxu0 0.0
    %2761 = vmatpush1.msra.mxu0 %v2711
    %2762 = vmatprep.subr.mxu0 0.0
    %2763 = vmatpush1.msra.mxu0 %v2710
    %2764 = vmatprep.subr.mxu0 0.0
    %2765 = vmatpush1.msra.mxu0 %v2709
    %2766 = vmatprep.subr.mxu0 0.0
    %2767 = vmatpush1.msra.mxu0 %v2708
    %2768 = vmatprep.subr.mxu0 0.0
    %2769 = vmatpush2.msra.mxu0 0.0
    %2770 = vmatprep.subr.mxu0 0.0
    %2771 = vmatpush2.msra.mxu0 0.0
    %2772 = vmatprep.subr.mxu0 0.0
    %2773 = vmatpush2.msra.mxu0 0.0
    %2774 = vmatprep.subr.mxu0 0.0
    %2775 = vmatpush2.msra.mxu0 0.0
    %2776 = vmatprep.subr.mxu0 0.0
    %2777 = vmatpush2.msra.mxu0 0.0
    %2778 = vmatprep.subr.mxu0 0.0
    %2779 = vmatpush2.msra.mxu0 0.0
    %2780 = vmatprep.subr.mxu0 0.0
    %2781 = vmatpush2.msra.mxu0 0.0
    %2782 = vmatprep.subr.mxu0 0.0
    %2783 = vmatpush2.msra.mxu0 0.0
    %2784 = vmatprep.subr.mxu0 0.0
    %2785 = vmatpush2.msra.mxu0 0.0
    %2786 = vmatprep.subr.mxu0 0.0
    %2787 = vmatpush2.msra.mxu0 0.0
    %2788 = vmatprep.subr.mxu0 0.0
    %2789 = vmatpush2.msra.mxu0 0.0
    %2790 = vmatprep.subr.mxu0 0.0
    %2791 = vmatpush2.msra.mxu0 0.0
    %2792 = vmatprep.subr.mxu0 0.0
    %2793 = vmatpush2.msra.mxu0 0.0
    %2794 = vmatprep.subr.mxu0 0.0
    %2795 = vmatpush2.msra.mxu0 0.0
    %2796 = vmatprep.subr.mxu0 0.0
    %2797 = vmatpush2.msra.mxu0 0.0
    %2798 = vmatprep.subr.mxu0 0.0
    %2799 = vmatpush2.msra.mxu0 0.0
    %2800 = vmatprep.mubr.f32.mxu0 0.0
    %2801 = vmatmul.mubr.f32.gmra.mxu0 %v2724
    %v2802 = vpop.f32.mrf.mxu0
    %v2803 = vadd.f32 0.0, %v2802
    %v2804 = vpop.f32.mrf.mxu0
    %2805 = vmatprep.mubr.f32.mxu0 0.0
    %2806 = vmatmul.mubr.f32.gmra.mxu0 %v2725
    %v2807 = vpop.f32.mrf.mxu0
    %v2808 = vadd.f32 0.0, %v2807
    %v2809 = vpop.f32.mrf.mxu0
    %2810 = vmatprep.mubr.f32.mxu0 0.0
    %2811 = vmatmul.mubr.f32.gmra.mxu0 %v2726
    %v2812 = vpop.f32.mrf.mxu0
    %v2813 = vadd.f32 0.0, %v2812
    %v2814 = vpop.f32.mrf.mxu0
    %2815 = vmatprep.mubr.f32.mxu0 0.0
    %2816 = vmatmul.mubr.f32.gmra.mxu0 %v2727
    %v2817 = vpop.f32.mrf.mxu0
    %v2818 = vadd.f32 0.0, %v2817
    %v2819 = vpop.f32.mrf.mxu0
    %2820 = vmatprep.mubr.f32.mxu0 0.0
    %2821 = vmatmul.mubr.f32.gmra.mxu0 %v2728
    %v2822 = vpop.f32.mrf.mxu0
    %v2823 = vadd.f32 0.0, %v2822
    %v2824 = vpop.f32.mrf.mxu0
    %2825 = vmatprep.mubr.f32.mxu0 0.0
    %2826 = vmatmul.mubr.f32.gmra.mxu0 %v2729
    %v2827 = vpop.f32.mrf.mxu0
    %v2828 = vadd.f32 0.0, %v2827
    %v2829 = vpop.f32.mrf.mxu0
    %2830 = vmatprep.mubr.f32.mxu0 0.0
    %2831 = vmatmul.mubr.f32.gmra.mxu0 %v2730
    %v2832 = vpop.f32.mrf.mxu0
    %v2833 = vadd.f32 0.0, %v2832
    %v2834 = vpop.f32.mrf.mxu0
    %2835 = vmatprep.mubr.f32.mxu0 0.0
    %2836 = vmatmul.mubr.f32.gmra.mxu0 %v2731
    %v2837 = vpop.f32.mrf.mxu0
    %v2838 = vadd.f32 0.0, %v2837
    %v2839 = vpop.f32.mrf.mxu0
    %2840 = vmatprep.mubr.f32.mxu0 0.0
    %2841 = vmatmul.mubr.f32.gmra.mxu0 %v2732
    %v2842 = vpop.f32.mrf.mxu0
    %v2843 = vadd.f32 0.0, %v2842
    %v2844 = vpop.f32.mrf.mxu0
    %2845 = vmatprep.mubr.f32.mxu0 0.0
    %2846 = vmatmul.mubr.f32.gmra.mxu0 %v2733
    %v2847 = vpop.f32.mrf.mxu0
    %v2848 = vadd.f32 0.0, %v2847
    %v2849 = vpop.f32.mrf.mxu0
    %2850 = vmatprep.mubr.f32.mxu0 0.0
    %2851 = vmatmul.mubr.f32.gmra.mxu0 %v2734
    %v2852 = vpop.f32.mrf.mxu0
    %v2853 = vadd.f32 0.0, %v2852
    %v2854 = vpop.f32.mrf.mxu0
    %2855 = vmatprep.mubr.f32.mxu0 0.0
    %2856 = vmatmul.mubr.f32.gmra.mxu0 %v2735
    %v2857 = vpop.f32.mrf.mxu0
    %v2858 = vadd.f32 0.0, %v2857
    %v2859 = vpop.f32.mrf.mxu0
    %2860 = vdwg.mxu0
    %v2861 = vadd.f32 %v2650, %v2803
    %v2862 = vadd.f32 %v2655, %v2808
    %v2863 = vadd.f32 %v2660, %v2813
    %v2864 = vadd.f32 %v2665, %v2818
    %v2865 = vadd.f32 %v2670, %v2823
    %v2866 = vadd.f32 %v2675, %v2828
    %v2867 = vadd.f32 %v2680, %v2833
    %v2868 = vadd.f32 %v2685, %v2838
    %v2869 = vadd.f32 %v2690, %v2843
    %v2870 = vadd.f32 %v2695, %v2848
    %v2871 = vadd.f32 %v2700, %v2853
    %v2872 = vadd.f32 %v2705, %v2858
    %v2873 = vld [vmem:[#allocation3 + $0x805] sm:$0xff]
    %v2874 = vld [vmem:[#allocation3 + $0x80d] sm:$0xff]
    %v2875 = vld [vmem:[#allocation3 + $0x815] sm:$0xff]
    %v2876 = vld [vmem:[#allocation3 + $0x81d] sm:$0xff]
    %v2877 = vld [vmem:[#allocation3 + $0x825] sm:$0xff]
    %v2878 = vld [vmem:[#allocation3 + $0x82d] sm:$0xff]
    %v2879 = vld [vmem:[#allocation3 + $0x835] sm:$0xff]
    %v2880 = vld [vmem:[#allocation3 + $0x83d] sm:$0xff]
    %v2881 = vld [vmem:[#allocation3 + $0x845] sm:$0xff]
    %v2882 = vld [vmem:[#allocation3 + $0x84d] sm:$0xff]
    %v2883 = vld [vmem:[#allocation3 + $0x855] sm:$0xff]
    %v2884 = vld [vmem:[#allocation3 + $0x85d] sm:$0xff]
    %v2885 = vld [vmem:[#allocation3 + $0x865] sm:$0xff]
    %v2886 = vld [vmem:[#allocation3 + $0x86d] sm:$0xff]
    %v2887 = vld [vmem:[#allocation3 + $0x875] sm:$0xff]
    %v2888 = vld [vmem:[#allocation3 + $0x87d] sm:$0xff]
    %v2889 = vld [vmem:[#allocation2 + $0xf] sm:$0xff]
    %v2890 = vld [vmem:[#allocation2 + $0x17] sm:$0xff]
    %v2891 = vld [vmem:[#allocation2 + $0x1f] sm:$0xff]
    %v2892 = vld [vmem:[#allocation2 + $0x27] sm:$0xff]
    %v2893 = vld [vmem:[#allocation2 + $0x2f] sm:$0xff]
    %v2894 = vld [vmem:[#allocation2 + $0x37] sm:$0xff]
    %v2895 = vld [vmem:[#allocation2 + $0x4f] sm:$0xff]
    %v2896 = vld [vmem:[#allocation2 + $0x57] sm:$0xff]
    %v2897 = vld [vmem:[#allocation2 + $0x5f] sm:$0xff]
    %v2898 = vld [vmem:[#allocation2 + $0x67] sm:$0xff]
    %v2899 = vld [vmem:[#allocation2 + $0x6f] sm:$0xff]
    %v2900 = vld [vmem:[#allocation2 + $0x77] sm:$0xff]
    %2901 = vmatprep.subr.mxu0 0.0
    %2902 = vmatpush1.msra.mxu0 %v2888
    %2903 = vmatprep.subr.mxu0 0.0
    %2904 = vmatpush1.msra.mxu0 %v2887
    %2905 = vmatprep.subr.mxu0 0.0
    %2906 = vmatpush1.msra.mxu0 %v2886
    %2907 = vmatprep.subr.mxu0 0.0
    %2908 = vmatpush1.msra.mxu0 %v2885
    %2909 = vmatprep.subr.mxu0 0.0
    %2910 = vmatpush1.msra.mxu0 %v2884
    %2911 = vmatprep.subr.mxu0 0.0
    %2912 = vmatpush1.msra.mxu0 %v2883
    %2913 = vmatprep.subr.mxu0 0.0
    %2914 = vmatpush1.msra.mxu0 %v2882
    %2915 = vmatprep.subr.mxu0 0.0
    %2916 = vmatpush1.msra.mxu0 %v2881
    %2917 = vmatprep.subr.mxu0 0.0
    %2918 = vmatpush1.msra.mxu0 %v2880
    %2919 = vmatprep.subr.mxu0 0.0
    %2920 = vmatpush1.msra.mxu0 %v2879
    %2921 = vmatprep.subr.mxu0 0.0
    %2922 = vmatpush1.msra.mxu0 %v2878
    %2923 = vmatprep.subr.mxu0 0.0
    %2924 = vmatpush1.msra.mxu0 %v2877
    %2925 = vmatprep.subr.mxu0 0.0
    %2926 = vmatpush1.msra.mxu0 %v2876
    %2927 = vmatprep.subr.mxu0 0.0
    %2928 = vmatpush1.msra.mxu0 %v2875
    %2929 = vmatprep.subr.mxu0 0.0
    %2930 = vmatpush1.msra.mxu0 %v2874
    %2931 = vmatprep.subr.mxu0 0.0
    %2932 = vmatpush1.msra.mxu0 %v2873
    %2933 = vmatprep.subr.mxu0 0.0
    %2934 = vmatpush2.msra.mxu0 0.0
    %2935 = vmatprep.subr.mxu0 0.0
    %2936 = vmatpush2.msra.mxu0 0.0
    %2937 = vmatprep.subr.mxu0 0.0
    %2938 = vmatpush2.msra.mxu0 0.0
    %2939 = vmatprep.subr.mxu0 0.0
    %2940 = vmatpush2.msra.mxu0 0.0
    %2941 = vmatprep.subr.mxu0 0.0
    %2942 = vmatpush2.msra.mxu0 0.0
    %2943 = vmatprep.subr.mxu0 0.0
    %2944 = vmatpush2.msra.mxu0 0.0
    %2945 = vmatprep.subr.mxu0 0.0
    %2946 = vmatpush2.msra.mxu0 0.0
    %2947 = vmatprep.subr.mxu0 0.0
    %2948 = vmatpush2.msra.mxu0 0.0
    %2949 = vmatprep.subr.mxu0 0.0
    %2950 = vmatpush2.msra.mxu0 0.0
    %2951 = vmatprep.subr.mxu0 0.0
    %2952 = vmatpush2.msra.mxu0 0.0
    %2953 = vmatprep.subr.mxu0 0.0
    %2954 = vmatpush2.msra.mxu0 0.0
    %2955 = vmatprep.subr.mxu0 0.0
    %2956 = vmatpush2.msra.mxu0 0.0
    %2957 = vmatprep.subr.mxu0 0.0
    %2958 = vmatpush2.msra.mxu0 0.0
    %2959 = vmatprep.subr.mxu0 0.0
    %2960 = vmatpush2.msra.mxu0 0.0
    %2961 = vmatprep.subr.mxu0 0.0
    %2962 = vmatpush2.msra.mxu0 0.0
    %2963 = vmatprep.subr.mxu0 0.0
    %2964 = vmatpush2.msra.mxu0 0.0
    %2965 = vmatprep.mubr.f32.mxu0 0.0
    %2966 = vmatmul.mubr.f32.gmra.mxu0 %v2889
    %v2967 = vpop.f32.mrf.mxu0
    %v2968 = vadd.f32 0.0, %v2967
    %v2969 = vpop.f32.mrf.mxu0
    %2970 = vmatprep.mubr.f32.mxu0 0.0
    %2971 = vmatmul.mubr.f32.gmra.mxu0 %v2890
    %v2972 = vpop.f32.mrf.mxu0
    %v2973 = vadd.f32 0.0, %v2972
    %v2974 = vpop.f32.mrf.mxu0
    %2975 = vmatprep.mubr.f32.mxu0 0.0
    %2976 = vmatmul.mubr.f32.gmra.mxu0 %v2891
    %v2977 = vpop.f32.mrf.mxu0
    %v2978 = vadd.f32 0.0, %v2977
    %v2979 = vpop.f32.mrf.mxu0
    %2980 = vmatprep.mubr.f32.mxu0 0.0
    %2981 = vmatmul.mubr.f32.gmra.mxu0 %v2892
    %v2982 = vpop.f32.mrf.mxu0
    %v2983 = vadd.f32 0.0, %v2982
    %v2984 = vpop.f32.mrf.mxu0
    %2985 = vmatprep.mubr.f32.mxu0 0.0
    %2986 = vmatmul.mubr.f32.gmra.mxu0 %v2893
    %v2987 = vpop.f32.mrf.mxu0
    %v2988 = vadd.f32 0.0, %v2987
    %v2989 = vpop.f32.mrf.mxu0
    %2990 = vmatprep.mubr.f32.mxu0 0.0
    %2991 = vmatmul.mubr.f32.gmra.mxu0 %v2894
    %v2992 = vpop.f32.mrf.mxu0
    %v2993 = vadd.f32 0.0, %v2992
    %v2994 = vpop.f32.mrf.mxu0
    %2995 = vmatprep.mubr.f32.mxu0 0.0
    %2996 = vmatmul.mubr.f32.gmra.mxu0 %v2895
    %v2997 = vpop.f32.mrf.mxu0
    %v2998 = vadd.f32 0.0, %v2997
    %v2999 = vpop.f32.mrf.mxu0
    %3000 = vmatprep.mubr.f32.mxu0 0.0
    %3001 = vmatmul.mubr.f32.gmra.mxu0 %v2896
    %v3002 = vpop.f32.mrf.mxu0
    %v3003 = vadd.f32 0.0, %v3002
    %v3004 = vpop.f32.mrf.mxu0
    %3005 = vmatprep.mubr.f32.mxu0 0.0
    %3006 = vmatmul.mubr.f32.gmra.mxu0 %v2897
    %v3007 = vpop.f32.mrf.mxu0
    %v3008 = vadd.f32 0.0, %v3007
    %v3009 = vpop.f32.mrf.mxu0
    %3010 = vmatprep.mubr.f32.mxu0 0.0
    %3011 = vmatmul.mubr.f32.gmra.mxu0 %v2898
    %v3012 = vpop.f32.mrf.mxu0
    %v3013 = vadd.f32 0.0, %v3012
    %v3014 = vpop.f32.mrf.mxu0
    %3015 = vmatprep.mubr.f32.mxu0 0.0
    %3016 = vmatmul.mubr.f32.gmra.mxu0 %v2899
    %v3017 = vpop.f32.mrf.mxu0
    %v3018 = vadd.f32 0.0, %v3017
    %v3019 = vpop.f32.mrf.mxu0
    %3020 = vmatprep.mubr.f32.mxu0 0.0
    %3021 = vmatmul.mubr.f32.gmra.mxu0 %v2900
    %v3022 = vpop.f32.mrf.mxu0
    %v3023 = vadd.f32 0.0, %v3022
    %v3024 = vpop.f32.mrf.mxu0
    %3025 = vdwg.mxu0
    %v3026 = vadd.f32 %v2861, %v2968
    %v3027 = vadd.f32 %v2862, %v2973
    %v3028 = vadd.f32 %v2863, %v2978
    %v3029 = vadd.f32 %v2864, %v2983
    %v3030 = vadd.f32 %v2865, %v2988
    %v3031 = vadd.f32 %v2866, %v2993
    %v3032 = vadd.f32 %v2867, %v2998
    %v3033 = vadd.f32 %v2868, %v3003
    %v3034 = vadd.f32 %v2869, %v3008
    %v3035 = vadd.f32 %v2870, %v3013
    %v3036 = vadd.f32 %v2871, %v3018
    %v3037 = vadd.f32 %v2872, %v3023
    %v3038 = vld [vmem:[#allocation3 + $0x885] sm:$0xff]
    %v3039 = vld [vmem:[#allocation3 + $0x88d] sm:$0xff]
    %v3040 = vld [vmem:[#allocation3 + $0x895] sm:$0xff]
    %v3041 = vld [vmem:[#allocation3 + $0x89d] sm:$0xff]
    %v3042 = vld [vmem:[#allocation3 + $0x8a5] sm:$0xff]
    %v3043 = vld [vmem:[#allocation3 + $0x8ad] sm:$0xff]
    %v3044 = vld [vmem:[#allocation3 + $0x8b5] sm:$0xff]
    %v3045 = vld [vmem:[#allocation3 + $0x8bd] sm:$0xff]
    %v3046 = vld [vmem:[#allocation3 + $0x8c5] sm:$0xff]
    %v3047 = vld [vmem:[#allocation3 + $0x8cd] sm:$0xff]
    %v3048 = vld [vmem:[#allocation3 + $0x8d5] sm:$0xff]
    %v3049 = vld [vmem:[#allocation3 + $0x8dd] sm:$0xff]
    %v3050 = vld [vmem:[#allocation3 + $0x8e5] sm:$0xff]
    %v3051 = vld [vmem:[#allocation3 + $0x8ed] sm:$0xff]
    %v3052 = vld [vmem:[#allocation3 + $0x8f5] sm:$0xff]
    %v3053 = vld [vmem:[#allocation3 + $0x8fd] sm:$0xff]
    %3054 = vmatprep.subr.mxu0 0.0
    %3055 = vmatpush1.msra.mxu0 %v3053
    %3056 = vmatprep.subr.mxu0 0.0
    %3057 = vmatpush1.msra.mxu0 %v3052
    %3058 = vmatprep.subr.mxu0 0.0
    %3059 = vmatpush1.msra.mxu0 %v3051
    %3060 = vmatprep.subr.mxu0 0.0
    %3061 = vmatpush1.msra.mxu0 %v3050
    %3062 = vmatprep.subr.mxu0 0.0
    %3063 = vmatpush1.msra.mxu0 %v3049
    %3064 = vmatprep.subr.mxu0 0.0
    %3065 = vmatpush1.msra.mxu0 %v3048
    %3066 = vmatprep.subr.mxu0 0.0
    %3067 = vmatpush1.msra.mxu0 %v3047
    %3068 = vmatprep.subr.mxu0 0.0
    %3069 = vmatpush1.msra.mxu0 %v3046
    %3070 = vmatprep.subr.mxu0 0.0
    %3071 = vmatpush1.msra.mxu0 %v3045
    %3072 = vmatprep.subr.mxu0 0.0
    %3073 = vmatpush1.msra.mxu0 %v3044
    %3074 = vmatprep.subr.mxu0 0.0
    %3075 = vmatpush1.msra.mxu0 %v3043
    %3076 = vmatprep.subr.mxu0 0.0
    %3077 = vmatpush1.msra.mxu0 %v3042
    %3078 = vmatprep.subr.mxu0 0.0
    %3079 = vmatpush1.msra.mxu0 %v3041
    %3080 = vmatprep.subr.mxu0 0.0
    %3081 = vmatpush1.msra.mxu0 %v3040
    %3082 = vmatprep.subr.mxu0 0.0
    %3083 = vmatpush1.msra.mxu0 %v3039
    %3084 = vmatprep.subr.mxu0 0.0
    %3085 = vmatpush1.msra.mxu0 %v3038
    %3086 = vmatprep.subr.mxu0 0.0
    %3087 = vmatpush2.msra.mxu0 0.0
    %3088 = vmatprep.subr.mxu0 0.0
    %3089 = vmatpush2.msra.mxu0 0.0
    %3090 = vmatprep.subr.mxu0 0.0
    %3091 = vmatpush2.msra.mxu0 0.0
    %3092 = vmatprep.subr.mxu0 0.0
    %3093 = vmatpush2.msra.mxu0 0.0
    %3094 = vmatprep.subr.mxu0 0.0
    %3095 = vmatpush2.msra.mxu0 0.0
    %3096 = vmatprep.subr.mxu0 0.0
    %3097 = vmatpush2.msra.mxu0 0.0
    %3098 = vmatprep.subr.mxu0 0.0
    %3099 = vmatpush2.msra.mxu0 0.0
    %3100 = vmatprep.subr.mxu0 0.0
    %3101 = vmatpush2.msra.mxu0 0.0
    %3102 = vmatprep.subr.mxu0 0.0
    %3103 = vmatpush2.msra.mxu0 0.0
    %3104 = vmatprep.subr.mxu0 0.0
    %3105 = vmatpush2.msra.mxu0 0.0
    %3106 = vmatprep.subr.mxu0 0.0
    %3107 = vmatpush2.msra.mxu0 0.0
    %3108 = vmatprep.subr.mxu0 0.0
    %3109 = vmatpush2.msra.mxu0 0.0
    %3110 = vmatprep.subr.mxu0 0.0
    %3111 = vmatpush2.msra.mxu0 0.0
    %3112 = vmatprep.subr.mxu0 0.0
    %3113 = vmatpush2.msra.mxu0 0.0
    %3114 = vmatprep.subr.mxu0 0.0
    %3115 = vmatpush2.msra.mxu0 0.0
    %3116 = vmatprep.subr.mxu0 0.0
    %3117 = vmatpush2.msra.mxu0 0.0
    %3118 = vmatprep.mubr.f32.mxu0 0.0
    %3119 = vmatmul.mubr.f32.gmra.mxu0 %v2388
    %v3120 = vpop.f32.mrf.mxu0
    %v3121 = vadd.f32 0.0, %v3120
    %v3122 = vpop.f32.mrf.mxu0
    %3123 = vmatprep.mubr.f32.mxu0 0.0
    %3124 = vmatmul.mubr.f32.gmra.mxu0 %v2389
    %v3125 = vpop.f32.mrf.mxu0
    %v3126 = vadd.f32 0.0, %v3125
    %v3127 = vpop.f32.mrf.mxu0
    %3128 = vmatprep.mubr.f32.mxu0 0.0
    %3129 = vmatmul.mubr.f32.gmra.mxu0 %v2390
    %v3130 = vpop.f32.mrf.mxu0
    %v3131 = vadd.f32 0.0, %v3130
    %v3132 = vpop.f32.mrf.mxu0
    %3133 = vmatprep.mubr.f32.mxu0 0.0
    %3134 = vmatmul.mubr.f32.gmra.mxu0 %v2391
    %v3135 = vpop.f32.mrf.mxu0
    %v3136 = vadd.f32 0.0, %v3135
    %v3137 = vpop.f32.mrf.mxu0
    %3138 = vmatprep.mubr.f32.mxu0 0.0
    %3139 = vmatmul.mubr.f32.gmra.mxu0 %v2392
    %v3140 = vpop.f32.mrf.mxu0
    %v3141 = vadd.f32 0.0, %v3140
    %v3142 = vpop.f32.mrf.mxu0
    %3143 = vmatprep.mubr.f32.mxu0 0.0
    %3144 = vmatmul.mubr.f32.gmra.mxu0 %v2393
    %v3145 = vpop.f32.mrf.mxu0
    %v3146 = vadd.f32 0.0, %v3145
    %v3147 = vpop.f32.mrf.mxu0
    %3148 = vmatprep.mubr.f32.mxu0 0.0
    %3149 = vmatmul.mubr.f32.gmra.mxu0 %v2394
    %v3150 = vpop.f32.mrf.mxu0
    %v3151 = vadd.f32 0.0, %v3150
    %v3152 = vpop.f32.mrf.mxu0
    %3153 = vmatprep.mubr.f32.mxu0 0.0
    %3154 = vmatmul.mubr.f32.gmra.mxu0 %v2395
    %v3155 = vpop.f32.mrf.mxu0
    %v3156 = vadd.f32 0.0, %v3155
    %v3157 = vpop.f32.mrf.mxu0
    %3158 = vmatprep.mubr.f32.mxu0 0.0
    %3159 = vmatmul.mubr.f32.gmra.mxu0 %v2396
    %v3160 = vpop.f32.mrf.mxu0
    %v3161 = vadd.f32 0.0, %v3160
    %v3162 = vpop.f32.mrf.mxu0
    %3163 = vmatprep.mubr.f32.mxu0 0.0
    %3164 = vmatmul.mubr.f32.gmra.mxu0 %v2397
    %v3165 = vpop.f32.mrf.mxu0
    %v3166 = vadd.f32 0.0, %v3165
    %v3167 = vpop.f32.mrf.mxu0
    %3168 = vmatprep.mubr.f32.mxu0 0.0
    %3169 = vmatmul.mubr.f32.gmra.mxu0 %v2398
    %v3170 = vpop.f32.mrf.mxu0
    %v3171 = vadd.f32 0.0, %v3170
    %v3172 = vpop.f32.mrf.mxu0
    %3173 = vmatprep.mubr.f32.mxu0 0.0
    %3174 = vmatmul.mubr.f32.gmra.mxu0 %v2399
    %v3175 = vpop.f32.mrf.mxu0
    %v3176 = vadd.f32 0.0, %v3175
    %v3177 = vpop.f32.mrf.mxu0
    %3178 = vdwg.mxu0
    %v3179 = vadd.f32 %v3026, %v3121
    %v3180 = vadd.f32 %v3027, %v3126
    %v3181 = vadd.f32 %v3028, %v3131
    %v3182 = vadd.f32 %v3029, %v3136
    %v3183 = vadd.f32 %v3030, %v3141
    %v3184 = vadd.f32 %v3031, %v3146
    %v3185 = vadd.f32 %v3032, %v3151
    %v3186 = vadd.f32 %v3033, %v3156
    %v3187 = vadd.f32 %v3034, %v3161
    %v3188 = vadd.f32 %v3035, %v3166
    %v3189 = vadd.f32 %v3036, %v3171
    %v3190 = vadd.f32 %v3037, %v3176
    %v3191 = vld [vmem:[#allocation3 + $0x908] sm:$0x1]
    %v3192 = vlaneseq
    %v3193 = vshrl.u32 %v3192, 7
    %v3194 = vsub.s32 0, %v3193
    %v3195 = vrot.slane %v3191, %v3194
    %v3196 = vadd.f32 %v3179, %v3195
    %v3197 = vadd.f32 %v3180, %v3195
    %v3198 = vadd.f32 %v3181, %v3195
    %v3199 = vadd.f32 %v3182, %v3195
    %v3200 = vadd.f32 %v3183, %v3195
    %v3201 = vadd.f32 %v3184, %v3195
    %v3202 = vadd.f32 %v3185, %v3195
    %v3203 = vadd.f32 %v3186, %v3195
    %v3204 = vadd.f32 %v3187, %v3195
    %v3205 = vadd.f32 %v3188, %v3195
    %v3206 = vadd.f32 %v3189, %v3195
    %v3207 = vadd.f32 %v3190, %v3195
    %v3208 = vmax.f32 %v3196, 0.0
    %v3209 = vmax.f32 %v3197, 0.0
    %v3210 = vmax.f32 %v3198, 0.0
    %v3211 = vmax.f32 %v3199, 0.0
    %v3212 = vmax.f32 %v3200, 0.0
    %v3213 = vmax.f32 %v3201, 0.0
    %v3214 = vmax.f32 %v3202, 0.0
    %v3215 = vmax.f32 %v3203, 0.0
    %v3216 = vmax.f32 %v3204, 0.0
    %v3217 = vmax.f32 %v3205, 0.0
    %v3218 = vmax.f32 %v3206, 0.0
    %v3219 = vmax.f32 %v3207, 0.0
    %v3220 = vadd.f32 %v3208, %v2388
    %v3221 = vadd.f32 %v3209, %v2389
    %v3222 = vadd.f32 %v3210, %v2390
    %v3223 = vadd.f32 %v3211, %v2391
    %v3224 = vadd.f32 %v3212, %v2392
    %v3225 = vadd.f32 %v3213, %v2393
    %v3226 = vadd.f32 %v3214, %v2394
    %v3227 = vadd.f32 %v3215, %v2395
    %v3228 = vadd.f32 %v3216, %v2396
    %v3229 = vadd.f32 %v3217, %v2397
    %v3230 = vadd.f32 %v3218, %v2398
    %v3231 = vadd.f32 %v3219, %v2399
    %v3232 = vld [vmem:[#allocation3 + $0x909] sm:$0xff]
    %v3233 = vld [vmem:[#allocation3 + $0x911] sm:$0xff]
    %v3234 = vld [vmem:[#allocation3 + $0x919] sm:$0xff]
    %v3235 = vld [vmem:[#allocation3 + $0x921] sm:$0xff]
    %v3236 = vld [vmem:[#allocation3 + $0x929] sm:$0xff]
    %v3237 = vld [vmem:[#allocation3 + $0x931] sm:$0xff]
    %v3238 = vld [vmem:[#allocation3 + $0x939] sm:$0xff]
    %v3239 = vld [vmem:[#allocation3 + $0x941] sm:$0xff]
    %v3240 = vld [vmem:[#allocation3 + $0x949] sm:$0xff]
    %v3241 = vld [vmem:[#allocation3 + $0x951] sm:$0xff]
    %v3242 = vld [vmem:[#allocation3 + $0x959] sm:$0xff]
    %v3243 = vld [vmem:[#allocation3 + $0x961] sm:$0xff]
    %v3244 = vld [vmem:[#allocation3 + $0x969] sm:$0xff]
    %v3245 = vld [vmem:[#allocation3 + $0x971] sm:$0xff]
    %v3246 = vld [vmem:[#allocation3 + $0x979] sm:$0xff]
    %v3247 = vld [vmem:[#allocation3 + $0x981] sm:$0xff]
    %v3248 = vld [vmem:[#allocation3 + $0x989] sm:$0x1]
    %v3249 = vlaneseq
    %v3250 = vshrl.u32 %v3249, 7
    %v3251 = vsub.s32 0, %v3250
    %v3252 = vrot.slane %v3248, %v3251
    %3253 = vmatprep.subr.mxu0 0.0
    %3254 = vmatpush1.msra.mxu0 %v3247
    %3255 = vmatprep.subr.mxu0 0.0
    %3256 = vmatpush1.msra.mxu0 %v3246
    %3257 = vmatprep.subr.mxu0 0.0
    %3258 = vmatpush1.msra.mxu0 %v3245
    %3259 = vmatprep.subr.mxu0 0.0
    %3260 = vmatpush1.msra.mxu0 %v3244
    %3261 = vmatprep.subr.mxu0 0.0
    %3262 = vmatpush1.msra.mxu0 %v3243
    %3263 = vmatprep.subr.mxu0 0.0
    %3264 = vmatpush1.msra.mxu0 %v3242
    %3265 = vmatprep.subr.mxu0 0.0
    %3266 = vmatpush1.msra.mxu0 %v3241
    %3267 = vmatprep.subr.mxu0 0.0
    %3268 = vmatpush1.msra.mxu0 %v3240
    %3269 = vmatprep.subr.mxu0 0.0
    %3270 = vmatpush1.msra.mxu0 %v3239
    %3271 = vmatprep.subr.mxu0 0.0
    %3272 = vmatpush1.msra.mxu0 %v3238
    %3273 = vmatprep.subr.mxu0 0.0
    %3274 = vmatpush1.msra.mxu0 %v3237
    %3275 = vmatprep.subr.mxu0 0.0
    %3276 = vmatpush1.msra.mxu0 %v3236
    %3277 = vmatprep.subr.mxu0 0.0
    %3278 = vmatpush1.msra.mxu0 %v3235
    %3279 = vmatprep.subr.mxu0 0.0
    %3280 = vmatpush1.msra.mxu0 %v3234
    %3281 = vmatprep.subr.mxu0 0.0
    %3282 = vmatpush1.msra.mxu0 %v3233
    %3283 = vmatprep.subr.mxu0 0.0
    %3284 = vmatpush1.msra.mxu0 %v3232
    %3285 = vmatprep.subr.mxu0 0.0
    %3286 = vmatpush2.msra.mxu0 0.0
    %3287 = vmatprep.subr.mxu0 0.0
    %3288 = vmatpush2.msra.mxu0 0.0
    %3289 = vmatprep.subr.mxu0 0.0
    %3290 = vmatpush2.msra.mxu0 0.0
    %3291 = vmatprep.subr.mxu0 0.0
    %3292 = vmatpush2.msra.mxu0 0.0
    %3293 = vmatprep.subr.mxu0 0.0
    %3294 = vmatpush2.msra.mxu0 0.0
    %3295 = vmatprep.subr.mxu0 0.0
    %3296 = vmatpush2.msra.mxu0 0.0
    %3297 = vmatprep.subr.mxu0 0.0
    %3298 = vmatpush2.msra.mxu0 0.0
    %3299 = vmatprep.subr.mxu0 0.0
    %3300 = vmatpush2.msra.mxu0 0.0
    %3301 = vmatprep.subr.mxu0 0.0
    %3302 = vmatpush2.msra.mxu0 0.0
    %3303 = vmatprep.subr.mxu0 0.0
    %3304 = vmatpush2.msra.mxu0 0.0
    %3305 = vmatprep.subr.mxu0 0.0
    %3306 = vmatpush2.msra.mxu0 0.0
    %3307 = vmatprep.subr.mxu0 0.0
    %3308 = vmatpush2.msra.mxu0 0.0
    %3309 = vmatprep.subr.mxu0 0.0
    %3310 = vmatpush2.msra.mxu0 0.0
    %3311 = vmatprep.subr.mxu0 0.0
    %3312 = vmatpush2.msra.mxu0 0.0
    %3313 = vmatprep.subr.mxu0 0.0
    %3314 = vmatpush2.msra.mxu0 0.0
    %3315 = vmatprep.subr.mxu0 0.0
    %3316 = vmatpush2.msra.mxu0 0.0
    %3317 = vmatprep.mubr.f32.mxu0 0.0
    %3318 = vmatmul.mubr.f32.gmra.mxu0 %v3220
    %v3319 = vpop.f32.mrf.mxu0
    %v3320 = vadd.f32 %v3252, %v3319
    %v3321 = vpop.f32.mrf.mxu0
    %3322 = vmatprep.mubr.f32.mxu0 0.0
    %3323 = vmatmul.mubr.f32.gmra.mxu0 %v3221
    %v3324 = vpop.f32.mrf.mxu0
    %v3325 = vadd.f32 %v3252, %v3324
    %v3326 = vpop.f32.mrf.mxu0
    %3327 = vmatprep.mubr.f32.mxu0 0.0
    %3328 = vmatmul.mubr.f32.gmra.mxu0 %v3222
    %v3329 = vpop.f32.mrf.mxu0
    %v3330 = vadd.f32 %v3252, %v3329
    %v3331 = vpop.f32.mrf.mxu0
    %3332 = vmatprep.mubr.f32.mxu0 0.0
    %3333 = vmatmul.mubr.f32.gmra.mxu0 %v3223
    %v3334 = vpop.f32.mrf.mxu0
    %v3335 = vadd.f32 %v3252, %v3334
    %v3336 = vpop.f32.mrf.mxu0
    %3337 = vmatprep.mubr.f32.mxu0 0.0
    %3338 = vmatmul.mubr.f32.gmra.mxu0 %v3224
    %v3339 = vpop.f32.mrf.mxu0
    %v3340 = vadd.f32 %v3252, %v3339
    %v3341 = vpop.f32.mrf.mxu0
    %3342 = vmatprep.mubr.f32.mxu0 0.0
    %3343 = vmatmul.mubr.f32.gmra.mxu0 %v3225
    %v3344 = vpop.f32.mrf.mxu0
    %v3345 = vadd.f32 %v3252, %v3344
    %v3346 = vpop.f32.mrf.mxu0
    %3347 = vmatprep.mubr.f32.mxu0 0.0
    %3348 = vmatmul.mubr.f32.gmra.mxu0 %v3226
    %v3349 = vpop.f32.mrf.mxu0
    %v3350 = vadd.f32 %v3252, %v3349
    %v3351 = vpop.f32.mrf.mxu0
    %3352 = vmatprep.mubr.f32.mxu0 0.0
    %3353 = vmatmul.mubr.f32.gmra.mxu0 %v3227
    %v3354 = vpop.f32.mrf.mxu0
    %v3355 = vadd.f32 %v3252, %v3354
    %v3356 = vpop.f32.mrf.mxu0
    %3357 = vmatprep.mubr.f32.mxu0 0.0
    %3358 = vmatmul.mubr.f32.gmra.mxu0 %v3228
    %v3359 = vpop.f32.mrf.mxu0
    %v3360 = vadd.f32 %v3252, %v3359
    %v3361 = vpop.f32.mrf.mxu0
    %3362 = vmatprep.mubr.f32.mxu0 0.0
    %3363 = vmatmul.mubr.f32.gmra.mxu0 %v3229
    %v3364 = vpop.f32.mrf.mxu0
    %v3365 = vadd.f32 %v3252, %v3364
    %v3366 = vpop.f32.mrf.mxu0
    %3367 = vmatprep.mubr.f32.mxu0 0.0
    %3368 = vmatmul.mubr.f32.gmra.mxu0 %v3230
    %v3369 = vpop.f32.mrf.mxu0
    %v3370 = vadd.f32 %v3252, %v3369
    %v3371 = vpop.f32.mrf.mxu0
    %3372 = vmatprep.mubr.f32.mxu0 0.0
    %3373 = vmatmul.mubr.f32.gmra.mxu0 %v3231
    %v3374 = vpop.f32.mrf.mxu0
    %v3375 = vadd.f32 %v3252, %v3374
    %v3376 = vpop.f32.mrf.mxu0
    %3377 = vdwg.mxu0
    %3378 = vst [vmem:[#allocation6] sm:$0xff] %v3320
    %3379 = vst [vmem:[#allocation6 + $0x8] sm:$0xff] %v3325
    %3380 = vst [vmem:[#allocation6 + $0x10] sm:$0xff] %v3330
    %3381 = vst [vmem:[#allocation6 + $0x18] sm:$0xff] %v3335
    %3382 = vst [vmem:[#allocation6 + $0x20] sm:$0xff] %v3340
    %3383 = vst [vmem:[#allocation6 + $0x28] sm:$0xff] %v3345
    %3384 = vst [vmem:[#allocation6 + $0x30] sm:$0xff] %v3350
    %3385 = vst [vmem:[#allocation6 + $0x38] sm:$0xff] %v3355
    %3386 = vst [vmem:[#allocation6 + $0x40] sm:$0xff] %v3360
    %3387 = vst [vmem:[#allocation6 + $0x48] sm:$0xff] %v3365
    %3388 = vst [vmem:[#allocation6 + $0x50] sm:$0xff] %v3370
    %3389 = vst [vmem:[#allocation6 + $0x58] sm:$0xff] %v3375
    // Predicated region
    $region14: #{tpu_custom_call.1} parent=1 // pred_check
      _
    $region15: #{tpu_custom_call.1} parent=1 // pred_check_branch
      %3391 = sbr.rel (0) target = $region17
    $region16: #{tpu_custom_call.1} parent=1 // pred_region
      %s3393 = ssub.s32 1536, 1536
      %3394 = vsyncadd [#allocation5], %s3393
      %s3395 = sshll.u32 [#allocation6], 4
      %s3396 = int_to_ptr.vmem [resolvable:$true] %s3395
      %3401 = dma.vmem_to_hbm [thread:$0]  %s3396, 1536, %s2, [#allocation5], 128, 128, 8
    $region17: #{tpu_custom_call.1} parent=1 // pred_fallthru
      _
    // Predicated region
    $region18: #{tpu_custom_call.1} parent=1 // pred_check
      _
    $region19: #{tpu_custom_call.1} parent=1 // pred_check_branch
      %3403 = sbr.rel (0) target = $region21
    $region20: #{tpu_custom_call.1} parent=1 // pred_region
      %3404 = dma.done [#allocation5], 1536
    $region21: #{tpu_custom_call.1} parent=1 // pred_fallthru
      _
    %3405 = vsyncpa [#allocation4], 1
    %3406 = vsyncpa [#allocation5], 1

</llo_original>
